<compile_context>
chip_gen: v7x
topology: tpu7x:2x2x1
jax: 0.10.0
libtpu: 0.0.40
codegen_flags: <defaults>
</compile_context>

<pallas_src>
import functools
from typing import NamedTuple

import jax
import jax.numpy as jnp
import numpy as np
from jax.experimental import pallas as pl
from jax.experimental.pallas import tpu as pltpu

EPS = 1e-12                      # matches the PyTorch module spec (EPS passed to BatchNorm2d)
_MXU_DTYPE = jnp.bfloat16        # native MXU dtype (f32 accumulate)
_MAX_TILE_ROWS = 512


def _round_up(x, m):
    return (x + m - 1) // m * m


def _vmem_limits():
    """(vmem_limit_bytes, tile byte budget) derived from the device's VMEM capacity."""
    try:
        cap = int(pltpu.get_tpu_info().vmem_capacity_bytes)
    except Exception:
        cap = 64 * 1024 * 1024   # v7x per-TensorCore VMEM = smallest across generations
    limit = min(int(cap * 0.7), 96 * 1024 * 1024)
    return limit, int(limit * 0.55)


def _pick_tile_rows(p_rows, k, cin, cout_p, budget):
    """Pixel rows per tile: multiple of 8, VMEM-budgeted, >=2 grid steps for megacore."""
    # double-buffered f32 x tile + in-kernel intermediates (y, pooled, bf16 operand)
    # + double-buffered f32 out tile + dot result.
    per_row = 3 * k * cin * 4 + cin * 6 + 3 * cout_p * 4
    fixed = cin * cout_p * 2 + 4 * cin * 4          # resident bf16 W + f32 a, b
    avail = max(budget - fixed, 8 * per_row)
    rows = min(_MAX_TILE_ROWS, avail // per_row, _round_up(p_rows, 8))
    if p_rows > 8:                                  # >=2 tiles so v7x's 2nd TensorCore has work
        rows = min(rows, _round_up(-(-p_rows // 2), 8))
    if p_rows >= 1024:                              # ~4 pipeline steps when tiles stay large
        rows = min(rows, max(256, _round_up(-(-p_rows // 4), 8)))
    rows = int(rows)
    return max(8, rows - rows % 8)


# --------------------------- Kernel A: affine+ReLU(+pool)+matmul ---------------------------

def _affine_relu_matmul_kernel(x_ref, a_ref, b_ref, w_ref, o_ref):
    """o = (sum_k relu(x[k] * a + b)) @ W   for one tile of pixel rows.

    x_ref: (K, TP, C) f32   a_ref, b_ref: (1, C) f32
    w_ref: (C, Cout_p) bf16 (VMEM resident; pool scale pre-folded)   o_ref: (TP, Cout_p) f32
    """
    y = jnp.maximum(x_ref[...] * a_ref[...] + b_ref[...], 0.0)   # folded train-mode BN + ReLU
    pooled = y[0] if x_ref.shape[0] == 1 else jnp.sum(y, axis=0)
    o_ref[...] = jnp.dot(pooled.astype(w_ref.dtype), w_ref[...],
                         preferred_element_type=jnp.float32)


def _affine_relu_matmul(x_kpc, a, b, w):
    """relu(x*a+b) summed over the leading window axis, then @ w — tiled over pixels.

    x_kpc: (K, P, C) f32; a, b: (C,) f32; w: (C, Cout_p) bf16 pre-packed. Returns (P, Cout_p) f32.
    """
    k, p_rows, c = x_kpc.shape
    cout_p = w.shape[1]
    limit, budget = _vmem_limits()
    tile_rows = _pick_tile_rows(p_rows, k, c, cout_p, budget)
    p_pad = _round_up(p_rows, tile_rows)
    if p_pad != p_rows:
        x_kpc = jnp.pad(x_kpc, ((0, 0), (0, p_pad - p_rows), (0, 0)))
    a2 = a.astype(jnp.float32).reshape(1, c)
    b2 = b.astype(jnp.float32).reshape(1, c)
    out = pl.pallas_call(
        _affine_relu_matmul_kernel,
        out_shape=jax.ShapeDtypeStruct((p_pad, cout_p), jnp.float32),
        grid=(p_pad // tile_rows,),
        in_specs=[
            pl.BlockSpec((k, tile_rows, c), lambda i: (0, i, 0)),    # streamed pixel tiles
            pl.BlockSpec((1, c), lambda i: (0, 0)),                  # resident
            pl.BlockSpec((1, c), lambda i: (0, 0)),                  # resident
            pl.BlockSpec((c, cout_p), lambda i: (0, 0)),             # resident bf16 weights
        ],
        out_specs=pl.BlockSpec((tile_rows, cout_p), lambda i: (i, 0)),
        compiler_params=pltpu.CompilerParams(
            dimension_semantics=("parallel",), vmem_limit_bytes=limit),
    )(x_kpc, a2, b2, w)
    return out[:p_rows]


# ------------------------ Kernel B: KxK conv as per-tap matmul reduction -------------------

def _spatial_conv_kernel(act_ref, w_ref, o_ref, *, rows_out, wp, kh, kw):
    """KxK 'same' conv of one image as a per-tap matmul reduction (no im2col).

    act_ref: (1, R, hid) bf16 — spatially padded activation, flattened row-major, with
             >= (kh-1)*wp + kw - 1 extra zero rows at the end.
    w_ref:   (kh*kw, hid, gr_p) bf16 (VMEM resident).
    o_ref:   (1, rows_out, gr_p) f32, rows_out = padded_H * padded_W.
    """
    acc = jnp.zeros((rows_out, w_ref.shape[-1]), jnp.float32)
    for u in range(kh):
        for v in range(kw):
            t = u * wp + v                                   # static row offset of this tap
            win = act_ref[0, t:t + rows_out, :]
            acc = acc + jnp.dot(win, w_ref[u * kw + v],
                                preferred_element_type=jnp.float32)
    o_ref[...] = acc[None]


def _spatial_conv(act_flat, w_taps, *, rows_out, wp, kh, kw):
    """Per-image KxK conv: act_flat (N, R, hid) bf16, w_taps (kh*kw, hid, gr_p) bf16."""
    n, r, hid = act_flat.shape
    gr_p = w_taps.shape[-1]
    limit, _ = _vmem_limits()
    kernel = functools.partial(_spatial_conv_kernel,
                               rows_out=rows_out, wp=wp, kh=kh, kw=kw)
    return pl.pallas_call(
        kernel,
        out_shape=jax.ShapeDtypeStruct((n, rows_out, gr_p), jnp.float32),
        grid=(n,),
        in_specs=[
            pl.BlockSpec((1, r, hid), lambda i: (i, 0, 0)),
            pl.BlockSpec((kh * kw, hid, gr_p), lambda i: (0, 0, 0)),  # resident
        ],
        out_specs=pl.BlockSpec((1, rows_out, gr_p), lambda i: (i, 0, 0)),
        compiler_params=pltpu.CompilerParams(
            dimension_semantics=("parallel",), vmem_limit_bytes=limit),
    )(act_flat, w_taps)


# --------------------------------- wrappers / forward --------------------------------------

def _fold_bn_cols(x2d, gamma, beta, eps=EPS):
    """Train-mode BatchNorm (biased batch variance over pixel rows) folded to (a, b)."""
    mean = jnp.mean(x2d, axis=0)
    var = jnp.mean(jnp.square(x2d - mean[None, :]), axis=0)
    a = gamma / jnp.sqrt(var + eps)
    return a, beta - mean * a


class BlockCfg(NamedTuple):
    in_channels: int
    growth: int
    hidden: int
    kh: int
    kw: int
    num_layers: int
    out_channels: int


def prepare_params(params, cfg):
    """One-time weight packing (outside the per-forward path): pad to lane multiples,
    transpose to (Cin, Cout), fold the 2x2 avg-pool scale, cast to bf16."""
    c_slab = cfg.in_channels + cfg.num_layers * cfg.growth
    hid_p = _round_up(cfg.hidden, 128)
    gr_p = _round_up(cfg.growth, 128)
    cout_p = _round_up(cfg.out_channels, 128)
    layers, feat = [], cfg.in_channels
    for prm in params["layers"]:
        w1 = prm["w1"].reshape(cfg.hidden, feat).T                       # (feat, hidden)
        w1p = jnp.zeros((c_slab, hid_p), jnp.float32).at[:feat, :cfg.hidden].set(w1)
        w2 = jnp.transpose(prm["w2"], (2, 3, 1, 0)).reshape(
            cfg.kh * cfg.kw, cfg.hidden, cfg.growth)                     # per-tap (hid, gr)
        w2p = jnp.zeros((cfg.kh * cfg.kw, cfg.hidden, gr_p),
                        jnp.float32).at[:, :, :cfg.growth].set(w2)
        layers.append(dict(g1=prm["g1"], b1=prm["b1"], g2=prm["g2"], b2=prm["b2"],
                           w1p=w1p.astype(_MXU_DTYPE), w2p=w2p.astype(_MXU_DTYPE)))
        feat += cfg.growth
    t = params["transition"]
    wt = t["w"].reshape(cfg.out_channels, c_slab).T * 0.25               # fold AvgPool2d(2,2)
    wtp = jnp.zeros((c_slab, cout_p), jnp.float32).at[:, :cfg.out_channels].set(wt)
    return dict(layers=layers,
                transition=dict(g=t["g"], b=t["b"], wp=wtp.astype(_MXU_DTYPE)))


@functools.partial(jax.jit, static_argnums=(2,))
def dense_block_forward(x_nchw, pp, cfg):
    n, c, h, w = x_nchw.shape
    kh, kw = cfg.kh, cfg.kw
    pt, pb = (kh - 1) // 2, (kh - 1) - (kh - 1) // 2
    pwl, pwr = (kw - 1) // 2, (kw - 1) - (kw - 1) // 2
    hp, wp = h + kh - 1, w + kw - 1
    p = n * h * w
    c_slab = cfg.in_channels + cfg.num_layers * cfg.growth

    # Pixel-major feature slab (P, C_slab); layer outputs go into their channel slice, so
    # no per-layer NCHW<->NHWC transposes or growing channel concats.
    x_pix = jnp.transpose(x_nchw, (0, 2, 3, 1)).reshape(p, c)
    slab = jnp.pad(x_pix.astype(jnp.float32), ((0, 0), (0, c_slab - c)))

    feat = cfg.in_channels
    for prm in pp["layers"]:
        # BN1 (train-mode batch stats) folded to per-channel affine; zero outside the live
        # channel range so dead slab channels contribute nothing to the 1x1 conv.
        a1, b1 = _fold_bn_cols(slab[:, :feat], prm["g1"], prm["b1"])
        a1p = jnp.zeros((c_slab,), jnp.float32).at[:feat].set(a1)
        b1p = jnp.zeros((c_slab,), jnp.float32).at[:feat].set(b1)
        # Stage 1: BN1 + ReLU + 1x1 bottleneck conv (Pallas, K=1).  hmid stays f32 because
        # BN2 batch statistics are computed from it.
        hmid = _affine_relu_matmul(slab[None], a1p, b1p, prm["w1p"])[:, :cfg.hidden]
        # BN2 + ReLU (XLA elementwise; must precede the zero pad), then one pad that adds
        # the 'same' conv border plus kh extra zero rows so every flattened tap window
        # stays in bounds.  bf16 cast: this tensor only feeds the MXU.
        a2, b2 = _fold_bn_cols(hmid, prm["g2"], prm["b2"])
        act = jnp.maximum(hmid * a2[None, :] + b2[None, :], 0.0).reshape(n, h, w, cfg.hidden)
        act = jnp.pad(act, ((0, 0), (pt, pb + kh), (pwl, pwr), (0, 0))).astype(_MXU_DTYPE)
        act_flat = act.reshape(n, (hp + kh) * wp, cfg.hidden)
        # Stage 2: KxK conv as a per-tap matmul reduction (Pallas; no im2col materialization).
        y = _spatial_conv(act_flat, prm["w2p"], rows_out=hp * wp, wp=wp, kh=kh, kw=kw)
        y = y.reshape(n, hp, wp, -1)[:, :h, :w, :cfg.growth].reshape(p, cfg.growth)
        slab = slab.at[:, feat:feat + cfg.growth].set(y)
        feat += cfg.growth

    # Transition: BN + ReLU + 1x1 conv + AvgPool2d(2,2).  The pool commutes with the linear
    # conv, so the kernel sums K=4 window positions against 0.25-scaled resident weights.
    ho, wo = h // 2, w // 2
    at, bt = _fold_bn_cols(slab, pp["transition"]["g"], pp["transition"]["b"])
    x4 = slab.reshape(n, ho, 2, wo, 2, c_slab)
    x4 = jnp.transpose(x4, (2, 4, 0, 1, 3, 5)).reshape(4, n * ho * wo, c_slab)
    yt = _affine_relu_matmul(x4, at, bt, pp["transition"]["wp"])[:, :cfg.out_channels]
    return jnp.transpose(yt.reshape(n, ho, wo, cfg.out_channels), (0, 3, 1, 2))


# ----------------------------- pure-JAX reference ------------------------------------------

def _bn_relu_ref(x, gamma, beta, eps=EPS):
    mean = jnp.mean(x, axis=(0, 2, 3), keepdims=True)
    var = jnp.mean(jnp.square(x - mean), axis=(0, 2, 3), keepdims=True)
    xn = (x - mean) / jnp.sqrt(var + eps)
    xn = xn * gamma.reshape(1, -1, 1, 1) + beta.reshape(1, -1, 1, 1)
    return jnp.maximum(xn, 0.0)


def dense_block_reference(x, params):
    """Pure-JAX f32 reference mirroring the PyTorch DenseBlock forward (train-mode BN)."""
    h = x
    for prm in params["layers"]:
        gr, hid, kh, kw = prm["w2"].shape
        pt, pb = (kh - 1) // 2, (kh - 1) - (kh - 1) // 2
        pwl, pwr = (kw - 1) // 2, (kw - 1) - (kw - 1) // 2
        t = _bn_relu_ref(h, prm["g1"], prm["b1"])
        t = jnp.einsum("nchw,oc->nohw", t, prm["w1"].reshape(hid, -1))
        t = _bn_relu_ref(t, prm["g2"], prm["b2"])
        t = jnp.pad(t, ((0, 0), (0, 0), (pt, pb), (pwl, pwr)))
        y = jax.lax.conv_general_dilated(
            t, prm["w2"], window_strides=(1, 1), padding="VALID",
            dimension_numbers=("NCHW", "OIHW", "NCHW"))
        h = jnp.concatenate([h, y], axis=1)
    prm = params["transition"]
    t = _bn_relu_ref(h, prm["g"], prm["b"])
    y = jnp.einsum("nchw,oc->nohw", t, prm["w"].reshape(prm["w"].shape[0], -1))
    nn_, co, hh, ww = y.shape
    return y.reshape(nn_, co, hh // 2, 2, ww // 2, 2).mean(axis=(3, 5))


# ----------------------------------- test ---------------------------------------------------

def _init_dense_layer(key, cin, growth, ksize, hidden):
    k1, k2, k3, k4, k5, k6 = jax.random.split(key, 6)
    return dict(
        g1=1.0 + 0.1 * jax.random.normal(k1, (cin,), jnp.float32),
        b1=0.1 * jax.random.normal(k2, (cin,), jnp.float32),
        w1=0.1 * jax.random.normal(k3, (hidden, cin, 1, 1), jnp.float32),
        g2=1.0 + 0.1 * jax.random.normal(k4, (hidden,), jnp.float32),
        b2=0.1 * jax.random.normal(k5, (hidden,), jnp.float32),
        w2=0.1 * jax.random.normal(k6, (growth, hidden, ksize[0], ksize[1]), jnp.float32),
    )


if __name__ == "__main__":
    key = jax.random.PRNGKey(0)

    # Small DenseBlock: in_channels=8, growth_rate=8, kernel_size=(3,3), stride=(1,1),
    # hidden_channels=32, num_layers=3, out_channels=16, input (4, 8, 16, 16).
    n, cin, hgt, wid = 4, 8, 16, 16
    growth, hidden, num_layers = 8, 32, 3
    ksize = (3, 3)
    cout = 16
    cfg = BlockCfg(cin, growth, hidden, ksize[0], ksize[1], num_layers, cout)

    keys = jax.random.split(key, num_layers + 2)
    layers, feat = [], cin
    for i in range(num_layers):
        layers.append(_init_dense_layer(keys[i], feat, growth, ksize, hidden))
        feat += growth
    kg, kb, kw_ = jax.random.split(keys[num_layers], 3)
    params = {
        "layers": layers,
        "transition": dict(
            g=1.0 + 0.1 * jax.random.normal(kg, (feat,), jnp.float32),
            b=0.1 * jax.random.normal(kb, (feat,), jnp.float32),
            w=0.1 * jax.random.normal(kw_, (cout, feat, 1, 1), jnp.float32),
        ),
    }
    x = jax.random.normal(keys[num_layers + 1], (n, cin, hgt, wid), jnp.float32)

    pp = prepare_params(params, cfg)          # one-time weight packing (outside the jit)
    out = jax.block_until_ready(dense_block_forward(x, pp, cfg))
    ref = jax.block_until_ready(dense_block_reference(x, params))

    assert out.shape == (n, cout, hgt // 2, wid // 2), out.shape
    # Kernel matmuls use bf16 MXU operands (f32 accumulate) across chained matmuls,
    # hence the relaxed tolerance vs. the pure-f32 reference.
    np.testing.assert_allclose(np.asarray(out), np.asarray(ref), rtol=5e-2, atol=5e-2)
    print("KERNEL_OK")
</pallas_src>

<mosaic_0001>
module attributes {stable_mosaic.version = 11 : i64} {
  func.func @_affine_relu_matmul_kernel(%arg0: i32, %arg1: memref<1x256x32xf32, #tpu.memory_space<vmem>>, %arg2: memref<1x32xf32, #tpu.memory_space<vmem>>, %arg3: memref<1x32xf32, #tpu.memory_space<vmem>>, %arg4: memref<32x128xbf16, #tpu.memory_space<vmem>>, %arg5: memref<256x128xf32, #tpu.memory_space<vmem>>) attributes {dimension_semantics = [#tpu.dimension_semantics<parallel>], iteration_bounds = array<i64: 4>, scalar_prefetch = 0 : i64, scratch_operands = 0 : i64, tpu.core_type = #tpu.core_type<tc>, window_params = [{transform_indices = @transform_0, window_bounds = array<i64: 1, 256, 32>}, {pipeline_mode = #tpu.pipeline_mode<synchronous>, transform_indices = @transform_1, window_bounds = array<i64: 1, 32>}, {pipeline_mode = #tpu.pipeline_mode<synchronous>, transform_indices = @transform_2, window_bounds = array<i64: 1, 32>}, {pipeline_mode = #tpu.pipeline_mode<synchronous>, transform_indices = @transform_3, window_bounds = array<i64: 32, 128>}, {transform_indices = @transform_4, window_bounds = array<i64: 256, 128>}]} {
    %c0 = arith.constant 0 : index
    %c0_0 = arith.constant 0 : index
    %c0_1 = arith.constant 0 : index
    %0 = vector.load %arg1[%c0, %c0_0, %c0_1] : memref<1x256x32xf32, #tpu.memory_space<vmem>>, vector<1x256x32xf32>
    %c0_2 = arith.constant 0 : index
    %c0_3 = arith.constant 0 : index
    %1 = vector.load %arg2[%c0_2, %c0_3] : memref<1x32xf32, #tpu.memory_space<vmem>>, vector<1x32xf32>
    %2 = vector.shape_cast %1 : vector<1x32xf32> to vector<1x1x32xf32>
    %3 = vector.broadcast %2 : vector<1x1x32xf32> to vector<1x256x32xf32>
    %4 = arith.mulf %0, %3 : vector<1x256x32xf32>
    %c0_4 = arith.constant 0 : index
    %c0_5 = arith.constant 0 : index
    %5 = vector.load %arg3[%c0_4, %c0_5] : memref<1x32xf32, #tpu.memory_space<vmem>>, vector<1x32xf32>
    %6 = vector.shape_cast %5 : vector<1x32xf32> to vector<1x1x32xf32>
    %7 = vector.broadcast %6 : vector<1x1x32xf32> to vector<1x256x32xf32>
    %8 = arith.addf %4, %7 : vector<1x256x32xf32>
    %cst = arith.constant 0.000000e+00 : f32
    %9 = vector.broadcast %cst : f32 to vector<1x256x32xf32>
    %10 = arith.maximumf %8, %9 : vector<1x256x32xf32>
    %11 = vector.shape_cast %10 : vector<1x256x32xf32> to vector<256x32xf32>
    %12 = arith.truncf %11 : vector<256x32xf32> to vector<256x32xbf16>
    %c0_6 = arith.constant 0 : index
    %c0_7 = arith.constant 0 : index
    %13 = vector.load %arg4[%c0_6, %c0_7] : memref<32x128xbf16, #tpu.memory_space<vmem>>, vector<32x128xbf16>
    %cst_8 = arith.constant dense<0.000000e+00> : vector<256x128xf32>
    %14 = tpu.matmul %12, %13, %cst_8 {dimension_numbers = #tpu.dot_dimension_numbers<[1], [0], [0], [1], [0, 0, 1, 1], [], []>} : vector<256x32xbf16>, vector<32x128xbf16>, vector<256x128xf32> -> vector<256x128xf32>
    %c0_9 = arith.constant 0 : index
    %c0_10 = arith.constant 0 : index
    %15 = vector.load %arg5[%c0_9, %c0_10] : memref<256x128xf32, #tpu.memory_space<vmem>>, vector<256x128xf32>
    tpu.vector_store %arg5[%c0_9, %c0_10], %14 {strides = array<i32>} : memref<256x128xf32, #tpu.memory_space<vmem>>, vector<256x128xf32>,
    return
  }
  func.func @transform_0(%arg0: i32) -> (i32, i32, i32) {
    %c0_i32 = arith.constant 0 : i32
    %c0_i32_0 = arith.constant 0 : i32
    %c0_i32_1 = arith.constant 0 : i32
    return %c0_i32, %arg0, %c0_i32_0 : i32, i32, i32
  }
  func.func @transform_1(%arg0: i32) -> (i32, i32) {
    %c0_i32 = arith.constant 0 : i32
    %c0_i32_0 = arith.constant 0 : i32
    %c0_i32_1 = arith.constant 0 : i32
    return %c0_i32, %c0_i32_0 : i32, i32
  }
  func.func @transform_2(%arg0: i32) -> (i32, i32) {
    %c0_i32 = arith.constant 0 : i32
    %c0_i32_0 = arith.constant 0 : i32
    %c0_i32_1 = arith.constant 0 : i32
    return %c0_i32, %c0_i32_0 : i32, i32
  }
  func.func @transform_3(%arg0: i32) -> (i32, i32) {
    %c0_i32 = arith.constant 0 : i32
    %c0_i32_0 = arith.constant 0 : i32
    %c0_i32_1 = arith.constant 0 : i32
    return %c0_i32, %c0_i32_0 : i32, i32
  }
  func.func @transform_4(%arg0: i32) -> (i32, i32) {
    %c0_i32 = arith.constant 0 : i32
    %c0_i32_0 = arith.constant 0 : i32
    return %arg0, %c0_i32 : i32, i32
  }
}

module attributes {stable_mosaic.version = 11 : i64} {
  func.func @_spatial_conv_kernel(%arg0: i32, %arg1: memref<1x378x32xbf16, #tpu.memory_space<vmem>>, %arg2: memref<9x32x128xbf16, #tpu.memory_space<vmem>>, %arg3: memref<1x324x128xf32, #tpu.memory_space<vmem>>) attributes {dimension_semantics = [#tpu.dimension_semantics<parallel>], iteration_bounds = array<i64: 4>, scalar_prefetch = 0 : i64, scratch_operands = 0 : i64, tpu.core_type = #tpu.core_type<tc>, window_params = [{transform_indices = @transform_0, window_bounds = array<i64: 1, 378, 32>}, {pipeline_mode = #tpu.pipeline_mode<synchronous>, transform_indices = @transform_1, window_bounds = array<i64: 9, 32, 128>}, {transform_indices = @transform_2, window_bounds = array<i64: 1, 324, 128>}]} {
    %cst = arith.constant 0.000000e+00 : f32
    %0 = vector.broadcast %cst : f32 to vector<324x128xf32>
    %c0 = arith.constant 0 : index
    %c0_0 = arith.constant 0 : index
    %c0_1 = arith.constant 0 : index
    %1 = vector.load %arg1[%c0, %c0_0, %c0_1] : memref<1x378x32xbf16, #tpu.memory_space<vmem>>, vector<1x324x32xbf16>
    %2 = vector.shape_cast %1 : vector<1x324x32xbf16> to vector<324x32xbf16>
    %c0_2 = arith.constant 0 : index
    %c0_3 = arith.constant 0 : index
    %c0_4 = arith.constant 0 : index
    %3 = vector.load %arg2[%c0_2, %c0_3, %c0_4] : memref<9x32x128xbf16, #tpu.memory_space<vmem>>, vector<1x32x128xbf16>
    %4 = vector.shape_cast %3 : vector<1x32x128xbf16> to vector<32x128xbf16>
    %cst_5 = arith.constant dense<0.000000e+00> : vector<324x128xf32>
    %5 = tpu.matmul %2, %4, %cst_5 {dimension_numbers = #tpu.dot_dimension_numbers<[1], [0], [0], [1], [0, 0, 1, 1], [], []>} : vector<324x32xbf16>, vector<32x128xbf16>, vector<324x128xf32> -> vector<324x128xf32>
    %6 = arith.addf %0, %5 : vector<324x128xf32>
    %c0_6 = arith.constant 0 : index
    %c1 = arith.constant 1 : index
    %c0_7 = arith.constant 0 : index
    %7 = vector.load %arg1[%c0_6, %c1, %c0_7] : memref<1x378x32xbf16, #tpu.memory_space<vmem>>, vector<1x324x32xbf16>
    %8 = vector.shape_cast %7 : vector<1x324x32xbf16> to vector<324x32xbf16>
    %c1_8 = arith.constant 1 : index
    %c0_9 = arith.constant 0 : index
    %c0_10 = arith.constant 0 : index
    %9 = vector.load %arg2[%c1_8, %c0_9, %c0_10] : memref<9x32x128xbf16, #tpu.memory_space<vmem>>, vector<1x32x128xbf16>
    %10 = vector.shape_cast %9 : vector<1x32x128xbf16> to vector<32x128xbf16>
    %cst_11 = arith.constant dense<0.000000e+00> : vector<324x128xf32>
    %11 = tpu.matmul %8, %10, %cst_11 {dimension_numbers = #tpu.dot_dimension_numbers<[1], [0], [0], [1], [0, 0, 1, 1], [], []>} : vector<324x32xbf16>, vector<32x128xbf16>, vector<324x128xf32> -> vector<324x128xf32>
    %12 = arith.addf %6, %11 : vector<324x128xf32>
    %c0_12 = arith.constant 0 : index
    %c2 = arith.constant 2 : index
    %c0_13 = arith.constant 0 : index
    %13 = vector.load %arg1[%c0_12, %c2, %c0_13] : memref<1x378x32xbf16, #tpu.memory_space<vmem>>, vector<1x324x32xbf16>
    %14 = vector.shape_cast %13 : vector<1x324x32xbf16> to vector<324x32xbf16>
    %c2_14 = arith.constant 2 : index
    %c0_15 = arith.constant 0 : index
    %c0_16 = arith.constant 0 : index
    %15 = vector.load %arg2[%c2_14, %c0_15, %c0_16] : memref<9x32x128xbf16, #tpu.memory_space<vmem>>, vector<1x32x128xbf16>
    %16 = vector.shape_cast %15 : vector<1x32x128xbf16> to vector<32x128xbf16>
    %cst_17 = arith.constant dense<0.000000e+00> : vector<324x128xf32>
    %17 = tpu.matmul %14, %16, %cst_17 {dimension_numbers = #tpu.dot_dimension_numbers<[1], [0], [0], [1], [0, 0, 1, 1], [], []>} : vector<324x32xbf16>, vector<32x128xbf16>, vector<324x128xf32> -> vector<324x128xf32>
    %18 = arith.addf %12, %17 : vector<324x128xf32>
    %c0_18 = arith.constant 0 : index
    %c18 = arith.constant 18 : index
    %c0_19 = arith.constant 0 : index
    %19 = vector.load %arg1[%c0_18, %c18, %c0_19] : memref<1x378x32xbf16, #tpu.memory_space<vmem>>, vector<1x324x32xbf16>
    %20 = vector.shape_cast %19 : vector<1x324x32xbf16> to vector<324x32xbf16>
    %c3 = arith.constant 3 : index
    %c0_20 = arith.constant 0 : index
    %c0_21 = arith.constant 0 : index
    %21 = vector.load %arg2[%c3, %c0_20, %c0_21] : memref<9x32x128xbf16, #tpu.memory_space<vmem>>, vector<1x32x128xbf16>
    %22 = vector.shape_cast %21 : vector<1x32x128xbf16> to vector<32x128xbf16>
    %cst_22 = arith.constant dense<0.000000e+00> : vector<324x128xf32>
    %23 = tpu.matmul %20, %22, %cst_22 {dimension_numbers = #tpu.dot_dimension_numbers<[1], [0], [0], [1], [0, 0, 1, 1], [], []>} : vector<324x32xbf16>, vector<32x128xbf16>, vector<324x128xf32> -> vector<324x128xf32>
    %24 = arith.addf %18, %23 : vector<324x128xf32>
    %c0_23 = arith.constant 0 : index
    %c19 = arith.constant 19 : index
    %c0_24 = arith.constant 0 : index
    %25 = vector.load %arg1[%c0_23, %c19, %c0_24] : memref<1x378x32xbf16, #tpu.memory_space<vmem>>, vector<1x324x32xbf16>
    %26 = vector.shape_cast %25 : vector<1x324x32xbf16> to vector<324x32xbf16>
    %c4 = arith.constant 4 : index
    %c0_25 = arith.constant 0 : index
    %c0_26 = arith.constant 0 : index
    %27 = vector.load %arg2[%c4, %c0_25, %c0_26] : memref<9x32x128xbf16, #tpu.memory_space<vmem>>, vector<1x32x128xbf16>
    %28 = vector.shape_cast %27 : vector<1x32x128xbf16> to vector<32x128xbf16>
    %cst_27 = arith.constant dense<0.000000e+00> : vector<324x128xf32>
    %29 = tpu.matmul %26, %28, %cst_27 {dimension_numbers = #tpu.dot_dimension_numbers<[1], [0], [0], [1], [0, 0, 1, 1], [], []>} : vector<324x32xbf16>, vector<32x128xbf16>, vector<324x128xf32> -> vector<324x128xf32>
    %30 = arith.addf %24, %29 : vector<324x128xf32>
    %c0_28 = arith.constant 0 : index
    %c20 = arith.constant 20 : index
    %c0_29 = arith.constant 0 : index
    %31 = vector.load %arg1[%c0_28, %c20, %c0_29] : memref<1x378x32xbf16, #tpu.memory_space<vmem>>, vector<1x324x32xbf16>
    %32 = vector.shape_cast %31 : vector<1x324x32xbf16> to vector<324x32xbf16>
    %c5 = arith.constant 5 : index
    %c0_30 = arith.constant 0 : index
    %c0_31 = arith.constant 0 : index
    %33 = vector.load %arg2[%c5, %c0_30, %c0_31] : memref<9x32x128xbf16, #tpu.memory_space<vmem>>, vector<1x32x128xbf16>
    %34 = vector.shape_cast %33 : vector<1x32x128xbf16> to vector<32x128xbf16>
    %cst_32 = arith.constant dense<0.000000e+00> : vector<324x128xf32>
    %35 = tpu.matmul %32, %34, %cst_32 {dimension_numbers = #tpu.dot_dimension_numbers<[1], [0], [0], [1], [0, 0, 1, 1], [], []>} : vector<324x32xbf16>, vector<32x128xbf16>, vector<324x128xf32> -> vector<324x128xf32>
    %36 = arith.addf %30, %35 : vector<324x128xf32>
    %c0_33 = arith.constant 0 : index
    %c36 = arith.constant 36 : index
    %c0_34 = arith.constant 0 : index
    %37 = vector.load %arg1[%c0_33, %c36, %c0_34] : memref<1x378x32xbf16, #tpu.memory_space<vmem>>, vector<1x324x32xbf16>
    %38 = vector.shape_cast %37 : vector<1x324x32xbf16> to vector<324x32xbf16>
    %c6 = arith.constant 6 : index
    %c0_35 = arith.constant 0 : index
    %c0_36 = arith.constant 0 : index
    %39 = vector.load %arg2[%c6, %c0_35, %c0_36] : memref<9x32x128xbf16, #tpu.memory_space<vmem>>, vector<1x32x128xbf16>
    %40 = vector.shape_cast %39 : vector<1x32x128xbf16> to vector<32x128xbf16>
    %cst_37 = arith.constant dense<0.000000e+00> : vector<324x128xf32>
    %41 = tpu.matmul %38, %40, %cst_37 {dimension_numbers = #tpu.dot_dimension_numbers<[1], [0], [0], [1], [0, 0, 1, 1], [], []>} : vector<324x32xbf16>, vector<32x128xbf16>, vector<324x128xf32> -> vector<324x128xf32>
    %42 = arith.addf %36, %41 : vector<324x128xf32>
    %c0_38 = arith.constant 0 : index
    %c37 = arith.constant 37 : index
    %c0_39 = arith.constant 0 : index
    %43 = vector.load %arg1[%c0_38, %c37, %c0_39] : memref<1x378x32xbf16, #tpu.memory_space<vmem>>, vector<1x324x32xbf16>
    %44 = vector.shape_cast %43 : vector<1x324x32xbf16> to vector<324x32xbf16>
    %c7 = arith.constant 7 : index
    %c0_40 = arith.constant 0 : index
    %c0_41 = arith.constant 0 : index
    %45 = vector.load %arg2[%c7, %c0_40, %c0_41] : memref<9x32x128xbf16, #tpu.memory_space<vmem>>, vector<1x32x128xbf16>
    %46 = vector.shape_cast %45 : vector<1x32x128xbf16> to vector<32x128xbf16>
    %cst_42 = arith.constant dense<0.000000e+00> : vector<324x128xf32>
    %47 = tpu.matmul %44, %46, %cst_42 {dimension_numbers = #tpu.dot_dimension_numbers<[1], [0], [0], [1], [0, 0, 1, 1], [], []>} : vector<324x32xbf16>, vector<32x128xbf16>, vector<324x128xf32> -> vector<324x128xf32>
    %48 = arith.addf %42, %47 : vector<324x128xf32>
    %c0_43 = arith.constant 0 : index
    %c38 = arith.constant 38 : index
    %c0_44 = arith.constant 0 : index
    %49 = vector.load %arg1[%c0_43, %c38, %c0_44] : memref<1x378x32xbf16, #tpu.memory_space<vmem>>, vector<1x324x32xbf16>
    %50 = vector.shape_cast %49 : vector<1x324x32xbf16> to vector<324x32xbf16>
    %c8 = arith.constant 8 : index
    %c0_45 = arith.constant 0 : index
    %c0_46 = arith.constant 0 : index
    %51 = vector.load %arg2[%c8, %c0_45, %c0_46] : memref<9x32x128xbf16, #tpu.memory_space<vmem>>, vector<1x32x128xbf16>
    %52 = vector.shape_cast %51 : vector<1x32x128xbf16> to vector<32x128xbf16>
    %cst_47 = arith.constant dense<0.000000e+00> : vector<324x128xf32>
    %53 = tpu.matmul %50, %52, %cst_47 {dimension_numbers = #tpu.dot_dimension_numbers<[1], [0], [0], [1], [0, 0, 1, 1], [], []>} : vector<324x32xbf16>, vector<32x128xbf16>, vector<324x128xf32> -> vector<324x128xf32>
    %54 = arith.addf %48, %53 : vector<324x128xf32>
    %55 = vector.shape_cast %54 : vector<324x128xf32> to vector<1x324x128xf32>
    %c0_48 = arith.constant 0 : index
    %c0_49 = arith.constant 0 : index
    %c0_50 = arith.constant 0 : index
    %56 = vector.load %arg3[%c0_48, %c0_49, %c0_50] : memref<1x324x128xf32, #tpu.memory_space<vmem>>, vector<1x324x128xf32>
    tpu.vector_store %arg3[%c0_48, %c0_49, %c0_50], %55 {strides = array<i32>} : memref<1x324x128xf32, #tpu.memory_space<vmem>>, vector<1x324x128xf32>,
    return
  }
  func.func @transform_0(%arg0: i32) -> (i32, i32, i32) {
    %c0_i32 = arith.constant 0 : i32
    %c0_i32_0 = arith.constant 0 : i32
    %c0_i32_1 = arith.constant 0 : i32
    return %arg0, %c0_i32, %c0_i32_0 : i32, i32, i32
  }
  func.func @transform_1(%arg0: i32) -> (i32, i32, i32) {
    %c0_i32 = arith.constant 0 : i32
    %c0_i32_0 = arith.constant 0 : i32
    %c0_i32_1 = arith.constant 0 : i32
    %c0_i32_2 = arith.constant 0 : i32
    return %c0_i32, %c0_i32_0, %c0_i32_1 : i32, i32, i32
  }
  func.func @transform_2(%arg0: i32) -> (i32, i32, i32) {
    %c0_i32 = arith.constant 0 : i32
    %c0_i32_0 = arith.constant 0 : i32
    %c0_i32_1 = arith.constant 0 : i32
    return %arg0, %c0_i32, %c0_i32_0 : i32, i32, i32
  }
}

module attributes {stable_mosaic.version = 11 : i64} {
  func.func @_affine_relu_matmul_kernel(%arg0: i32, %arg1: memref<4x128x32xf32, #tpu.memory_space<vmem>>, %arg2: memref<1x32xf32, #tpu.memory_space<vmem>>, %arg3: memref<1x32xf32, #tpu.memory_space<vmem>>, %arg4: memref<32x128xbf16, #tpu.memory_space<vmem>>, %arg5: memref<128x128xf32, #tpu.memory_space<vmem>>) attributes {dimension_semantics = [#tpu.dimension_semantics<parallel>], iteration_bounds = array<i64: 2>, scalar_prefetch = 0 : i64, scratch_operands = 0 : i64, tpu.core_type = #tpu.core_type<tc>, window_params = [{transform_indices = @transform_0, window_bounds = array<i64: 4, 128, 32>}, {pipeline_mode = #tpu.pipeline_mode<synchronous>, transform_indices = @transform_1, window_bounds = array<i64: 1, 32>}, {pipeline_mode = #tpu.pipeline_mode<synchronous>, transform_indices = @transform_2, window_bounds = array<i64: 1, 32>}, {pipeline_mode = #tpu.pipeline_mode<synchronous>, transform_indices = @transform_3, window_bounds = array<i64: 32, 128>}, {transform_indices = @transform_4, window_bounds = array<i64: 128, 128>}]} {
    %c0 = arith.constant 0 : index
    %c0_0 = arith.constant 0 : index
    %c0_1 = arith.constant 0 : index
    %0 = vector.load %arg1[%c0, %c0_0, %c0_1] : memref<4x128x32xf32, #tpu.memory_space<vmem>>, vector<4x128x32xf32>
    %c0_2 = arith.constant 0 : index
    %c0_3 = arith.constant 0 : index
    %1 = vector.load %arg2[%c0_2, %c0_3] : memref<1x32xf32, #tpu.memory_space<vmem>>, vector<1x32xf32>
    %2 = vector.shape_cast %1 : vector<1x32xf32> to vector<1x1x32xf32>
    %3 = vector.broadcast %2 : vector<1x1x32xf32> to vector<4x128x32xf32>
    %4 = arith.mulf %0, %3 : vector<4x128x32xf32>
    %c0_4 = arith.constant 0 : index
    %c0_5 = arith.constant 0 : index
    %5 = vector.load %arg3[%c0_4, %c0_5] : memref<1x32xf32, #tpu.memory_space<vmem>>, vector<1x32xf32>
    %6 = vector.shape_cast %5 : vector<1x32xf32> to vector<1x1x32xf32>
    %7 = vector.broadcast %6 : vector<1x1x32xf32> to vector<4x128x32xf32>
    %8 = arith.addf %4, %7 : vector<4x128x32xf32>
    %cst = arith.constant 0.000000e+00 : f32
    %9 = vector.broadcast %cst : f32 to vector<4x128x32xf32>
    %10 = arith.maximumf %8, %9 : vector<4x128x32xf32>
    %cst_6 = arith.constant dense<0.000000e+00> : vector<128x32xf32>
    %11 = vector.multi_reduction <add>, %10, %cst_6 [0] : vector<4x128x32xf32> to vector<128x32xf32>
    %12 = arith.truncf %11 : vector<128x32xf32> to vector<128x32xbf16>
    %c0_7 = arith.constant 0 : index
    %c0_8 = arith.constant 0 : index
    %13 = vector.load %arg4[%c0_7, %c0_8] : memref<32x128xbf16, #tpu.memory_space<vmem>>, vector<32x128xbf16>
    %cst_9 = arith.constant dense<0.000000e+00> : vector<128x128xf32>
    %14 = tpu.matmul %12, %13, %cst_9 {dimension_numbers = #tpu.dot_dimension_numbers<[1], [0], [0], [1], [0, 0, 1, 1], [], []>} : vector<128x32xbf16>, vector<32x128xbf16>, vector<128x128xf32> -> vector<128x128xf32>
    %c0_10 = arith.constant 0 : index
    %c0_11 = arith.constant 0 : index
    %15 = vector.load %arg5[%c0_10, %c0_11] : memref<128x128xf32, #tpu.memory_space<vmem>>, vector<128x128xf32>
    tpu.vector_store %arg5[%c0_10, %c0_11], %14 {strides = array<i32>} : memref<128x128xf32, #tpu.memory_space<vmem>>, vector<128x128xf32>,
    return
  }
  func.func @transform_0(%arg0: i32) -> (i32, i32, i32) {
    %c0_i32 = arith.constant 0 : i32
    %c0_i32_0 = arith.constant 0 : i32
    %c0_i32_1 = arith.constant 0 : i32
    return %c0_i32, %arg0, %c0_i32_0 : i32, i32, i32
  }
  func.func @transform_1(%arg0: i32) -> (i32, i32) {
    %c0_i32 = arith.constant 0 : i32
    %c0_i32_0 = arith.constant 0 : i32
    %c0_i32_1 = arith.constant 0 : i32
    return %c0_i32, %c0_i32_0 : i32, i32
  }
  func.func @transform_2(%arg0: i32) -> (i32, i32) {
    %c0_i32 = arith.constant 0 : i32
    %c0_i32_0 = arith.constant 0 : i32
    %c0_i32_1 = arith.constant 0 : i32
    return %c0_i32, %c0_i32_0 : i32, i32
  }
  func.func @transform_3(%arg0: i32) -> (i32, i32) {
    %c0_i32 = arith.constant 0 : i32
    %c0_i32_0 = arith.constant 0 : i32
    %c0_i32_1 = arith.constant 0 : i32
    return %c0_i32, %c0_i32_0 : i32, i32
  }
  func.func @transform_4(%arg0: i32) -> (i32, i32) {
    %c0_i32 = arith.constant 0 : i32
    %c0_i32_0 = arith.constant 0 : i32
    return %arg0, %c0_i32 : i32, i32
  }
}

</mosaic_0001>

<llo_original>
// kernel: dense_block_forward.7
$region0: #{dense_block_forward.7}
  #allocation0 [shape = 'u32[]', space=smem, size = 0x4, offset = 0x4, fixed_abs, tag = 'smem constant byte address 0x4 - core index']
  #allocation1 [shape = 'u32[144,128]{1,0:T(1,128)}', space=vmem, size = 0x12000, scoped, tag = 'internal scratch']
  %s0 = inlined_call_operand.vmem [shape: f32[1,1024,32], index: 0, kind: input, shape index: {}]
  %s1 = inlined_call_operand.vmem [shape: f32[1,32], index: 1, kind: input, shape index: {}]
  %s2 = inlined_call_operand.vmem [shape: f32[1,32], index: 2, kind: input, shape index: {}]
  %s3 = inlined_call_operand.vmem [shape: bf16[32,128], index: 3, kind: input, shape index: {}]
  %s4 = inlined_call_operand.vmem [shape: f32[1024,128], index: 4, kind: output, shape index: {}]
  %s5 = sld [smem:[#allocation0]]
  $region49: #{dense_block_forward.7} parent=0
    _
  %s7 = ssub.s32 1, %s5
  %s8 = scalar_select 0, %s7, %s5
  loop: start=0, step=1, limit=6
  $region2: #{dense_block_forward.7} parent=0 // loop_pre_header
    _
  $region3: #{dense_block_forward.7} parent=0 // loop_header
    %s10 = sphi 0, %s14
    %p11 = scmp.ge.s32.totalorder %s10, 6
    %s20 = sphi 0, %s22
    %s23 = sphi 0, %s20
    %s24 = sphi 0, %s23
    %s40 = sphi 0, %s24
    %s44 = sphi 0, %s44
    %s46 = sphi 0, %s44
    %s47 = sphi 0, %s46
    %s61 = sphi 0, %s47
    %s65 = sphi 0, %s65
    %s67 = sphi 0, %s65
    %s68 = sphi 0, %s67
    %s82 = sphi 0, %s68
    %s86 = sphi 0, %s86
    %s88 = sphi 0, %s86
    %s89 = sphi 0, %s88
    %s103 = sphi 0, %s89
    %s109 = sphi 0, %s111
    %s112 = sphi 0, %s109
    %s113 = sphi 0, %s112
    %s129 = sphi 0, %s113
  $region4: #{dense_block_forward.7} parent=0 // loop_header_branch
    %13 = sbr.rel (%p11) target = $region8
  $region5: #{dense_block_forward.7} parent=0 // loop_body
    %s15 = ssub.s32 %s10, 1
    %s16 = ssub.s32 %s10, 2
    %s17 = sadd.s32 %s10, 1
    %s18 = ssub.s32 %s10, %s17
    %p19 = scmp.eq.s32.totalorder %s18, 0
    %s21 = sadd.s32 %s20, 1
    %s22 = scalar_select %p19, %s20, %s21
    %p25 = pneg %p19
    %p26 = scmp.eq.s32.totalorder %s10, 3
    %p27 = por %p25, %p26
    %p28 = scmp.ne.s32.totalorder %s20, %s23
    %p29 = scmp.eq.s32.totalorder %s10, 0
    %p30 = por %p28, %p29
    %p31 = scmp.ne.s32.totalorder %s20, %s23
    %p32 = scmp.eq.s32.totalorder %s15, 3
    %p33 = por %p31, %p32
    %p34 = scmp.ne.s32.totalorder %s23, %s24
    %p35 = scmp.eq.s32.totalorder %s15, 0
    %p36 = por %p34, %p35
    %p37 = scmp.ne.s32.totalorder %s23, %s24
    %p38 = scmp.eq.s32.totalorder %s16, 3
    %p39 = por %p37, %p38
    %p41 = scmp.ne.s32.totalorder %s24, %s40
    %p42 = scmp.eq.s32.totalorder %s16, 0
    %p43 = por %p41, %p42
    %s45 = sadd.s32 %s44, 1
    %p48 = scmp.eq.s32.totalorder %s10, 3
    %p49 = scmp.ne.s32.totalorder %s44, %s46
    %p50 = scmp.eq.s32.totalorder %s10, 0
    %p51 = por %p49, %p50
    %p52 = scmp.ne.s32.totalorder %s44, %s46
    %p53 = scmp.eq.s32.totalorder %s15, 3
    %p54 = por %p52, %p53
    %p55 = scmp.ne.s32.totalorder %s46, %s47
    %p56 = scmp.eq.s32.totalorder %s15, 0
    %p57 = por %p55, %p56
    %p58 = scmp.ne.s32.totalorder %s46, %s47
    %p59 = scmp.eq.s32.totalorder %s16, 3
    %p60 = por %p58, %p59
    %p62 = scmp.ne.s32.totalorder %s47, %s61
    %p63 = scmp.eq.s32.totalorder %s16, 0
    %p64 = por %p62, %p63
    %s66 = sadd.s32 %s65, 1
    %p69 = scmp.eq.s32.totalorder %s10, 3
    %p70 = scmp.ne.s32.totalorder %s65, %s67
    %p71 = scmp.eq.s32.totalorder %s10, 0
    %p72 = por %p70, %p71
    %p73 = scmp.ne.s32.totalorder %s65, %s67
    %p74 = scmp.eq.s32.totalorder %s15, 3
    %p75 = por %p73, %p74
    %p76 = scmp.ne.s32.totalorder %s67, %s68
    %p77 = scmp.eq.s32.totalorder %s15, 0
    %p78 = por %p76, %p77
    %p79 = scmp.ne.s32.totalorder %s67, %s68
    %p80 = scmp.eq.s32.totalorder %s16, 3
    %p81 = por %p79, %p80
    %p83 = scmp.ne.s32.totalorder %s68, %s82
    %p84 = scmp.eq.s32.totalorder %s16, 0
    %p85 = por %p83, %p84
    %s87 = sadd.s32 %s86, 1
    %p90 = scmp.eq.s32.totalorder %s10, 3
    %p91 = scmp.ne.s32.totalorder %s86, %s88
    %p92 = scmp.eq.s32.totalorder %s10, 0
    %p93 = por %p91, %p92
    %p94 = scmp.ne.s32.totalorder %s86, %s88
    %p95 = scmp.eq.s32.totalorder %s15, 3
    %p96 = por %p94, %p95
    %p97 = scmp.ne.s32.totalorder %s88, %s89
    %p98 = scmp.eq.s32.totalorder %s15, 0
    %p99 = por %p97, %p98
    %p100 = scmp.ne.s32.totalorder %s88, %s89
    %p101 = scmp.eq.s32.totalorder %s16, 3
    %p102 = por %p100, %p101
    %p104 = scmp.ne.s32.totalorder %s89, %s103
    %p105 = scmp.eq.s32.totalorder %s16, 0
    %p106 = por %p104, %p105
    %s107 = ssub.s32 %s10, %s17
    %p108 = scmp.eq.s32.totalorder %s107, 0
    %s110 = sadd.s32 %s109, 1
    %s111 = scalar_select %p108, %s109, %s110
    %p114 = pneg %p108
    %p115 = scmp.eq.s32.totalorder %s10, 3
    %p116 = por %p114, %p115
    %p117 = scmp.ne.s32.totalorder %s109, %s112
    %p118 = scmp.eq.s32.totalorder %s10, 0
    %p119 = por %p117, %p118
    %p120 = scmp.ne.s32.totalorder %s109, %s112
    %p121 = scmp.eq.s32.totalorder %s15, 3
    %p122 = por %p120, %p121
    %p123 = scmp.ne.s32.totalorder %s112, %s113
    %p124 = scmp.eq.s32.totalorder %s15, 0
    %p125 = por %p123, %p124
    %p126 = scmp.ne.s32.totalorder %s112, %s113
    %p127 = scmp.eq.s32.totalorder %s16, 3
    %p128 = por %p126, %p127
    %p130 = scmp.ne.s32.totalorder %s113, %s129
    %p131 = scmp.eq.s32.totalorder %s16, 0
    %p132 = por %p130, %p131
    %p133 = scmp.le.s32.totalorder 1, %s10
    %p134 = scmp.lt.s32.totalorder %s10, 5
    %p135 = pnand %p133, %p134
    %p136 = pneg %p135
    // Predicated region
    $region9: #{dense_block_forward.7} parent=5 // pred_check
      _
    $region10: #{dense_block_forward.7} parent=5 // pred_check_branch
      %138 = sbr.rel (%p135) target = $region12
    $region11: #{dense_block_forward.7} parent=5 // pred_region
      %s139 = ssub.s32 %s10, 1
      // Predicated region
      $region13: #{dense_block_forward.7} parent=11 // pred_check
        %p140 = pneg %p57
      $region14: #{dense_block_forward.7} parent=11 // pred_check_branch
        %142 = sbr.rel (%p140) target = $region16
      $region15: #{dense_block_forward.7} parent=11 // pred_region
        _
      $region16: #{dense_block_forward.7} parent=11 // pred_fallthru
        _
      // Predicated region
      $region17: #{dense_block_forward.7} parent=11 // pred_check
        %p143 = pneg %p78
      $region18: #{dense_block_forward.7} parent=11 // pred_check_branch
        %145 = sbr.rel (%p143) target = $region20
      $region19: #{dense_block_forward.7} parent=11 // pred_region
        _
      $region20: #{dense_block_forward.7} parent=11 // pred_fallthru
        _
      // Predicated region
      $region21: #{dense_block_forward.7} parent=11 // pred_check
        %p146 = pneg %p99
      $region22: #{dense_block_forward.7} parent=11 // pred_check_branch
        %148 = sbr.rel (%p146) target = $region24
      $region23: #{dense_block_forward.7} parent=11 // pred_region
        _
      $region24: #{dense_block_forward.7} parent=11 // pred_fallthru
        _
    $region12: #{dense_block_forward.7} parent=5 // pred_fallthru
      _
    %p149 = scmp.lt.s32.totalorder %s10, 4
    // Predicated region
    $region25: #{dense_block_forward.7} parent=5 // pred_check
      %p150 = pneg %p149
    $region26: #{dense_block_forward.7} parent=5 // pred_check_branch
      %152 = sbr.rel (%p150) target = $region28
    $region27: #{dense_block_forward.7} parent=5 // pred_region
      // Predicated region
      $region29: #{dense_block_forward.7} parent=27 // pred_check
        %p153 = pneg %p30
      $region30: #{dense_block_forward.7} parent=27 // pred_check_branch
        %155 = sbr.rel (%p153) target = $region32
      $region31: #{dense_block_forward.7} parent=27 // pred_region
        %s156 = smul.u32 32, %s10
        %p157 = scmp.lt.s32.totalorder %s156, 127
        %s158 = scalar_select %p157, %s156, 127
        %s159 = smul.addr %s158, 8
        %s160 = scalar_lea.vmem %s0, %s159
        %s161 = smul.u32 32, %s10
      $region32: #{dense_block_forward.7} parent=27 // pred_fallthru
        _
    $region28: #{dense_block_forward.7} parent=5 // pred_fallthru
      _
    %p162 = scmp.le.s32.totalorder 1, %s10
    %p163 = scmp.lt.s32.totalorder %s10, 5
    %p164 = pnand %p162, %p163
    %p165 = pneg %p164
    // Predicated region
    $region33: #{dense_block_forward.7} parent=5 // pred_check
      _
    $region34: #{dense_block_forward.7} parent=5 // pred_check_branch
      %167 = sbr.rel (%p164) target = $region36
    $region35: #{dense_block_forward.7} parent=5 // pred_region
      %s168 = ssub.s32 %s10, 1
      %s169 = smul.u32 32, %s15
      %p170 = scmp.lt.s32.totalorder %s169, 127
      %s171 = scalar_select %p170, %s169, 127
      %s172 = smul.addr %s171, 8
      %s173 = scalar_lea.vmem %s0, %s172
      %p174 = pneg %p36
      %p175 = pneg %p33
      %p176 = pneg %p57
      %p177 = pneg %p54
      %p178 = pneg %p78
      %p179 = pneg %p75
      %p180 = pneg %p99
      %p181 = pneg %p96
      %p182 = pneg %p125
      %p183 = pneg %p122
      %s184 = smul.u32 32, %s15
      %p185 = scmp.lt.s32.totalorder %s184, 127
      %s186 = scalar_select %p185, %s184, 127
      %s187 = smul.addr %s186, 8
      %s188 = scalar_lea.vmem %s4, %s187
      %s189 = smul.u32 32, %s15
      %p190 = scmp.lt.s32.totalorder %s189, 127
      %s191 = scalar_select %p190, %s189, 127
      %s192 = smul.addr %s191, 8
      %s193 = scalar_lea.vmem %s0, %s192
      %s194 = smul.u32 32, %s15
      %s195 = smul.u32 32, %s15
      %p196 = scmp.lt.s32.totalorder %s195, 127
      %s197 = scalar_select %p196, %s195, 127
      %s198 = smul.addr %s197, 8
      %s199 = scalar_lea.vmem %s4, %s198
      %s200 = smul.u32 32, %s15
      %v202 = vld [vmem:[%s193] sm:$0xff]
      %v203 = vld [vmem:[%s193 + $0x8] sm:$0xff]
      %v204 = vld [vmem:[%s193 + $0x10] sm:$0xff]
      %v205 = vld [vmem:[%s193 + $0x18] sm:$0xff]
      %v206 = vld [vmem:[%s193 + $0x20] sm:$0xff]
      %v207 = vld [vmem:[%s193 + $0x28] sm:$0xff]
      %v208 = vld [vmem:[%s193 + $0x30] sm:$0xff]
      %v209 = vld [vmem:[%s193 + $0x38] sm:$0xff]
      %v210 = vld [vmem:[%s193 + $0x40] sm:$0xff]
      %v211 = vld [vmem:[%s193 + $0x48] sm:$0xff]
      %v212 = vld [vmem:[%s193 + $0x50] sm:$0xff]
      %v213 = vld [vmem:[%s193 + $0x58] sm:$0xff]
      %v214 = vld [vmem:[%s193 + $0x60] sm:$0xff]
      %v215 = vld [vmem:[%s193 + $0x68] sm:$0xff]
      %v216 = vld [vmem:[%s193 + $0x70] sm:$0xff]
      %v217 = vld [vmem:[%s193 + $0x78] sm:$0xff]
      %v218 = vld [vmem:[%s193 + $0x80] sm:$0xff]
      %v219 = vld [vmem:[%s193 + $0x88] sm:$0xff]
      %v220 = vld [vmem:[%s193 + $0x90] sm:$0xff]
      %v221 = vld [vmem:[%s193 + $0x98] sm:$0xff]
      %v222 = vld [vmem:[%s193 + $0xa0] sm:$0xff]
      %v223 = vld [vmem:[%s193 + $0xa8] sm:$0xff]
      %v224 = vld [vmem:[%s193 + $0xb0] sm:$0xff]
      %v225 = vld [vmem:[%s193 + $0xb8] sm:$0xff]
      %v226 = vld [vmem:[%s193 + $0xc0] sm:$0xff]
      %v227 = vld [vmem:[%s193 + $0xc8] sm:$0xff]
      %v228 = vld [vmem:[%s193 + $0xd0] sm:$0xff]
      %v229 = vld [vmem:[%s193 + $0xd8] sm:$0xff]
      %v230 = vld [vmem:[%s193 + $0xe0] sm:$0xff]
      %v231 = vld [vmem:[%s193 + $0xe8] sm:$0xff]
      %v232 = vld [vmem:[%s193 + $0xf0] sm:$0xff]
      %v233 = vld [vmem:[%s193 + $0xf8] sm:$0xff]
      %v234 = vld [vmem:[%s1] sm:$0x1]
      %v236 = vlaneseq
      %v237 = vshrl.u32 %v236, 7
      %v238 = vsub.s32 0, %v237
      %v239 = vrot.slane %v234, %v238
      %v241 = vmul.f32 %v202, %v239
      %v242 = vmul.f32 %v203, %v239
      %v243 = vmul.f32 %v204, %v239
      %v244 = vmul.f32 %v205, %v239
      %v245 = vmul.f32 %v206, %v239
      %v246 = vmul.f32 %v207, %v239
      %v247 = vmul.f32 %v208, %v239
      %v248 = vmul.f32 %v209, %v239
      %v249 = vmul.f32 %v210, %v239
      %v250 = vmul.f32 %v211, %v239
      %v251 = vmul.f32 %v212, %v239
      %v252 = vmul.f32 %v213, %v239
      %v253 = vmul.f32 %v214, %v239
      %v254 = vmul.f32 %v215, %v239
      %v255 = vmul.f32 %v216, %v239
      %v256 = vmul.f32 %v217, %v239
      %v257 = vmul.f32 %v218, %v239
      %v258 = vmul.f32 %v219, %v239
      %v259 = vmul.f32 %v220, %v239
      %v260 = vmul.f32 %v221, %v239
      %v261 = vmul.f32 %v222, %v239
      %v262 = vmul.f32 %v223, %v239
      %v263 = vmul.f32 %v224, %v239
      %v264 = vmul.f32 %v225, %v239
      %v265 = vmul.f32 %v226, %v239
      %v266 = vmul.f32 %v227, %v239
      %v267 = vmul.f32 %v228, %v239
      %v268 = vmul.f32 %v229, %v239
      %v269 = vmul.f32 %v230, %v239
      %v270 = vmul.f32 %v231, %v239
      %v271 = vmul.f32 %v232, %v239
      %v272 = vmul.f32 %v233, %v239
      %v273 = vld [vmem:[%s2] sm:$0x1]
      %v275 = vlaneseq
      %v276 = vshrl.u32 %v275, 7
      %v277 = vsub.s32 0, %v276
      %v278 = vrot.slane %v273, %v277
      %v280 = vadd.f32 %v241, %v278
      %v281 = vadd.f32 %v242, %v278
      %v282 = vadd.f32 %v243, %v278
      %v283 = vadd.f32 %v244, %v278
      %v284 = vadd.f32 %v245, %v278
      %v285 = vadd.f32 %v246, %v278
      %v286 = vadd.f32 %v247, %v278
      %v287 = vadd.f32 %v248, %v278
      %v288 = vadd.f32 %v249, %v278
      %v289 = vadd.f32 %v250, %v278
      %v290 = vadd.f32 %v251, %v278
      %v291 = vadd.f32 %v252, %v278
      %v292 = vadd.f32 %v253, %v278
      %v293 = vadd.f32 %v254, %v278
      %v294 = vadd.f32 %v255, %v278
      %v295 = vadd.f32 %v256, %v278
      %v296 = vadd.f32 %v257, %v278
      %v297 = vadd.f32 %v258, %v278
      %v298 = vadd.f32 %v259, %v278
      %v299 = vadd.f32 %v260, %v278
      %v300 = vadd.f32 %v261, %v278
      %v301 = vadd.f32 %v262, %v278
      %v302 = vadd.f32 %v263, %v278
      %v303 = vadd.f32 %v264, %v278
      %v304 = vadd.f32 %v265, %v278
      %v305 = vadd.f32 %v266, %v278
      %v306 = vadd.f32 %v267, %v278
      %v307 = vadd.f32 %v268, %v278
      %v308 = vadd.f32 %v269, %v278
      %v309 = vadd.f32 %v270, %v278
      %v310 = vadd.f32 %v271, %v278
      %v311 = vadd.f32 %v272, %v278
      %v312 = vmax.f32 %v280, 0.0
      %v313 = vmax.f32 %v281, 0.0
      %v314 = vmax.f32 %v282, 0.0
      %v315 = vmax.f32 %v283, 0.0
      %v316 = vmax.f32 %v284, 0.0
      %v317 = vmax.f32 %v285, 0.0
      %v318 = vmax.f32 %v286, 0.0
      %v319 = vmax.f32 %v287, 0.0
      %v320 = vmax.f32 %v288, 0.0
      %v321 = vmax.f32 %v289, 0.0
      %v322 = vmax.f32 %v290, 0.0
      %v323 = vmax.f32 %v291, 0.0
      %v324 = vmax.f32 %v292, 0.0
      %v325 = vmax.f32 %v293, 0.0
      %v326 = vmax.f32 %v294, 0.0
      %v327 = vmax.f32 %v295, 0.0
      %v328 = vmax.f32 %v296, 0.0
      %v329 = vmax.f32 %v297, 0.0
      %v330 = vmax.f32 %v298, 0.0
      %v331 = vmax.f32 %v299, 0.0
      %v332 = vmax.f32 %v300, 0.0
      %v333 = vmax.f32 %v301, 0.0
      %v334 = vmax.f32 %v302, 0.0
      %v335 = vmax.f32 %v303, 0.0
      %v336 = vmax.f32 %v304, 0.0
      %v337 = vmax.f32 %v305, 0.0
      %v338 = vmax.f32 %v306, 0.0
      %v339 = vmax.f32 %v307, 0.0
      %v340 = vmax.f32 %v308, 0.0
      %v341 = vmax.f32 %v309, 0.0
      %v342 = vmax.f32 %v310, 0.0
      %v343 = vmax.f32 %v311, 0.0
      %v344 = vpack.c.bf16 %v313, %v312
      %v345 = vpack.c.bf16 %v315, %v314
      %v346 = vpack.c.bf16 %v317, %v316
      %v347 = vpack.c.bf16 %v319, %v318
      %v348 = vpack.c.bf16 %v321, %v320
      %v349 = vpack.c.bf16 %v323, %v322
      %v350 = vpack.c.bf16 %v325, %v324
      %v351 = vpack.c.bf16 %v327, %v326
      %v352 = vpack.c.bf16 %v329, %v328
      %v353 = vpack.c.bf16 %v331, %v330
      %v354 = vpack.c.bf16 %v333, %v332
      %v355 = vpack.c.bf16 %v335, %v334
      %v356 = vpack.c.bf16 %v337, %v336
      %v357 = vpack.c.bf16 %v339, %v338
      %v358 = vpack.c.bf16 %v341, %v340
      %v359 = vpack.c.bf16 %v343, %v342
      %v360 = vld [vmem:[%s3] sm:$0xf]
      %v361 = vld [vmem:[%s3 + $0x4] sm:$0xf]
      %v362 = vld [vmem:[%s3 + $0x8] sm:$0xf]
      %v363 = vld [vmem:[%s3 + $0xc] sm:$0xf]
      %v368 = vunpack.c.l.b16 %v360
      %v369 = vunpack.c.l.b16 %v361
      %v370 = vunpack.c.l.b16 %v362
      %v371 = vunpack.c.l.b16 %v363
      %v372 = vpack.c.b16 %v369, %v368
      %v373 = vpack.c.b16 %v371, %v370
      %vm376 = vcmask 261120
      %v378 = vsel %vm376, %v344, 0
      %v381 = vsel %vm376, %v345, 0
      %v384 = vsel %vm376, %v346, 0
      %v387 = vsel %vm376, %v347, 0
      %v390 = vsel %vm376, %v348, 0
      %v393 = vsel %vm376, %v349, 0
      %v396 = vsel %vm376, %v350, 0
      %v399 = vsel %vm376, %v351, 0
      %v402 = vsel %vm376, %v352, 0
      %v405 = vsel %vm376, %v353, 0
      %v408 = vsel %vm376, %v354, 0
      %v411 = vsel %vm376, %v355, 0
      %v414 = vsel %vm376, %v356, 0
      %v417 = vsel %vm376, %v357, 0
      %v420 = vsel %vm376, %v358, 0
      %v423 = vsel %vm376, %v359, 0
      %425 = vmatprep.subr.bf16.mxu0 0
      %426 = vmatpush1.bf16.msra.mxu0 %v372
      %427 = vmatprep.subr.bf16.mxu0 0
      %428 = vmatpush1.bf16.msra.mxu0 %v373
      %429 = vmatprep.subr.bf16.mxu0 0
      %430 = vmatpush1.bf16.msra.mxu0 0
      %431 = vmatprep.subr.bf16.mxu0 0
      %432 = vmatpush1.bf16.msra.mxu0 0
      %433 = vmatprep.subr.bf16.mxu0 0
      %434 = vmatpush1.bf16.msra.mxu0 0
      %435 = vmatprep.subr.bf16.mxu0 0
      %436 = vmatpush1.bf16.msra.mxu0 0
      %437 = vmatprep.subr.bf16.mxu0 0
      %438 = vmatpush1.bf16.msra.mxu0 0
      %439 = vmatprep.subr.bf16.mxu0 0
      %440 = vmatpush1.bf16.msra.mxu0 0
      %441 = vmatprep.subr.bf16.mxu0 0
      %442 = vmatpush1.bf16.msra.mxu0 0
      %443 = vmatprep.subr.bf16.mxu0 0
      %444 = vmatpush1.bf16.msra.mxu0 0
      %445 = vmatprep.subr.bf16.mxu0 0
      %446 = vmatpush1.bf16.msra.mxu0 0
      %447 = vmatprep.subr.bf16.mxu0 0
      %448 = vmatpush1.bf16.msra.mxu0 0
      %449 = vmatprep.subr.bf16.mxu0 0
      %450 = vmatpush1.bf16.msra.mxu0 0
      %451 = vmatprep.subr.bf16.mxu0 0
      %452 = vmatpush1.bf16.msra.mxu0 0
      %453 = vmatprep.subr.bf16.mxu0 0
      %454 = vmatpush1.bf16.msra.mxu0 0
      %455 = vmatprep.subr.bf16.mxu0 0
      %456 = vmatpush1.bf16.msra.mxu0 0
      %457 = vmatprep.mubr.bf16.mxu0 0
      %458 = vmatmul.mubr.bf16.gmra.mrb[0].mxu0 %v378
      %v459 = vpop.f32.mrb[0].mxu0
      %v460 = vadd.f32 0.0, %v459
      %v461 = vpop.f32.mrb[0].mxu0
      %v462 = vpop.f32.mrb[0].mxu0
      %v463 = vadd.f32 0.0, %v462
      %v464 = vpop.f32.mrb[0].mxu0
      %465 = vmatprep.mubr.bf16.mxu0 0
      %466 = vmatmul.mubr.bf16.gmra.mrb[0].mxu0 %v381
      %v467 = vpop.f32.mrb[0].mxu0
      %v468 = vadd.f32 0.0, %v467
      %v469 = vpop.f32.mrb[0].mxu0
      %v470 = vpop.f32.mrb[0].mxu0
      %v471 = vadd.f32 0.0, %v470
      %v472 = vpop.f32.mrb[0].mxu0
      %473 = vmatprep.mubr.bf16.mxu0 0
      %474 = vmatmul.mubr.bf16.gmra.mrb[0].mxu0 %v384
      %v475 = vpop.f32.mrb[0].mxu0
      %v476 = vadd.f32 0.0, %v475
      %v477 = vpop.f32.mrb[0].mxu0
      %v478 = vpop.f32.mrb[0].mxu0
      %v479 = vadd.f32 0.0, %v478
      %v480 = vpop.f32.mrb[0].mxu0
      %481 = vmatprep.mubr.bf16.mxu0 0
      %482 = vmatmul.mubr.bf16.gmra.mrb[0].mxu0 %v387
      %v483 = vpop.f32.mrb[0].mxu0
      %v484 = vadd.f32 0.0, %v483
      %v485 = vpop.f32.mrb[0].mxu0
      %v486 = vpop.f32.mrb[0].mxu0
      %v487 = vadd.f32 0.0, %v486
      %v488 = vpop.f32.mrb[0].mxu0
      %489 = vmatprep.mubr.bf16.mxu0 0
      %490 = vmatmul.mubr.bf16.gmra.mrb[0].mxu0 %v390
      %v491 = vpop.f32.mrb[0].mxu0
      %v492 = vadd.f32 0.0, %v491
      %v493 = vpop.f32.mrb[0].mxu0
      %v494 = vpop.f32.mrb[0].mxu0
      %v495 = vadd.f32 0.0, %v494
      %v496 = vpop.f32.mrb[0].mxu0
      %497 = vmatprep.mubr.bf16.mxu0 0
      %498 = vmatmul.mubr.bf16.gmra.mrb[0].mxu0 %v393
      %v499 = vpop.f32.mrb[0].mxu0
      %v500 = vadd.f32 0.0, %v499
      %v501 = vpop.f32.mrb[0].mxu0
      %v502 = vpop.f32.mrb[0].mxu0
      %v503 = vadd.f32 0.0, %v502
      %v504 = vpop.f32.mrb[0].mxu0
      %505 = vmatprep.mubr.bf16.mxu0 0
      %506 = vmatmul.mubr.bf16.gmra.mrb[0].mxu0 %v396
      %v507 = vpop.f32.mrb[0].mxu0
      %v508 = vadd.f32 0.0, %v507
      %v509 = vpop.f32.mrb[0].mxu0
      %v510 = vpop.f32.mrb[0].mxu0
      %v511 = vadd.f32 0.0, %v510
      %v512 = vpop.f32.mrb[0].mxu0
      %513 = vmatprep.mubr.bf16.mxu0 0
      %514 = vmatmul.mubr.bf16.gmra.mrb[0].mxu0 %v399
      %v515 = vpop.f32.mrb[0].mxu0
      %v516 = vadd.f32 0.0, %v515
      %v517 = vpop.f32.mrb[0].mxu0
      %v518 = vpop.f32.mrb[0].mxu0
      %v519 = vadd.f32 0.0, %v518
      %v520 = vpop.f32.mrb[0].mxu0
      %521 = vmatprep.mubr.bf16.mxu0 0
      %522 = vmatmul.mubr.bf16.gmra.mrb[0].mxu0 %v402
      %v523 = vpop.f32.mrb[0].mxu0
      %v524 = vadd.f32 0.0, %v523
      %v525 = vpop.f32.mrb[0].mxu0
      %v526 = vpop.f32.mrb[0].mxu0
      %v527 = vadd.f32 0.0, %v526
      %v528 = vpop.f32.mrb[0].mxu0
      %529 = vmatprep.mubr.bf16.mxu0 0
      %530 = vmatmul.mubr.bf16.gmra.mrb[0].mxu0 %v405
      %v531 = vpop.f32.mrb[0].mxu0
      %v532 = vadd.f32 0.0, %v531
      %v533 = vpop.f32.mrb[0].mxu0
      %v534 = vpop.f32.mrb[0].mxu0
      %v535 = vadd.f32 0.0, %v534
      %v536 = vpop.f32.mrb[0].mxu0
      %537 = vmatprep.mubr.bf16.mxu0 0
      %538 = vmatmul.mubr.bf16.gmra.mrb[0].mxu0 %v408
      %v539 = vpop.f32.mrb[0].mxu0
      %v540 = vadd.f32 0.0, %v539
      %v541 = vpop.f32.mrb[0].mxu0
      %v542 = vpop.f32.mrb[0].mxu0
      %v543 = vadd.f32 0.0, %v542
      %v544 = vpop.f32.mrb[0].mxu0
      %545 = vmatprep.mubr.bf16.mxu0 0
      %546 = vmatmul.mubr.bf16.gmra.mrb[0].mxu0 %v411
      %v547 = vpop.f32.mrb[0].mxu0
      %v548 = vadd.f32 0.0, %v547
      %v549 = vpop.f32.mrb[0].mxu0
      %v550 = vpop.f32.mrb[0].mxu0
      %v551 = vadd.f32 0.0, %v550
      %v552 = vpop.f32.mrb[0].mxu0
      %553 = vmatprep.mubr.bf16.mxu0 0
      %554 = vmatmul.mubr.bf16.gmra.mrb[0].mxu0 %v414
      %v555 = vpop.f32.mrb[0].mxu0
      %v556 = vadd.f32 0.0, %v555
      %v557 = vpop.f32.mrb[0].mxu0
      %v558 = vpop.f32.mrb[0].mxu0
      %v559 = vadd.f32 0.0, %v558
      %v560 = vpop.f32.mrb[0].mxu0
      %561 = vmatprep.mubr.bf16.mxu0 0
      %562 = vmatmul.mubr.bf16.gmra.mrb[0].mxu0 %v417
      %v563 = vpop.f32.mrb[0].mxu0
      %v564 = vadd.f32 0.0, %v563
      %v565 = vpop.f32.mrb[0].mxu0
      %v566 = vpop.f32.mrb[0].mxu0
      %v567 = vadd.f32 0.0, %v566
      %v568 = vpop.f32.mrb[0].mxu0
      %569 = vmatprep.mubr.bf16.mxu0 0
      %570 = vmatmul.mubr.bf16.gmra.mrb[0].mxu0 %v420
      %v571 = vpop.f32.mrb[0].mxu0
      %v572 = vadd.f32 0.0, %v571
      %v573 = vpop.f32.mrb[0].mxu0
      %v574 = vpop.f32.mrb[0].mxu0
      %v575 = vadd.f32 0.0, %v574
      %v576 = vpop.f32.mrb[0].mxu0
      %577 = vmatprep.mubr.bf16.mxu0 0
      %578 = vmatmul.mubr.bf16.gmra.mrb[0].mxu0 %v423
      %v579 = vpop.f32.mrb[0].mxu0
      %v580 = vadd.f32 0.0, %v579
      %v581 = vpop.f32.mrb[0].mxu0
      %v582 = vpop.f32.mrb[0].mxu0
      %v583 = vadd.f32 0.0, %v582
      %v584 = vpop.f32.mrb[0].mxu0
      %585 = vdwg.mxu0
      %586 = vst [vmem:[%s199] sm:$0xff] %v460
      %587 = vst [vmem:[%s199 + $0x8] sm:$0xff] %v463
      %588 = vst [vmem:[%s199 + $0x10] sm:$0xff] %v468
      %589 = vst [vmem:[%s199 + $0x18] sm:$0xff] %v471
      %590 = vst [vmem:[%s199 + $0x20] sm:$0xff] %v476
      %591 = vst [vmem:[%s199 + $0x28] sm:$0xff] %v479
      %592 = vst [vmem:[%s199 + $0x30] sm:$0xff] %v484
      %593 = vst [vmem:[%s199 + $0x38] sm:$0xff] %v487
      %594 = vst [vmem:[%s199 + $0x40] sm:$0xff] %v492
      %595 = vst [vmem:[%s199 + $0x48] sm:$0xff] %v495
      %596 = vst [vmem:[%s199 + $0x50] sm:$0xff] %v500
      %597 = vst [vmem:[%s199 + $0x58] sm:$0xff] %v503
      %598 = vst [vmem:[%s199 + $0x60] sm:$0xff] %v508
      %599 = vst [vmem:[%s199 + $0x68] sm:$0xff] %v511
      %600 = vst [vmem:[%s199 + $0x70] sm:$0xff] %v516
      %601 = vst [vmem:[%s199 + $0x78] sm:$0xff] %v519
      %602 = vst [vmem:[%s199 + $0x80] sm:$0xff] %v524
      %603 = vst [vmem:[%s199 + $0x88] sm:$0xff] %v527
      %604 = vst [vmem:[%s199 + $0x90] sm:$0xff] %v532
      %605 = vst [vmem:[%s199 + $0x98] sm:$0xff] %v535
      %606 = vst [vmem:[%s199 + $0xa0] sm:$0xff] %v540
      %607 = vst [vmem:[%s199 + $0xa8] sm:$0xff] %v543
      %608 = vst [vmem:[%s199 + $0xb0] sm:$0xff] %v548
      %609 = vst [vmem:[%s199 + $0xb8] sm:$0xff] %v551
      %610 = vst [vmem:[%s199 + $0xc0] sm:$0xff] %v556
      %611 = vst [vmem:[%s199 + $0xc8] sm:$0xff] %v559
      %612 = vst [vmem:[%s199 + $0xd0] sm:$0xff] %v564
      %613 = vst [vmem:[%s199 + $0xd8] sm:$0xff] %v567
      %614 = vst [vmem:[%s199 + $0xe0] sm:$0xff] %v572
      %615 = vst [vmem:[%s199 + $0xe8] sm:$0xff] %v575
      %616 = vst [vmem:[%s199 + $0xf0] sm:$0xff] %v580
      %617 = vst [vmem:[%s199 + $0xf8] sm:$0xff] %v583
      %s618 = smul.u32 32, %s15
      %p619 = scmp.lt.s32.totalorder %s618, 127
      %s620 = scalar_select %p619, %s618, 127
      %s621 = smul.addr %s620, 8
      %s622 = scalar_lea.vmem %s4, %s621
      // Predicated region
      $region37: #{dense_block_forward.7} parent=35 // pred_check
        %p623 = pneg %p122
      $region38: #{dense_block_forward.7} parent=35 // pred_check_branch
        %625 = sbr.rel (%p623) target = $region40
      $region39: #{dense_block_forward.7} parent=35 // pred_region
        %s626 = smul.u32 32, %s15
      $region40: #{dense_block_forward.7} parent=35 // pred_fallthru
        _
    $region36: #{dense_block_forward.7} parent=5 // pred_fallthru
      _
    %p627 = scmp.le.s32.totalorder 2, %s10
    // Predicated region
    $region41: #{dense_block_forward.7} parent=5 // pred_check
      %p628 = pneg %p627
    $region42: #{dense_block_forward.7} parent=5 // pred_check_branch
      %630 = sbr.rel (%p628) target = $region44
    $region43: #{dense_block_forward.7} parent=5 // pred_region
      %s631 = ssub.s32 %s10, 2
      // Predicated region
      $region45: #{dense_block_forward.7} parent=43 // pred_check
        %p632 = pneg %p128
      $region46: #{dense_block_forward.7} parent=43 // pred_check_branch
        %634 = sbr.rel (%p632) target = $region48
      $region47: #{dense_block_forward.7} parent=43 // pred_region
        %s635 = smul.u32 32, %s16
        %p636 = scmp.lt.s32.totalorder %s635, 127
        %s637 = scalar_select %p636, %s635, 127
        %s638 = smul.addr %s637, 8
        %s639 = scalar_lea.vmem %s4, %s638
      $region48: #{dense_block_forward.7} parent=43 // pred_fallthru
        _
    $region44: #{dense_block_forward.7} parent=5 // pred_fallthru
      _
  $region6: #{dense_block_forward.7} parent=0 // loop_footer
    %s14 = sadd.s32 1, %s10
  $region7: #{dense_block_forward.7} parent=0 // loop_footer_branch
    %9 = sbr.rel target = $region3
  $region8: #{dense_block_forward.7} parent=0 // loop_exit
    _

// kernel: dense_block_forward.8
$region0: #{dense_block_forward.8}
  #allocation0 [shape = 'u32[]', space=smem, size = 0x4, offset = 0x4, fixed_abs, tag = 'smem constant byte address 0x4 - core index']
  #allocation1 [shape = 'u32[144,128]{1,0:T(1,128)}', space=vmem, size = 0x12000, scoped, tag = 'internal scratch']
  %s0 = inlined_call_operand.vmem [shape: bf16[4,378,32], index: 0, kind: input, shape index: {}]
  %s1 = inlined_call_operand.vmem [shape: bf16[9,32,128], index: 1, kind: input, shape index: {}]
  %s2 = inlined_call_operand.vmem [shape: f32[4,324,128], index: 2, kind: output, shape index: {}]
  %s3 = sld [smem:[#allocation0]]
  $region41: #{dense_block_forward.8} parent=0
    _
  %s5 = ssub.s32 1, %s3
  %s6 = scalar_select 0, %s5, %s3
  loop: start=0, step=1, limit=6
  $region2: #{dense_block_forward.8} parent=0 // loop_pre_header
    _
  $region3: #{dense_block_forward.8} parent=0 // loop_header
    %s8 = sphi 0, %s12
    %p9 = scmp.ge.s32.totalorder %s8, 6
    %s18 = sphi 0, %s20
    %s21 = sphi 0, %s18
    %s22 = sphi 0, %s21
    %s38 = sphi 0, %s22
    %s42 = sphi 0, %s42
    %s44 = sphi 0, %s42
    %s45 = sphi 0, %s44
    %s59 = sphi 0, %s45
    %s65 = sphi 0, %s67
    %s68 = sphi 0, %s65
    %s69 = sphi 0, %s68
    %s85 = sphi 0, %s69
  $region4: #{dense_block_forward.8} parent=0 // loop_header_branch
    %11 = sbr.rel (%p9) target = $region8
  $region5: #{dense_block_forward.8} parent=0 // loop_body
    %s13 = ssub.s32 %s8, 1
    %s14 = ssub.s32 %s8, 2
    %s15 = sadd.s32 %s8, 1
    %s16 = ssub.s32 %s8, %s15
    %p17 = scmp.eq.s32.totalorder %s16, 0
    %s19 = sadd.s32 %s18, 1
    %s20 = scalar_select %p17, %s18, %s19
    %p23 = pneg %p17
    %p24 = scmp.eq.s32.totalorder %s8, 3
    %p25 = por %p23, %p24
    %p26 = scmp.ne.s32.totalorder %s18, %s21
    %p27 = scmp.eq.s32.totalorder %s8, 0
    %p28 = por %p26, %p27
    %p29 = scmp.ne.s32.totalorder %s18, %s21
    %p30 = scmp.eq.s32.totalorder %s13, 3
    %p31 = por %p29, %p30
    %p32 = scmp.ne.s32.totalorder %s21, %s22
    %p33 = scmp.eq.s32.totalorder %s13, 0
    %p34 = por %p32, %p33
    %p35 = scmp.ne.s32.totalorder %s21, %s22
    %p36 = scmp.eq.s32.totalorder %s14, 3
    %p37 = por %p35, %p36
    %p39 = scmp.ne.s32.totalorder %s22, %s38
    %p40 = scmp.eq.s32.totalorder %s14, 0
    %p41 = por %p39, %p40
    %s43 = sadd.s32 %s42, 1
    %p46 = scmp.eq.s32.totalorder %s8, 3
    %p47 = scmp.ne.s32.totalorder %s42, %s44
    %p48 = scmp.eq.s32.totalorder %s8, 0
    %p49 = por %p47, %p48
    %p50 = scmp.ne.s32.totalorder %s42, %s44
    %p51 = scmp.eq.s32.totalorder %s13, 3
    %p52 = por %p50, %p51
    %p53 = scmp.ne.s32.totalorder %s44, %s45
    %p54 = scmp.eq.s32.totalorder %s13, 0
    %p55 = por %p53, %p54
    %p56 = scmp.ne.s32.totalorder %s44, %s45
    %p57 = scmp.eq.s32.totalorder %s14, 3
    %p58 = por %p56, %p57
    %p60 = scmp.ne.s32.totalorder %s45, %s59
    %p61 = scmp.eq.s32.totalorder %s14, 0
    %p62 = por %p60, %p61
    %s63 = ssub.s32 %s8, %s15
    %p64 = scmp.eq.s32.totalorder %s63, 0
    %s66 = sadd.s32 %s65, 1
    %s67 = scalar_select %p64, %s65, %s66
    %p70 = pneg %p64
    %p71 = scmp.eq.s32.totalorder %s8, 3
    %p72 = por %p70, %p71
    %p73 = scmp.ne.s32.totalorder %s65, %s68
    %p74 = scmp.eq.s32.totalorder %s8, 0
    %p75 = por %p73, %p74
    %p76 = scmp.ne.s32.totalorder %s65, %s68
    %p77 = scmp.eq.s32.totalorder %s13, 3
    %p78 = por %p76, %p77
    %p79 = scmp.ne.s32.totalorder %s68, %s69
    %p80 = scmp.eq.s32.totalorder %s13, 0
    %p81 = por %p79, %p80
    %p82 = scmp.ne.s32.totalorder %s68, %s69
    %p83 = scmp.eq.s32.totalorder %s14, 3
    %p84 = por %p82, %p83
    %p86 = scmp.ne.s32.totalorder %s69, %s85
    %p87 = scmp.eq.s32.totalorder %s14, 0
    %p88 = por %p86, %p87
    %p89 = scmp.le.s32.totalorder 1, %s8
    %p90 = scmp.lt.s32.totalorder %s8, 5
    %p91 = pnand %p89, %p90
    %p92 = pneg %p91
    // Predicated region
    $region9: #{dense_block_forward.8} parent=5 // pred_check
      _
    $region10: #{dense_block_forward.8} parent=5 // pred_check_branch
      %94 = sbr.rel (%p91) target = $region12
    $region11: #{dense_block_forward.8} parent=5 // pred_region
      %s95 = ssub.s32 %s8, 1
      // Predicated region
      $region13: #{dense_block_forward.8} parent=11 // pred_check
        %p96 = pneg %p55
      $region14: #{dense_block_forward.8} parent=11 // pred_check_branch
        %98 = sbr.rel (%p96) target = $region16
      $region15: #{dense_block_forward.8} parent=11 // pred_region
        _
      $region16: #{dense_block_forward.8} parent=11 // pred_fallthru
        _
    $region12: #{dense_block_forward.8} parent=5 // pred_fallthru
      _
    %p99 = scmp.lt.s32.totalorder %s8, 4
    // Predicated region
    $region17: #{dense_block_forward.8} parent=5 // pred_check
      %p100 = pneg %p99
    $region18: #{dense_block_forward.8} parent=5 // pred_check_branch
      %102 = sbr.rel (%p100) target = $region20
    $region19: #{dense_block_forward.8} parent=5 // pred_region
      // Predicated region
      $region21: #{dense_block_forward.8} parent=19 // pred_check
        %p103 = pneg %p28
      $region22: #{dense_block_forward.8} parent=19 // pred_check_branch
        %105 = sbr.rel (%p103) target = $region24
      $region23: #{dense_block_forward.8} parent=19 // pred_region
        %p106 = scmp.lt.s32.totalorder %s8, 3
        %s107 = scalar_select %p106, %s8, 3
        %s108 = smul.addr %s107, 48
        %s109 = smul.addr %s108, 4
        %s110 = scalar_lea.vmem %s0, %s109
      $region24: #{dense_block_forward.8} parent=19 // pred_fallthru
        _
    $region20: #{dense_block_forward.8} parent=5 // pred_fallthru
      _
    %p111 = scmp.le.s32.totalorder 1, %s8
    %p112 = scmp.lt.s32.totalorder %s8, 5
    %p113 = pnand %p111, %p112
    %p114 = pneg %p113
    // Predicated region
    $region25: #{dense_block_forward.8} parent=5 // pred_check
      _
    $region26: #{dense_block_forward.8} parent=5 // pred_check_branch
      %116 = sbr.rel (%p113) target = $region28
    $region27: #{dense_block_forward.8} parent=5 // pred_region
      %s117 = ssub.s32 %s8, 1
      %p118 = scmp.lt.s32.totalorder %s13, 3
      %s119 = scalar_select %p118, %s13, 3
      %s120 = smul.addr %s119, 48
      %s121 = smul.addr %s120, 4
      %s122 = scalar_lea.vmem %s0, %s121
      %p123 = pneg %p34
      %p124 = pneg %p31
      %p125 = pneg %p55
      %p126 = pneg %p52
      %p127 = pneg %p81
      %p128 = pneg %p78
      %p129 = scmp.lt.s32.totalorder %s13, 3
      %s130 = scalar_select %p129, %s13, 3
      %s131 = smul.addr %s130, 41
      %s132 = smul.addr %s131, 8
      %s133 = scalar_lea.vmem %s2, %s132
      %p134 = scmp.lt.s32.totalorder %s13, 3
      %s135 = scalar_select %p134, %s13, 3
      %s136 = smul.addr %s135, 48
      %s137 = smul.addr %s136, 4
      %s138 = scalar_lea.vmem %s0, %s137
      %p139 = scmp.lt.s32.totalorder %s13, 3
      %s140 = scalar_select %p139, %s13, 3
      %s141 = smul.addr %s140, 41
      %s142 = smul.addr %s141, 8
      %s143 = scalar_lea.vmem %s2, %s142
      %v145 = vld [vmem:[%s138] sm:$0xf]
      %v146 = vld [vmem:[%s138 + $0x4] sm:$0xf]
      %v147 = vld [vmem:[%s138 + $0x8] sm:$0xf]
      %v148 = vld [vmem:[%s138 + $0xc] sm:$0xf]
      %v149 = vld [vmem:[%s138 + $0x10] sm:$0xf]
      %v150 = vld [vmem:[%s138 + $0x14] sm:$0xf]
      %v151 = vld [vmem:[%s138 + $0x18] sm:$0xf]
      %v152 = vld [vmem:[%s138 + $0x1c] sm:$0xf]
      %v153 = vld [vmem:[%s138 + $0x20] sm:$0xf]
      %v154 = vld [vmem:[%s138 + $0x24] sm:$0xf]
      %v155 = vld [vmem:[%s138 + $0x28] sm:$0xf]
      %v156 = vld [vmem:[%s138 + $0x2c] sm:$0xf]
      %v157 = vld [vmem:[%s138 + $0x30] sm:$0xf]
      %v158 = vld [vmem:[%s138 + $0x34] sm:$0xf]
      %v159 = vld [vmem:[%s138 + $0x38] sm:$0xf]
      %v160 = vld [vmem:[%s138 + $0x3c] sm:$0xf]
      %v161 = vld [vmem:[%s138 + $0x40] sm:$0xf]
      %v162 = vld [vmem:[%s138 + $0x44] sm:$0xf]
      %v163 = vld [vmem:[%s138 + $0x48] sm:$0xf]
      %v164 = vld [vmem:[%s138 + $0x4c] sm:$0xf]
      %v165 = vld [vmem:[%s138 + $0x50] sm:$0xf]
      %v166 = vld [vmem:[%s138 + $0x54] sm:$0xf]
      %v167 = vld [vmem:[%s138 + $0x58] sm:$0xf]
      %v168 = vld [vmem:[%s138 + $0x5c] sm:$0xf]
      %v169 = vld [vmem:[%s138 + $0x60] sm:$0xf]
      %v170 = vld [vmem:[%s138 + $0x64] sm:$0xf]
      %v171 = vld [vmem:[%s138 + $0x68] sm:$0xf]
      %v172 = vld [vmem:[%s138 + $0x6c] sm:$0xf]
      %v173 = vld [vmem:[%s138 + $0x70] sm:$0xf]
      %v174 = vld [vmem:[%s138 + $0x74] sm:$0xf]
      %v175 = vld [vmem:[%s138 + $0x78] sm:$0xf]
      %v176 = vld [vmem:[%s138 + $0x7c] sm:$0xf]
      %v177 = vld [vmem:[%s138 + $0x80] sm:$0xf]
      %v178 = vld [vmem:[%s138 + $0x84] sm:$0xf]
      %v179 = vld [vmem:[%s138 + $0x88] sm:$0xf]
      %v180 = vld [vmem:[%s138 + $0x8c] sm:$0xf]
      %v181 = vld [vmem:[%s138 + $0x90] sm:$0xf]
      %v182 = vld [vmem:[%s138 + $0x94] sm:$0xf]
      %v183 = vld [vmem:[%s138 + $0x98] sm:$0xf]
      %v184 = vld [vmem:[%s138 + $0x9c] sm:$0xf]
      %v185 = vld [vmem:[%s138 + $0xa0] sm:$0x3]
      %v186 = vld [vmem:[%s1] sm:$0xf]
      %v187 = vld [vmem:[%s1 + $0x4] sm:$0xf]
      %v188 = vld [vmem:[%s1 + $0x8] sm:$0xf]
      %v189 = vld [vmem:[%s1 + $0xc] sm:$0xf]
      %v190 = vld [vmem:[%s138 + $0xa0] sm:$0x7]
      %s191 = scalar_lea.vmem %s1, 16
      %v192 = vld [vmem:[%s191] sm:$0xf]
      %v193 = vld [vmem:[%s191 + $0x4] sm:$0xf]
      %v194 = vld [vmem:[%s191 + $0x8] sm:$0xf]
      %v195 = vld [vmem:[%s191 + $0xc] sm:$0xf]
      %v237 = vunpack.c.l.b16 %v145
      %v238 = vunpack.c.l.b16 %v146
      %v239 = vunpack.c.l.b16 %v147
      %v240 = vunpack.c.l.b16 %v148
      %v241 = vunpack.c.l.b16 %v149
      %v242 = vunpack.c.l.b16 %v150
      %v243 = vunpack.c.l.b16 %v151
      %v244 = vunpack.c.l.b16 %v152
      %v245 = vunpack.c.l.b16 %v153
      %v246 = vunpack.c.l.b16 %v154
      %v247 = vunpack.c.l.b16 %v155
      %v248 = vunpack.c.l.b16 %v156
      %v249 = vunpack.c.l.b16 %v157
      %v250 = vunpack.c.l.b16 %v158
      %v251 = vunpack.c.l.b16 %v159
      %v252 = vunpack.c.l.b16 %v160
      %v253 = vunpack.c.l.b16 %v161
      %v254 = vunpack.c.l.b16 %v162
      %v255 = vunpack.c.l.b16 %v163
      %v256 = vunpack.c.l.b16 %v164
      %v257 = vunpack.c.l.b16 %v165
      %v258 = vunpack.c.l.b16 %v166
      %v259 = vunpack.c.l.b16 %v167
      %v260 = vunpack.c.l.b16 %v168
      %v261 = vunpack.c.l.b16 %v169
      %v262 = vunpack.c.l.b16 %v170
      %v263 = vunpack.c.l.b16 %v171
      %v264 = vunpack.c.l.b16 %v172
      %v265 = vunpack.c.l.b16 %v173
      %v266 = vunpack.c.l.b16 %v174
      %v267 = vunpack.c.l.b16 %v175
      %v268 = vunpack.c.l.b16 %v176
      %v269 = vunpack.c.l.b16 %v177
      %v270 = vunpack.c.l.b16 %v178
      %v271 = vunpack.c.l.b16 %v179
      %v272 = vunpack.c.l.b16 %v180
      %v273 = vunpack.c.l.b16 %v181
      %v274 = vunpack.c.l.b16 %v182
      %v275 = vunpack.c.l.b16 %v183
      %v276 = vunpack.c.l.b16 %v184
      %v277 = vunpack.c.l.b16 %v190
      %v278 = vpack.c.b16 %v238, %v237
      %v279 = vpack.c.b16 %v240, %v239
      %v280 = vpack.c.b16 %v242, %v241
      %v281 = vpack.c.b16 %v244, %v243
      %v282 = vpack.c.b16 %v246, %v245
      %v283 = vpack.c.b16 %v248, %v247
      %v284 = vpack.c.b16 %v250, %v249
      %v285 = vpack.c.b16 %v252, %v251
      %v286 = vpack.c.b16 %v254, %v253
      %v287 = vpack.c.b16 %v256, %v255
      %v288 = vpack.c.b16 %v258, %v257
      %v289 = vpack.c.b16 %v260, %v259
      %v290 = vpack.c.b16 %v262, %v261
      %v291 = vpack.c.b16 %v264, %v263
      %v292 = vpack.c.b16 %v266, %v265
      %v293 = vpack.c.b16 %v268, %v267
      %v294 = vpack.c.b16 %v270, %v269
      %v295 = vpack.c.b16 %v272, %v271
      %v296 = vpack.c.b16 %v274, %v273
      %v297 = vpack.c.b16 %v276, %v275
      %v298 = vpack.c.b16 %v277, %v277
      %vm299 = vsmask.f32 7424
      %v301 = vshrl.u32 %v278, 16
      %v303 = vshll.u32 %v278, 16
      %v305 = vrot.slane %v303, 1
      %v306 = vor.u32 %v301, %v305
      %v308 = vshll.u32 %v279, 16
      %v310 = vrot.slane %v308, 1
      %v311 = vsel %vm299, %v306, %v310
      %v312 = vshrl.u32 %v279, 16
      %v314 = vor.u32 %v312, %v310
      %v316 = vshll.u32 %v280, 16
      %v318 = vrot.slane %v316, 1
      %v319 = vsel %vm299, %v314, %v318
      %v320 = vshrl.u32 %v280, 16
      %v322 = vor.u32 %v320, %v318
      %v324 = vshll.u32 %v281, 16
      %v326 = vrot.slane %v324, 1
      %v327 = vsel %vm299, %v322, %v326
      %v328 = vshrl.u32 %v281, 16
      %v330 = vor.u32 %v328, %v326
      %v332 = vshll.u32 %v282, 16
      %v334 = vrot.slane %v332, 1
      %v335 = vsel %vm299, %v330, %v334
      %v336 = vshrl.u32 %v282, 16
      %v338 = vor.u32 %v336, %v334
      %v340 = vshll.u32 %v283, 16
      %v342 = vrot.slane %v340, 1
      %v343 = vsel %vm299, %v338, %v342
      %v344 = vshrl.u32 %v283, 16
      %v346 = vor.u32 %v344, %v342
      %v348 = vshll.u32 %v284, 16
      %v350 = vrot.slane %v348, 1
      %v351 = vsel %vm299, %v346, %v350
      %v352 = vshrl.u32 %v284, 16
      %v354 = vor.u32 %v352, %v350
      %v356 = vshll.u32 %v285, 16
      %v358 = vrot.slane %v356, 1
      %v359 = vsel %vm299, %v354, %v358
      %v360 = vshrl.u32 %v285, 16
      %v362 = vor.u32 %v360, %v358
      %v364 = vshll.u32 %v286, 16
      %v366 = vrot.slane %v364, 1
      %v367 = vsel %vm299, %v362, %v366
      %v368 = vshrl.u32 %v286, 16
      %v370 = vor.u32 %v368, %v366
      %v372 = vshll.u32 %v287, 16
      %v374 = vrot.slane %v372, 1
      %v375 = vsel %vm299, %v370, %v374
      %v376 = vshrl.u32 %v287, 16
      %v378 = vor.u32 %v376, %v374
      %v380 = vshll.u32 %v288, 16
      %v382 = vrot.slane %v380, 1
      %v383 = vsel %vm299, %v378, %v382
      %v384 = vshrl.u32 %v288, 16
      %v386 = vor.u32 %v384, %v382
      %v388 = vshll.u32 %v289, 16
      %v390 = vrot.slane %v388, 1
      %v391 = vsel %vm299, %v386, %v390
      %v392 = vshrl.u32 %v289, 16
      %v394 = vor.u32 %v392, %v390
      %v396 = vshll.u32 %v290, 16
      %v398 = vrot.slane %v396, 1
      %v399 = vsel %vm299, %v394, %v398
      %v400 = vshrl.u32 %v290, 16
      %v402 = vor.u32 %v400, %v398
      %v404 = vshll.u32 %v291, 16
      %v406 = vrot.slane %v404, 1
      %v407 = vsel %vm299, %v402, %v406
      %v408 = vshrl.u32 %v291, 16
      %v410 = vor.u32 %v408, %v406
      %v412 = vshll.u32 %v292, 16
      %v414 = vrot.slane %v412, 1
      %v415 = vsel %vm299, %v410, %v414
      %v416 = vshrl.u32 %v292, 16
      %v418 = vor.u32 %v416, %v414
      %v420 = vshll.u32 %v293, 16
      %v422 = vrot.slane %v420, 1
      %v423 = vsel %vm299, %v418, %v422
      %v424 = vshrl.u32 %v293, 16
      %v426 = vor.u32 %v424, %v422
      %v428 = vshll.u32 %v294, 16
      %v430 = vrot.slane %v428, 1
      %v431 = vsel %vm299, %v426, %v430
      %v432 = vshrl.u32 %v294, 16
      %v434 = vor.u32 %v432, %v430
      %v436 = vshll.u32 %v295, 16
      %v438 = vrot.slane %v436, 1
      %v439 = vsel %vm299, %v434, %v438
      %v440 = vshrl.u32 %v295, 16
      %v442 = vor.u32 %v440, %v438
      %v444 = vshll.u32 %v296, 16
      %v446 = vrot.slane %v444, 1
      %v447 = vsel %vm299, %v442, %v446
      %v448 = vshrl.u32 %v296, 16
      %v450 = vor.u32 %v448, %v446
      %v452 = vshll.u32 %v297, 16
      %v454 = vrot.slane %v452, 1
      %v455 = vsel %vm299, %v450, %v454
      %v456 = vshrl.u32 %v297, 16
      %v458 = vor.u32 %v456, %v454
      %v460 = vshll.u32 %v298, 16
      %v462 = vrot.slane %v460, 1
      %v463 = vsel %vm299, %v458, %v462
      %v464 = vshrl.u32 %v298, 16
      %v466 = vor.u32 %v464, %v462
      %v471 = vunpack.c.l.b16 %v192
      %v472 = vunpack.c.l.b16 %v193
      %v473 = vunpack.c.l.b16 %v194
      %v474 = vunpack.c.l.b16 %v195
      %v475 = vpack.c.b16 %v472, %v471
      %v476 = vpack.c.b16 %v474, %v473
      %vm479 = vcmask 261120
      %v481 = vsel %vm479, %v311, 0
      %v484 = vsel %vm479, %v319, 0
      %v487 = vsel %vm479, %v327, 0
      %v490 = vsel %vm479, %v335, 0
      %v493 = vsel %vm479, %v343, 0
      %v496 = vsel %vm479, %v351, 0
      %v499 = vsel %vm479, %v359, 0
      %v502 = vsel %vm479, %v367, 0
      %v505 = vsel %vm479, %v375, 0
      %v508 = vsel %vm479, %v383, 0
      %v511 = vsel %vm479, %v391, 0
      %v514 = vsel %vm479, %v399, 0
      %v517 = vsel %vm479, %v407, 0
      %v520 = vsel %vm479, %v415, 0
      %v523 = vsel %vm479, %v423, 0
      %v526 = vsel %vm479, %v431, 0
      %v529 = vsel %vm479, %v439, 0
      %v532 = vsel %vm479, %v447, 0
      %v535 = vsel %vm479, %v455, 0
      %v538 = vsel %vm479, %v463, 0
      %v541 = vsel %vm479, %v466, 0
      %543 = vmatprep.subr.bf16.mxu0 0
      %544 = vmatpush1.bf16.msra.mxu0 %v475
      %545 = vmatprep.subr.bf16.mxu0 0
      %546 = vmatpush1.bf16.msra.mxu0 %v476
      %547 = vmatprep.subr.bf16.mxu0 0
      %548 = vmatpush1.bf16.msra.mxu0 0
      %549 = vmatprep.subr.bf16.mxu0 0
      %550 = vmatpush1.bf16.msra.mxu0 0
      %551 = vmatprep.subr.bf16.mxu0 0
      %552 = vmatpush1.bf16.msra.mxu0 0
      %553 = vmatprep.subr.bf16.mxu0 0
      %554 = vmatpush1.bf16.msra.mxu0 0
      %555 = vmatprep.subr.bf16.mxu0 0
      %556 = vmatpush1.bf16.msra.mxu0 0
      %557 = vmatprep.subr.bf16.mxu0 0
      %558 = vmatpush1.bf16.msra.mxu0 0
      %559 = vmatprep.subr.bf16.mxu0 0
      %560 = vmatpush1.bf16.msra.mxu0 0
      %561 = vmatprep.subr.bf16.mxu0 0
      %562 = vmatpush1.bf16.msra.mxu0 0
      %563 = vmatprep.subr.bf16.mxu0 0
      %564 = vmatpush1.bf16.msra.mxu0 0
      %565 = vmatprep.subr.bf16.mxu0 0
      %566 = vmatpush1.bf16.msra.mxu0 0
      %567 = vmatprep.subr.bf16.mxu0 0
      %568 = vmatpush1.bf16.msra.mxu0 0
      %569 = vmatprep.subr.bf16.mxu0 0
      %570 = vmatpush1.bf16.msra.mxu0 0
      %571 = vmatprep.subr.bf16.mxu0 0
      %572 = vmatpush1.bf16.msra.mxu0 0
      %573 = vmatprep.subr.bf16.mxu0 0
      %574 = vmatpush1.bf16.msra.mxu0 0
      %575 = vmatprep.mubr.bf16.mxu0 0
      %576 = vmatmul.mubr.bf16.gmra.mrb[0].mxu0 %v481
      %v577 = vpop.f32.mrb[0].mxu0
      %v578 = vadd.f32 0.0, %v577
      %v579 = vpop.f32.mrb[0].mxu0
      %v580 = vpop.f32.mrb[0].mxu0
      %v581 = vadd.f32 0.0, %v580
      %v582 = vpop.f32.mrb[0].mxu0
      %583 = vmatprep.mubr.bf16.mxu0 0
      %584 = vmatmul.mubr.bf16.gmra.mrb[0].mxu0 %v484
      %v585 = vpop.f32.mrb[0].mxu0
      %v586 = vadd.f32 0.0, %v585
      %v587 = vpop.f32.mrb[0].mxu0
      %v588 = vpop.f32.mrb[0].mxu0
      %v589 = vadd.f32 0.0, %v588
      %v590 = vpop.f32.mrb[0].mxu0
      %591 = vmatprep.mubr.bf16.mxu0 0
      %592 = vmatmul.mubr.bf16.gmra.mrb[0].mxu0 %v487
      %v593 = vpop.f32.mrb[0].mxu0
      %v594 = vadd.f32 0.0, %v593
      %v595 = vpop.f32.mrb[0].mxu0
      %v596 = vpop.f32.mrb[0].mxu0
      %v597 = vadd.f32 0.0, %v596
      %v598 = vpop.f32.mrb[0].mxu0
      %599 = vmatprep.mubr.bf16.mxu0 0
      %600 = vmatmul.mubr.bf16.gmra.mrb[0].mxu0 %v490
      %v601 = vpop.f32.mrb[0].mxu0
      %v602 = vadd.f32 0.0, %v601
      %v603 = vpop.f32.mrb[0].mxu0
      %v604 = vpop.f32.mrb[0].mxu0
      %v605 = vadd.f32 0.0, %v604
      %v606 = vpop.f32.mrb[0].mxu0
      %607 = vmatprep.mubr.bf16.mxu0 0
      %608 = vmatmul.mubr.bf16.gmra.mrb[0].mxu0 %v493
      %v609 = vpop.f32.mrb[0].mxu0
      %v610 = vadd.f32 0.0, %v609
      %v611 = vpop.f32.mrb[0].mxu0
      %v612 = vpop.f32.mrb[0].mxu0
      %v613 = vadd.f32 0.0, %v612
      %v614 = vpop.f32.mrb[0].mxu0
      %615 = vmatprep.mubr.bf16.mxu0 0
      %616 = vmatmul.mubr.bf16.gmra.mrb[0].mxu0 %v496
      %v617 = vpop.f32.mrb[0].mxu0
      %v618 = vadd.f32 0.0, %v617
      %v619 = vpop.f32.mrb[0].mxu0
      %v620 = vpop.f32.mrb[0].mxu0
      %v621 = vadd.f32 0.0, %v620
      %v622 = vpop.f32.mrb[0].mxu0
      %623 = vmatprep.mubr.bf16.mxu0 0
      %624 = vmatmul.mubr.bf16.gmra.mrb[0].mxu0 %v499
      %v625 = vpop.f32.mrb[0].mxu0
      %v626 = vadd.f32 0.0, %v625
      %v627 = vpop.f32.mrb[0].mxu0
      %v628 = vpop.f32.mrb[0].mxu0
      %v629 = vadd.f32 0.0, %v628
      %v630 = vpop.f32.mrb[0].mxu0
      %631 = vmatprep.mubr.bf16.mxu0 0
      %632 = vmatmul.mubr.bf16.gmra.mrb[0].mxu0 %v502
      %v633 = vpop.f32.mrb[0].mxu0
      %v634 = vadd.f32 0.0, %v633
      %v635 = vpop.f32.mrb[0].mxu0
      %v636 = vpop.f32.mrb[0].mxu0
      %v637 = vadd.f32 0.0, %v636
      %v638 = vpop.f32.mrb[0].mxu0
      %639 = vmatprep.mubr.bf16.mxu0 0
      %640 = vmatmul.mubr.bf16.gmra.mrb[0].mxu0 %v505
      %v641 = vpop.f32.mrb[0].mxu0
      %v642 = vadd.f32 0.0, %v641
      %v643 = vpop.f32.mrb[0].mxu0
      %v644 = vpop.f32.mrb[0].mxu0
      %v645 = vadd.f32 0.0, %v644
      %v646 = vpop.f32.mrb[0].mxu0
      %647 = vmatprep.mubr.bf16.mxu0 0
      %648 = vmatmul.mubr.bf16.gmra.mrb[0].mxu0 %v508
      %v649 = vpop.f32.mrb[0].mxu0
      %v650 = vadd.f32 0.0, %v649
      %v651 = vpop.f32.mrb[0].mxu0
      %v652 = vpop.f32.mrb[0].mxu0
      %v653 = vadd.f32 0.0, %v652
      %v654 = vpop.f32.mrb[0].mxu0
      %655 = vmatprep.mubr.bf16.mxu0 0
      %656 = vmatmul.mubr.bf16.gmra.mrb[0].mxu0 %v511
      %v657 = vpop.f32.mrb[0].mxu0
      %v658 = vadd.f32 0.0, %v657
      %v659 = vpop.f32.mrb[0].mxu0
      %v660 = vpop.f32.mrb[0].mxu0
      %v661 = vadd.f32 0.0, %v660
      %v662 = vpop.f32.mrb[0].mxu0
      %663 = vmatprep.mubr.bf16.mxu0 0
      %664 = vmatmul.mubr.bf16.gmra.mrb[0].mxu0 %v514
      %v665 = vpop.f32.mrb[0].mxu0
      %v666 = vadd.f32 0.0, %v665
      %v667 = vpop.f32.mrb[0].mxu0
      %v668 = vpop.f32.mrb[0].mxu0
      %v669 = vadd.f32 0.0, %v668
      %v670 = vpop.f32.mrb[0].mxu0
      %671 = vmatprep.mubr.bf16.mxu0 0
      %672 = vmatmul.mubr.bf16.gmra.mrb[0].mxu0 %v517
      %v673 = vpop.f32.mrb[0].mxu0
      %v674 = vadd.f32 0.0, %v673
      %v675 = vpop.f32.mrb[0].mxu0
      %v676 = vpop.f32.mrb[0].mxu0
      %v677 = vadd.f32 0.0, %v676
      %v678 = vpop.f32.mrb[0].mxu0
      %679 = vmatprep.mubr.bf16.mxu0 0
      %680 = vmatmul.mubr.bf16.gmra.mrb[0].mxu0 %v520
      %v681 = vpop.f32.mrb[0].mxu0
      %v682 = vadd.f32 0.0, %v681
      %v683 = vpop.f32.mrb[0].mxu0
      %v684 = vpop.f32.mrb[0].mxu0
      %v685 = vadd.f32 0.0, %v684
      %v686 = vpop.f32.mrb[0].mxu0
      %687 = vmatprep.mubr.bf16.mxu0 0
      %688 = vmatmul.mubr.bf16.gmra.mrb[0].mxu0 %v523
      %v689 = vpop.f32.mrb[0].mxu0
      %v690 = vadd.f32 0.0, %v689
      %v691 = vpop.f32.mrb[0].mxu0
      %v692 = vpop.f32.mrb[0].mxu0
      %v693 = vadd.f32 0.0, %v692
      %v694 = vpop.f32.mrb[0].mxu0
      %695 = vmatprep.mubr.bf16.mxu0 0
      %696 = vmatmul.mubr.bf16.gmra.mrb[0].mxu0 %v526
      %v697 = vpop.f32.mrb[0].mxu0
      %v698 = vadd.f32 0.0, %v697
      %v699 = vpop.f32.mrb[0].mxu0
      %v700 = vpop.f32.mrb[0].mxu0
      %v701 = vadd.f32 0.0, %v700
      %v702 = vpop.f32.mrb[0].mxu0
      %703 = vmatprep.mubr.bf16.mxu0 0
      %704 = vmatmul.mubr.bf16.gmra.mrb[0].mxu0 %v529
      %v705 = vpop.f32.mrb[0].mxu0
      %v706 = vadd.f32 0.0, %v705
      %v707 = vpop.f32.mrb[0].mxu0
      %v708 = vpop.f32.mrb[0].mxu0
      %v709 = vadd.f32 0.0, %v708
      %v710 = vpop.f32.mrb[0].mxu0
      %711 = vmatprep.mubr.bf16.mxu0 0
      %712 = vmatmul.mubr.bf16.gmra.mrb[0].mxu0 %v532
      %v713 = vpop.f32.mrb[0].mxu0
      %v714 = vadd.f32 0.0, %v713
      %v715 = vpop.f32.mrb[0].mxu0
      %v716 = vpop.f32.mrb[0].mxu0
      %v717 = vadd.f32 0.0, %v716
      %v718 = vpop.f32.mrb[0].mxu0
      %719 = vmatprep.mubr.bf16.mxu0 0
      %720 = vmatmul.mubr.bf16.gmra.mrb[0].mxu0 %v535
      %v721 = vpop.f32.mrb[0].mxu0
      %v722 = vadd.f32 0.0, %v721
      %v723 = vpop.f32.mrb[0].mxu0
      %v724 = vpop.f32.mrb[0].mxu0
      %v725 = vadd.f32 0.0, %v724
      %v726 = vpop.f32.mrb[0].mxu0
      %727 = vmatprep.mubr.bf16.mxu0 0
      %728 = vmatmul.mubr.bf16.gmra.mrb[0].mxu0 %v538
      %v729 = vpop.f32.mrb[0].mxu0
      %v730 = vadd.f32 0.0, %v729
      %v731 = vpop.f32.mrb[0].mxu0
      %v732 = vpop.f32.mrb[0].mxu0
      %v733 = vadd.f32 0.0, %v732
      %v734 = vpop.f32.mrb[0].mxu0
      %735 = vmatprep.mubr.bf16.mxu0 0
      %736 = vmatmul.mubr.bf16.gmra.mrb[0].mxu0 %v541
      %v737 = vpop.f32.mrb[0].mxu0
      %v738 = vadd.f32 0.0, %v737
      %v739 = vpop.f32.mrb[0].mxu0
      %v740 = vpop.f32.mrb[0].mxu0
      %v741 = vpop.f32.mrb[0].mxu0
      %742 = vdwg.mxu0
      %v744 = vunpack.c.l.b16 %v185
      %v745 = vpack.c.b16 %v744, %v744
      %v750 = vunpack.c.l.b16 %v186
      %v751 = vunpack.c.l.b16 %v187
      %v752 = vunpack.c.l.b16 %v188
      %v753 = vunpack.c.l.b16 %v189
      %v754 = vpack.c.b16 %v751, %v750
      %v755 = vpack.c.b16 %v753, %v752
      %v758 = vsel %vm479, %v278, 0
      %v760 = vsel %vm479, %v279, 0
      %v762 = vsel %vm479, %v280, 0
      %v764 = vsel %vm479, %v281, 0
      %v766 = vsel %vm479, %v282, 0
      %v768 = vsel %vm479, %v283, 0
      %v770 = vsel %vm479, %v284, 0
      %v772 = vsel %vm479, %v285, 0
      %v774 = vsel %vm479, %v286, 0
      %v776 = vsel %vm479, %v287, 0
      %v778 = vsel %vm479, %v288, 0
      %v780 = vsel %vm479, %v289, 0
      %v782 = vsel %vm479, %v290, 0
      %v784 = vsel %vm479, %v291, 0
      %v786 = vsel %vm479, %v292, 0
      %v788 = vsel %vm479, %v293, 0
      %v790 = vsel %vm479, %v294, 0
      %v792 = vsel %vm479, %v295, 0
      %v794 = vsel %vm479, %v296, 0
      %v796 = vsel %vm479, %v297, 0
      %v799 = vsel %vm479, %v745, 0
      %801 = vmatprep.subr.bf16.mxu0 0
      %802 = vmatpush1.bf16.msra.mxu0 %v754
      %803 = vmatprep.subr.bf16.mxu0 0
      %804 = vmatpush1.bf16.msra.mxu0 %v755
      %805 = vmatprep.subr.bf16.mxu0 0
      %806 = vmatpush1.bf16.msra.mxu0 0
      %807 = vmatprep.subr.bf16.mxu0 0
      %808 = vmatpush1.bf16.msra.mxu0 0
      %809 = vmatprep.subr.bf16.mxu0 0
      %810 = vmatpush1.bf16.msra.mxu0 0
      %811 = vmatprep.subr.bf16.mxu0 0
      %812 = vmatpush1.bf16.msra.mxu0 0
      %813 = vmatprep.subr.bf16.mxu0 0
      %814 = vmatpush1.bf16.msra.mxu0 0
      %815 = vmatprep.subr.bf16.mxu0 0
      %816 = vmatpush1.bf16.msra.mxu0 0
      %817 = vmatprep.subr.bf16.mxu0 0
      %818 = vmatpush1.bf16.msra.mxu0 0
      %819 = vmatprep.subr.bf16.mxu0 0
      %820 = vmatpush1.bf16.msra.mxu0 0
      %821 = vmatprep.subr.bf16.mxu0 0
      %822 = vmatpush1.bf16.msra.mxu0 0
      %823 = vmatprep.subr.bf16.mxu0 0
      %824 = vmatpush1.bf16.msra.mxu0 0
      %825 = vmatprep.subr.bf16.mxu0 0
      %826 = vmatpush1.bf16.msra.mxu0 0
      %827 = vmatprep.subr.bf16.mxu0 0
      %828 = vmatpush1.bf16.msra.mxu0 0
      %829 = vmatprep.subr.bf16.mxu0 0
      %830 = vmatpush1.bf16.msra.mxu0 0
      %831 = vmatprep.subr.bf16.mxu0 0
      %832 = vmatpush1.bf16.msra.mxu0 0
      %833 = vmatprep.mubr.bf16.mxu0 0
      %834 = vmatmul.mubr.bf16.gmra.mrb[0].mxu0 %v758
      %v835 = vpop.f32.mrb[0].mxu0
      %v836 = vadd.f32 %v578, %v835
      %v837 = vpop.f32.mrb[0].mxu0
      %v838 = vpop.f32.mrb[0].mxu0
      %v839 = vadd.f32 %v581, %v838
      %v840 = vpop.f32.mrb[0].mxu0
      %841 = vmatprep.mubr.bf16.mxu0 0
      %842 = vmatmul.mubr.bf16.gmra.mrb[0].mxu0 %v760
      %v843 = vpop.f32.mrb[0].mxu0
      %v844 = vadd.f32 %v586, %v843
      %v845 = vpop.f32.mrb[0].mxu0
      %v846 = vpop.f32.mrb[0].mxu0
      %v847 = vadd.f32 %v589, %v846
      %v848 = vpop.f32.mrb[0].mxu0
      %849 = vmatprep.mubr.bf16.mxu0 0
      %850 = vmatmul.mubr.bf16.gmra.mrb[0].mxu0 %v762
      %v851 = vpop.f32.mrb[0].mxu0
      %v852 = vadd.f32 %v594, %v851
      %v853 = vpop.f32.mrb[0].mxu0
      %v854 = vpop.f32.mrb[0].mxu0
      %v855 = vadd.f32 %v597, %v854
      %v856 = vpop.f32.mrb[0].mxu0
      %857 = vmatprep.mubr.bf16.mxu0 0
      %858 = vmatmul.mubr.bf16.gmra.mrb[0].mxu0 %v764
      %v859 = vpop.f32.mrb[0].mxu0
      %v860 = vadd.f32 %v602, %v859
      %v861 = vpop.f32.mrb[0].mxu0
      %v862 = vpop.f32.mrb[0].mxu0
      %v863 = vadd.f32 %v605, %v862
      %v864 = vpop.f32.mrb[0].mxu0
      %865 = vmatprep.mubr.bf16.mxu0 0
      %866 = vmatmul.mubr.bf16.gmra.mrb[0].mxu0 %v766
      %v867 = vpop.f32.mrb[0].mxu0
      %v868 = vadd.f32 %v610, %v867
      %v869 = vpop.f32.mrb[0].mxu0
      %v870 = vpop.f32.mrb[0].mxu0
      %v871 = vadd.f32 %v613, %v870
      %v872 = vpop.f32.mrb[0].mxu0
      %873 = vmatprep.mubr.bf16.mxu0 0
      %874 = vmatmul.mubr.bf16.gmra.mrb[0].mxu0 %v768
      %v875 = vpop.f32.mrb[0].mxu0
      %v876 = vadd.f32 %v618, %v875
      %v877 = vpop.f32.mrb[0].mxu0
      %v878 = vpop.f32.mrb[0].mxu0
      %v879 = vadd.f32 %v621, %v878
      %v880 = vpop.f32.mrb[0].mxu0
      %881 = vmatprep.mubr.bf16.mxu0 0
      %882 = vmatmul.mubr.bf16.gmra.mrb[0].mxu0 %v770
      %v883 = vpop.f32.mrb[0].mxu0
      %v884 = vadd.f32 %v626, %v883
      %v885 = vpop.f32.mrb[0].mxu0
      %v886 = vpop.f32.mrb[0].mxu0
      %v887 = vadd.f32 %v629, %v886
      %v888 = vpop.f32.mrb[0].mxu0
      %889 = vmatprep.mubr.bf16.mxu0 0
      %890 = vmatmul.mubr.bf16.gmra.mrb[0].mxu0 %v772
      %v891 = vpop.f32.mrb[0].mxu0
      %v892 = vadd.f32 %v634, %v891
      %v893 = vpop.f32.mrb[0].mxu0
      %v894 = vpop.f32.mrb[0].mxu0
      %v895 = vadd.f32 %v637, %v894
      %v896 = vpop.f32.mrb[0].mxu0
      %897 = vmatprep.mubr.bf16.mxu0 0
      %898 = vmatmul.mubr.bf16.gmra.mrb[0].mxu0 %v774
      %v899 = vpop.f32.mrb[0].mxu0
      %v900 = vadd.f32 %v642, %v899
      %v901 = vpop.f32.mrb[0].mxu0
      %v902 = vpop.f32.mrb[0].mxu0
      %v903 = vadd.f32 %v645, %v902
      %v904 = vpop.f32.mrb[0].mxu0
      %905 = vmatprep.mubr.bf16.mxu0 0
      %906 = vmatmul.mubr.bf16.gmra.mrb[0].mxu0 %v776
      %v907 = vpop.f32.mrb[0].mxu0
      %v908 = vadd.f32 %v650, %v907
      %v909 = vpop.f32.mrb[0].mxu0
      %v910 = vpop.f32.mrb[0].mxu0
      %v911 = vadd.f32 %v653, %v910
      %v912 = vpop.f32.mrb[0].mxu0
      %913 = vmatprep.mubr.bf16.mxu0 0
      %914 = vmatmul.mubr.bf16.gmra.mrb[0].mxu0 %v778
      %v915 = vpop.f32.mrb[0].mxu0
      %v916 = vadd.f32 %v658, %v915
      %v917 = vpop.f32.mrb[0].mxu0
      %v918 = vpop.f32.mrb[0].mxu0
      %v919 = vadd.f32 %v661, %v918
      %v920 = vpop.f32.mrb[0].mxu0
      %921 = vmatprep.mubr.bf16.mxu0 0
      %922 = vmatmul.mubr.bf16.gmra.mrb[0].mxu0 %v780
      %v923 = vpop.f32.mrb[0].mxu0
      %v924 = vadd.f32 %v666, %v923
      %v925 = vpop.f32.mrb[0].mxu0
      %v926 = vpop.f32.mrb[0].mxu0
      %v927 = vadd.f32 %v669, %v926
      %v928 = vpop.f32.mrb[0].mxu0
      %929 = vmatprep.mubr.bf16.mxu0 0
      %930 = vmatmul.mubr.bf16.gmra.mrb[0].mxu0 %v782
      %v931 = vpop.f32.mrb[0].mxu0
      %v932 = vadd.f32 %v674, %v931
      %v933 = vpop.f32.mrb[0].mxu0
      %v934 = vpop.f32.mrb[0].mxu0
      %v935 = vadd.f32 %v677, %v934
      %v936 = vpop.f32.mrb[0].mxu0
      %937 = vmatprep.mubr.bf16.mxu0 0
      %938 = vmatmul.mubr.bf16.gmra.mrb[0].mxu0 %v784
      %v939 = vpop.f32.mrb[0].mxu0
      %v940 = vadd.f32 %v682, %v939
      %v941 = vpop.f32.mrb[0].mxu0
      %v942 = vpop.f32.mrb[0].mxu0
      %v943 = vadd.f32 %v685, %v942
      %v944 = vpop.f32.mrb[0].mxu0
      %945 = vmatprep.mubr.bf16.mxu0 0
      %946 = vmatmul.mubr.bf16.gmra.mrb[0].mxu0 %v786
      %v947 = vpop.f32.mrb[0].mxu0
      %v948 = vadd.f32 %v690, %v947
      %v949 = vpop.f32.mrb[0].mxu0
      %v950 = vpop.f32.mrb[0].mxu0
      %v951 = vadd.f32 %v693, %v950
      %v952 = vpop.f32.mrb[0].mxu0
      %953 = vmatprep.mubr.bf16.mxu0 0
      %954 = vmatmul.mubr.bf16.gmra.mrb[0].mxu0 %v788
      %v955 = vpop.f32.mrb[0].mxu0
      %v956 = vadd.f32 %v698, %v955
      %v957 = vpop.f32.mrb[0].mxu0
      %v958 = vpop.f32.mrb[0].mxu0
      %v959 = vadd.f32 %v701, %v958
      %v960 = vpop.f32.mrb[0].mxu0
      %961 = vmatprep.mubr.bf16.mxu0 0
      %962 = vmatmul.mubr.bf16.gmra.mrb[0].mxu0 %v790
      %v963 = vpop.f32.mrb[0].mxu0
      %v964 = vadd.f32 %v706, %v963
      %v965 = vpop.f32.mrb[0].mxu0
      %v966 = vpop.f32.mrb[0].mxu0
      %v967 = vadd.f32 %v709, %v966
      %v968 = vpop.f32.mrb[0].mxu0
      %969 = vmatprep.mubr.bf16.mxu0 0
      %970 = vmatmul.mubr.bf16.gmra.mrb[0].mxu0 %v792
      %v971 = vpop.f32.mrb[0].mxu0
      %v972 = vadd.f32 %v714, %v971
      %v973 = vpop.f32.mrb[0].mxu0
      %v974 = vpop.f32.mrb[0].mxu0
      %v975 = vadd.f32 %v717, %v974
      %v976 = vpop.f32.mrb[0].mxu0
      %977 = vmatprep.mubr.bf16.mxu0 0
      %978 = vmatmul.mubr.bf16.gmra.mrb[0].mxu0 %v794
      %v979 = vpop.f32.mrb[0].mxu0
      %v980 = vadd.f32 %v722, %v979
      %v981 = vpop.f32.mrb[0].mxu0
      %v982 = vpop.f32.mrb[0].mxu0
      %v983 = vadd.f32 %v725, %v982
      %v984 = vpop.f32.mrb[0].mxu0
      %985 = vmatprep.mubr.bf16.mxu0 0
      %986 = vmatmul.mubr.bf16.gmra.mrb[0].mxu0 %v796
      %v987 = vpop.f32.mrb[0].mxu0
      %v988 = vadd.f32 %v730, %v987
      %v989 = vpop.f32.mrb[0].mxu0
      %v990 = vpop.f32.mrb[0].mxu0
      %v991 = vadd.f32 %v733, %v990
      %v992 = vpop.f32.mrb[0].mxu0
      %993 = vmatprep.mubr.bf16.mxu0 0
      %994 = vmatmul.mubr.bf16.gmra.mrb[0].mxu0 %v799
      %v995 = vpop.f32.mrb[0].mxu0
      %v996 = vadd.f32 %v738, %v995
      %v997 = vpop.f32.mrb[0].mxu0
      %v998 = vpop.f32.mrb[0].mxu0
      %v999 = vpop.f32.mrb[0].mxu0
      %1000 = vdwg.mxu0
      %v1001 = vld [vmem:[%s138] sm:$0xe]
      %s1002 = scalar_lea.vmem %s1, 32
      %v1003 = vld [vmem:[%s1002] sm:$0xf]
      %v1004 = vld [vmem:[%s1002 + $0x4] sm:$0xf]
      %v1005 = vld [vmem:[%s1002 + $0x8] sm:$0xf]
      %v1006 = vld [vmem:[%s1002 + $0xc] sm:$0xf]
      %v1008 = vunpack.c.l.b16 %v1001
      %v1009 = vpack.c.b16 %v238, %v1008
      %vm1010 = vcmask 1046528
      %v1011 = vrot.slane %v1009, 1
      %v1012 = vrot.slane %v279, 1
      %v1013 = vsel %vm1010, %v1011, %v1012
      %v1014 = vrot.slane %v280, 1
      %v1015 = vsel %vm1010, %v1012, %v1014
      %v1016 = vrot.slane %v281, 1
      %v1017 = vsel %vm1010, %v1014, %v1016
      %v1018 = vrot.slane %v282, 1
      %v1019 = vsel %vm1010, %v1016, %v1018
      %v1020 = vrot.slane %v283, 1
      %v1021 = vsel %vm1010, %v1018, %v1020
      %v1022 = vrot.slane %v284, 1
      %v1023 = vsel %vm1010, %v1020, %v1022
      %v1024 = vrot.slane %v285, 1
      %v1025 = vsel %vm1010, %v1022, %v1024
      %v1026 = vrot.slane %v286, 1
      %v1027 = vsel %vm1010, %v1024, %v1026
      %v1028 = vrot.slane %v287, 1
      %v1029 = vsel %vm1010, %v1026, %v1028
      %v1030 = vrot.slane %v288, 1
      %v1031 = vsel %vm1010, %v1028, %v1030
      %v1032 = vrot.slane %v289, 1
      %v1033 = vsel %vm1010, %v1030, %v1032
      %v1034 = vrot.slane %v290, 1
      %v1035 = vsel %vm1010, %v1032, %v1034
      %v1036 = vrot.slane %v291, 1
      %v1037 = vsel %vm1010, %v1034, %v1036
      %v1038 = vrot.slane %v292, 1
      %v1039 = vsel %vm1010, %v1036, %v1038
      %v1040 = vrot.slane %v293, 1
      %v1041 = vsel %vm1010, %v1038, %v1040
      %v1042 = vrot.slane %v294, 1
      %v1043 = vsel %vm1010, %v1040, %v1042
      %v1044 = vrot.slane %v295, 1
      %v1045 = vsel %vm1010, %v1042, %v1044
      %v1046 = vrot.slane %v296, 1
      %v1047 = vsel %vm1010, %v1044, %v1046
      %v1048 = vrot.slane %v297, 1
      %v1049 = vsel %vm1010, %v1046, %v1048
      %v1050 = vrot.slane %v298, 1
      %v1051 = vsel %vm1010, %v1048, %v1050
      %v1056 = vunpack.c.l.b16 %v1003
      %v1057 = vunpack.c.l.b16 %v1004
      %v1058 = vunpack.c.l.b16 %v1005
      %v1059 = vunpack.c.l.b16 %v1006
      %v1060 = vpack.c.b16 %v1057, %v1056
      %v1061 = vpack.c.b16 %v1059, %v1058
      %v1065 = vsel %vm479, %v1013, 0
      %v1068 = vsel %vm479, %v1015, 0
      %v1071 = vsel %vm479, %v1017, 0
      %v1074 = vsel %vm479, %v1019, 0
      %v1077 = vsel %vm479, %v1021, 0
      %v1080 = vsel %vm479, %v1023, 0
      %v1083 = vsel %vm479, %v1025, 0
      %v1086 = vsel %vm479, %v1027, 0
      %v1089 = vsel %vm479, %v1029, 0
      %v1092 = vsel %vm479, %v1031, 0
      %v1095 = vsel %vm479, %v1033, 0
      %v1098 = vsel %vm479, %v1035, 0
      %v1101 = vsel %vm479, %v1037, 0
      %v1104 = vsel %vm479, %v1039, 0
      %v1107 = vsel %vm479, %v1041, 0
      %v1110 = vsel %vm479, %v1043, 0
      %v1113 = vsel %vm479, %v1045, 0
      %v1116 = vsel %vm479, %v1047, 0
      %v1119 = vsel %vm479, %v1049, 0
      %v1122 = vsel %vm479, %v1051, 0
      %v1125 = vsel %vm479, %v1050, 0
      %1127 = vmatprep.subr.bf16.mxu0 0
      %1128 = vmatpush1.bf16.msra.mxu0 %v1060
      %1129 = vmatprep.subr.bf16.mxu0 0
      %1130 = vmatpush1.bf16.msra.mxu0 %v1061
      %1131 = vmatprep.subr.bf16.mxu0 0
      %1132 = vmatpush1.bf16.msra.mxu0 0
      %1133 = vmatprep.subr.bf16.mxu0 0
      %1134 = vmatpush1.bf16.msra.mxu0 0
      %1135 = vmatprep.subr.bf16.mxu0 0
      %1136 = vmatpush1.bf16.msra.mxu0 0
      %1137 = vmatprep.subr.bf16.mxu0 0
      %1138 = vmatpush1.bf16.msra.mxu0 0
      %1139 = vmatprep.subr.bf16.mxu0 0
      %1140 = vmatpush1.bf16.msra.mxu0 0
      %1141 = vmatprep.subr.bf16.mxu0 0
      %1142 = vmatpush1.bf16.msra.mxu0 0
      %1143 = vmatprep.subr.bf16.mxu0 0
      %1144 = vmatpush1.bf16.msra.mxu0 0
      %1145 = vmatprep.subr.bf16.mxu0 0
      %1146 = vmatpush1.bf16.msra.mxu0 0
      %1147 = vmatprep.subr.bf16.mxu0 0
      %1148 = vmatpush1.bf16.msra.mxu0 0
      %1149 = vmatprep.subr.bf16.mxu0 0
      %1150 = vmatpush1.bf16.msra.mxu0 0
      %1151 = vmatprep.subr.bf16.mxu0 0
      %1152 = vmatpush1.bf16.msra.mxu0 0
      %1153 = vmatprep.subr.bf16.mxu0 0
      %1154 = vmatpush1.bf16.msra.mxu0 0
      %1155 = vmatprep.subr.bf16.mxu0 0
      %1156 = vmatpush1.bf16.msra.mxu0 0
      %1157 = vmatprep.subr.bf16.mxu0 0
      %1158 = vmatpush1.bf16.msra.mxu0 0
      %1159 = vmatprep.mubr.bf16.mxu0 0
      %1160 = vmatmul.mubr.bf16.gmra.mrb[0].mxu0 %v1065
      %v1161 = vpop.f32.mrb[0].mxu0
      %v1162 = vadd.f32 0.0, %v1161
      %v1163 = vpop.f32.mrb[0].mxu0
      %v1164 = vpop.f32.mrb[0].mxu0
      %v1165 = vadd.f32 0.0, %v1164
      %v1166 = vpop.f32.mrb[0].mxu0
      %1167 = vmatprep.mubr.bf16.mxu0 0
      %1168 = vmatmul.mubr.bf16.gmra.mrb[0].mxu0 %v1068
      %v1169 = vpop.f32.mrb[0].mxu0
      %v1170 = vadd.f32 0.0, %v1169
      %v1171 = vpop.f32.mrb[0].mxu0
      %v1172 = vpop.f32.mrb[0].mxu0
      %v1173 = vadd.f32 0.0, %v1172
      %v1174 = vpop.f32.mrb[0].mxu0
      %1175 = vmatprep.mubr.bf16.mxu0 0
      %1176 = vmatmul.mubr.bf16.gmra.mrb[0].mxu0 %v1071
      %v1177 = vpop.f32.mrb[0].mxu0
      %v1178 = vadd.f32 0.0, %v1177
      %v1179 = vpop.f32.mrb[0].mxu0
      %v1180 = vpop.f32.mrb[0].mxu0
      %v1181 = vadd.f32 0.0, %v1180
      %v1182 = vpop.f32.mrb[0].mxu0
      %1183 = vmatprep.mubr.bf16.mxu0 0
      %1184 = vmatmul.mubr.bf16.gmra.mrb[0].mxu0 %v1074
      %v1185 = vpop.f32.mrb[0].mxu0
      %v1186 = vadd.f32 0.0, %v1185
      %v1187 = vpop.f32.mrb[0].mxu0
      %v1188 = vpop.f32.mrb[0].mxu0
      %v1189 = vadd.f32 0.0, %v1188
      %v1190 = vpop.f32.mrb[0].mxu0
      %1191 = vmatprep.mubr.bf16.mxu0 0
      %1192 = vmatmul.mubr.bf16.gmra.mrb[0].mxu0 %v1077
      %v1193 = vpop.f32.mrb[0].mxu0
      %v1194 = vadd.f32 0.0, %v1193
      %v1195 = vpop.f32.mrb[0].mxu0
      %v1196 = vpop.f32.mrb[0].mxu0
      %v1197 = vadd.f32 0.0, %v1196
      %v1198 = vpop.f32.mrb[0].mxu0
      %1199 = vmatprep.mubr.bf16.mxu0 0
      %1200 = vmatmul.mubr.bf16.gmra.mrb[0].mxu0 %v1080
      %v1201 = vpop.f32.mrb[0].mxu0
      %v1202 = vadd.f32 0.0, %v1201
      %v1203 = vpop.f32.mrb[0].mxu0
      %v1204 = vpop.f32.mrb[0].mxu0
      %v1205 = vadd.f32 0.0, %v1204
      %v1206 = vpop.f32.mrb[0].mxu0
      %1207 = vmatprep.mubr.bf16.mxu0 0
      %1208 = vmatmul.mubr.bf16.gmra.mrb[0].mxu0 %v1083
      %v1209 = vpop.f32.mrb[0].mxu0
      %v1210 = vadd.f32 0.0, %v1209
      %v1211 = vpop.f32.mrb[0].mxu0
      %v1212 = vpop.f32.mrb[0].mxu0
      %v1213 = vadd.f32 0.0, %v1212
      %v1214 = vpop.f32.mrb[0].mxu0
      %1215 = vmatprep.mubr.bf16.mxu0 0
      %1216 = vmatmul.mubr.bf16.gmra.mrb[0].mxu0 %v1086
      %v1217 = vpop.f32.mrb[0].mxu0
      %v1218 = vadd.f32 0.0, %v1217
      %v1219 = vpop.f32.mrb[0].mxu0
      %v1220 = vpop.f32.mrb[0].mxu0
      %v1221 = vadd.f32 0.0, %v1220
      %v1222 = vpop.f32.mrb[0].mxu0
      %1223 = vmatprep.mubr.bf16.mxu0 0
      %1224 = vmatmul.mubr.bf16.gmra.mrb[0].mxu0 %v1089
      %v1225 = vpop.f32.mrb[0].mxu0
      %v1226 = vadd.f32 0.0, %v1225
      %v1227 = vpop.f32.mrb[0].mxu0
      %v1228 = vpop.f32.mrb[0].mxu0
      %v1229 = vadd.f32 0.0, %v1228
      %v1230 = vpop.f32.mrb[0].mxu0
      %1231 = vmatprep.mubr.bf16.mxu0 0
      %1232 = vmatmul.mubr.bf16.gmra.mrb[0].mxu0 %v1092
      %v1233 = vpop.f32.mrb[0].mxu0
      %v1234 = vadd.f32 0.0, %v1233
      %v1235 = vpop.f32.mrb[0].mxu0
      %v1236 = vpop.f32.mrb[0].mxu0
      %v1237 = vadd.f32 0.0, %v1236
      %v1238 = vpop.f32.mrb[0].mxu0
      %1239 = vmatprep.mubr.bf16.mxu0 0
      %1240 = vmatmul.mubr.bf16.gmra.mrb[0].mxu0 %v1095
      %v1241 = vpop.f32.mrb[0].mxu0
      %v1242 = vadd.f32 0.0, %v1241
      %v1243 = vpop.f32.mrb[0].mxu0
      %v1244 = vpop.f32.mrb[0].mxu0
      %v1245 = vadd.f32 0.0, %v1244
      %v1246 = vpop.f32.mrb[0].mxu0
      %1247 = vmatprep.mubr.bf16.mxu0 0
      %1248 = vmatmul.mubr.bf16.gmra.mrb[0].mxu0 %v1098
      %v1249 = vpop.f32.mrb[0].mxu0
      %v1250 = vadd.f32 0.0, %v1249
      %v1251 = vpop.f32.mrb[0].mxu0
      %v1252 = vpop.f32.mrb[0].mxu0
      %v1253 = vadd.f32 0.0, %v1252
      %v1254 = vpop.f32.mrb[0].mxu0
      %1255 = vmatprep.mubr.bf16.mxu0 0
      %1256 = vmatmul.mubr.bf16.gmra.mrb[0].mxu0 %v1101
      %v1257 = vpop.f32.mrb[0].mxu0
      %v1258 = vadd.f32 0.0, %v1257
      %v1259 = vpop.f32.mrb[0].mxu0
      %v1260 = vpop.f32.mrb[0].mxu0
      %v1261 = vadd.f32 0.0, %v1260
      %v1262 = vpop.f32.mrb[0].mxu0
      %1263 = vmatprep.mubr.bf16.mxu0 0
      %1264 = vmatmul.mubr.bf16.gmra.mrb[0].mxu0 %v1104
      %v1265 = vpop.f32.mrb[0].mxu0
      %v1266 = vadd.f32 0.0, %v1265
      %v1267 = vpop.f32.mrb[0].mxu0
      %v1268 = vpop.f32.mrb[0].mxu0
      %v1269 = vadd.f32 0.0, %v1268
      %v1270 = vpop.f32.mrb[0].mxu0
      %1271 = vmatprep.mubr.bf16.mxu0 0
      %1272 = vmatmul.mubr.bf16.gmra.mrb[0].mxu0 %v1107
      %v1273 = vpop.f32.mrb[0].mxu0
      %v1274 = vadd.f32 0.0, %v1273
      %v1275 = vpop.f32.mrb[0].mxu0
      %v1276 = vpop.f32.mrb[0].mxu0
      %v1277 = vadd.f32 0.0, %v1276
      %v1278 = vpop.f32.mrb[0].mxu0
      %1279 = vmatprep.mubr.bf16.mxu0 0
      %1280 = vmatmul.mubr.bf16.gmra.mrb[0].mxu0 %v1110
      %v1281 = vpop.f32.mrb[0].mxu0
      %v1282 = vadd.f32 0.0, %v1281
      %v1283 = vpop.f32.mrb[0].mxu0
      %v1284 = vpop.f32.mrb[0].mxu0
      %v1285 = vadd.f32 0.0, %v1284
      %v1286 = vpop.f32.mrb[0].mxu0
      %1287 = vmatprep.mubr.bf16.mxu0 0
      %1288 = vmatmul.mubr.bf16.gmra.mrb[0].mxu0 %v1113
      %v1289 = vpop.f32.mrb[0].mxu0
      %v1290 = vadd.f32 0.0, %v1289
      %v1291 = vpop.f32.mrb[0].mxu0
      %v1292 = vpop.f32.mrb[0].mxu0
      %v1293 = vadd.f32 0.0, %v1292
      %v1294 = vpop.f32.mrb[0].mxu0
      %1295 = vmatprep.mubr.bf16.mxu0 0
      %1296 = vmatmul.mubr.bf16.gmra.mrb[0].mxu0 %v1116
      %v1297 = vpop.f32.mrb[0].mxu0
      %v1298 = vadd.f32 0.0, %v1297
      %v1299 = vpop.f32.mrb[0].mxu0
      %v1300 = vpop.f32.mrb[0].mxu0
      %v1301 = vadd.f32 0.0, %v1300
      %v1302 = vpop.f32.mrb[0].mxu0
      %1303 = vmatprep.mubr.bf16.mxu0 0
      %1304 = vmatmul.mubr.bf16.gmra.mrb[0].mxu0 %v1119
      %v1305 = vpop.f32.mrb[0].mxu0
      %v1306 = vadd.f32 0.0, %v1305
      %v1307 = vpop.f32.mrb[0].mxu0
      %v1308 = vpop.f32.mrb[0].mxu0
      %v1309 = vadd.f32 0.0, %v1308
      %v1310 = vpop.f32.mrb[0].mxu0
      %1311 = vmatprep.mubr.bf16.mxu0 0
      %1312 = vmatmul.mubr.bf16.gmra.mrb[0].mxu0 %v1122
      %v1313 = vpop.f32.mrb[0].mxu0
      %v1314 = vadd.f32 0.0, %v1313
      %v1315 = vpop.f32.mrb[0].mxu0
      %v1316 = vpop.f32.mrb[0].mxu0
      %v1317 = vadd.f32 0.0, %v1316
      %v1318 = vpop.f32.mrb[0].mxu0
      %1319 = vmatprep.mubr.bf16.mxu0 0
      %1320 = vmatmul.mubr.bf16.gmra.mrb[0].mxu0 %v1125
      %v1321 = vpop.f32.mrb[0].mxu0
      %v1322 = vadd.f32 0.0, %v1321
      %v1323 = vpop.f32.mrb[0].mxu0
      %v1324 = vpop.f32.mrb[0].mxu0
      %v1325 = vpop.f32.mrb[0].mxu0
      %1326 = vdwg.mxu0
      %v1327 = vadd.f32 %v836, %v1162
      %v1328 = vadd.f32 %v839, %v1165
      %v1329 = vadd.f32 %v844, %v1170
      %v1330 = vadd.f32 %v847, %v1173
      %v1331 = vadd.f32 %v852, %v1178
      %v1332 = vadd.f32 %v855, %v1181
      %v1333 = vadd.f32 %v860, %v1186
      %v1334 = vadd.f32 %v863, %v1189
      %v1335 = vadd.f32 %v868, %v1194
      %v1336 = vadd.f32 %v871, %v1197
      %v1337 = vadd.f32 %v876, %v1202
      %v1338 = vadd.f32 %v879, %v1205
      %v1339 = vadd.f32 %v884, %v1210
      %v1340 = vadd.f32 %v887, %v1213
      %v1341 = vadd.f32 %v892, %v1218
      %v1342 = vadd.f32 %v895, %v1221
      %v1343 = vadd.f32 %v900, %v1226
      %v1344 = vadd.f32 %v903, %v1229
      %v1345 = vadd.f32 %v908, %v1234
      %v1346 = vadd.f32 %v911, %v1237
      %v1347 = vadd.f32 %v916, %v1242
      %v1348 = vadd.f32 %v919, %v1245
      %v1349 = vadd.f32 %v924, %v1250
      %v1350 = vadd.f32 %v927, %v1253
      %v1351 = vadd.f32 %v932, %v1258
      %v1352 = vadd.f32 %v935, %v1261
      %v1353 = vadd.f32 %v940, %v1266
      %v1354 = vadd.f32 %v943, %v1269
      %v1355 = vadd.f32 %v948, %v1274
      %v1356 = vadd.f32 %v951, %v1277
      %v1357 = vadd.f32 %v956, %v1282
      %v1358 = vadd.f32 %v959, %v1285
      %v1359 = vadd.f32 %v964, %v1290
      %v1360 = vadd.f32 %v967, %v1293
      %v1361 = vadd.f32 %v972, %v1298
      %v1362 = vadd.f32 %v975, %v1301
      %v1363 = vadd.f32 %v980, %v1306
      %v1364 = vadd.f32 %v983, %v1309
      %v1365 = vadd.f32 %v988, %v1314
      %v1366 = vadd.f32 %v991, %v1317
      %v1367 = vadd.f32 %v996, %v1322
      %v1368 = vld [vmem:[%s138 + $0x8] sm:$0xe]
      %v1369 = vld [vmem:[%s138 + $0xc] sm:$0xf]
      %v1370 = vld [vmem:[%s138 + $0x10] sm:$0xf]
      %v1371 = vld [vmem:[%s138 + $0x14] sm:$0xf]
      %v1372 = vld [vmem:[%s138 + $0x18] sm:$0xf]
      %v1373 = vld [vmem:[%s138 + $0x1c] sm:$0xf]
      %v1374 = vld [vmem:[%s138 + $0x20] sm:$0xf]
      %v1375 = vld [vmem:[%s138 + $0x24] sm:$0xf]
      %v1376 = vld [vmem:[%s138 + $0x28] sm:$0xf]
      %v1377 = vld [vmem:[%s138 + $0x2c] sm:$0xf]
      %v1378 = vld [vmem:[%s138 + $0x30] sm:$0xf]
      %v1379 = vld [vmem:[%s138 + $0x34] sm:$0xf]
      %v1380 = vld [vmem:[%s138 + $0x38] sm:$0xf]
      %v1381 = vld [vmem:[%s138 + $0x3c] sm:$0xf]
      %v1382 = vld [vmem:[%s138 + $0x40] sm:$0xf]
      %v1383 = vld [vmem:[%s138 + $0x44] sm:$0xf]
      %v1384 = vld [vmem:[%s138 + $0x48] sm:$0xf]
      %v1385 = vld [vmem:[%s138 + $0x4c] sm:$0xf]
      %v1386 = vld [vmem:[%s138 + $0x50] sm:$0xf]
      %v1387 = vld [vmem:[%s138 + $0x54] sm:$0xf]
      %v1388 = vld [vmem:[%s138 + $0x58] sm:$0xf]
      %v1389 = vld [vmem:[%s138 + $0x5c] sm:$0xf]
      %v1390 = vld [vmem:[%s138 + $0x60] sm:$0xf]
      %v1391 = vld [vmem:[%s138 + $0x64] sm:$0xf]
      %v1392 = vld [vmem:[%s138 + $0x68] sm:$0xf]
      %v1393 = vld [vmem:[%s138 + $0x6c] sm:$0xf]
      %v1394 = vld [vmem:[%s138 + $0x70] sm:$0xf]
      %v1395 = vld [vmem:[%s138 + $0x74] sm:$0xf]
      %v1396 = vld [vmem:[%s138 + $0x78] sm:$0xf]
      %v1397 = vld [vmem:[%s138 + $0x7c] sm:$0xf]
      %v1398 = vld [vmem:[%s138 + $0x80] sm:$0xf]
      %v1399 = vld [vmem:[%s138 + $0x84] sm:$0xf]
      %v1400 = vld [vmem:[%s138 + $0x88] sm:$0xf]
      %v1401 = vld [vmem:[%s138 + $0x8c] sm:$0xf]
      %v1402 = vld [vmem:[%s138 + $0x90] sm:$0xf]
      %v1403 = vld [vmem:[%s138 + $0x94] sm:$0xf]
      %v1404 = vld [vmem:[%s138 + $0x98] sm:$0xf]
      %v1405 = vld [vmem:[%s138 + $0x9c] sm:$0xf]
      %v1406 = vld [vmem:[%s138 + $0xa0] sm:$0xf]
      %v1407 = vld [vmem:[%s138 + $0xa4] sm:$0xf]
      %v1408 = vld [vmem:[%s138 + $0xa8] sm:$0x7]
      %s1409 = scalar_lea.vmem %s1, 48
      %v1410 = vld [vmem:[%s1409] sm:$0xf]
      %v1411 = vld [vmem:[%s1409 + $0x4] sm:$0xf]
      %v1412 = vld [vmem:[%s1409 + $0x8] sm:$0xf]
      %v1413 = vld [vmem:[%s1409 + $0xc] sm:$0xf]
      %v1455 = vunpack.c.l.b16 %v1368
      %v1456 = vunpack.c.l.b16 %v1369
      %v1457 = vunpack.c.l.b16 %v1370
      %v1458 = vunpack.c.l.b16 %v1371
      %v1459 = vunpack.c.l.b16 %v1372
      %v1460 = vunpack.c.l.b16 %v1373
      %v1461 = vunpack.c.l.b16 %v1374
      %v1462 = vunpack.c.l.b16 %v1375
      %v1463 = vunpack.c.l.b16 %v1376
      %v1464 = vunpack.c.l.b16 %v1377
      %v1465 = vunpack.c.l.b16 %v1378
      %v1466 = vunpack.c.l.b16 %v1379
      %v1467 = vunpack.c.l.b16 %v1380
      %v1468 = vunpack.c.l.b16 %v1381
      %v1469 = vunpack.c.l.b16 %v1382
      %v1470 = vunpack.c.l.b16 %v1383
      %v1471 = vunpack.c.l.b16 %v1384
      %v1472 = vunpack.c.l.b16 %v1385
      %v1473 = vunpack.c.l.b16 %v1386
      %v1474 = vunpack.c.l.b16 %v1387
      %v1475 = vunpack.c.l.b16 %v1388
      %v1476 = vunpack.c.l.b16 %v1389
      %v1477 = vunpack.c.l.b16 %v1390
      %v1478 = vunpack.c.l.b16 %v1391
      %v1479 = vunpack.c.l.b16 %v1392
      %v1480 = vunpack.c.l.b16 %v1393
      %v1481 = vunpack.c.l.b16 %v1394
      %v1482 = vunpack.c.l.b16 %v1395
      %v1483 = vunpack.c.l.b16 %v1396
      %v1484 = vunpack.c.l.b16 %v1397
      %v1485 = vunpack.c.l.b16 %v1398
      %v1486 = vunpack.c.l.b16 %v1399
      %v1487 = vunpack.c.l.b16 %v1400
      %v1488 = vunpack.c.l.b16 %v1401
      %v1489 = vunpack.c.l.b16 %v1402
      %v1490 = vunpack.c.l.b16 %v1403
      %v1491 = vunpack.c.l.b16 %v1404
      %v1492 = vunpack.c.l.b16 %v1405
      %v1493 = vunpack.c.l.b16 %v1406
      %v1494 = vunpack.c.l.b16 %v1407
      %v1495 = vunpack.c.l.b16 %v1408
      %v1496 = vpack.c.b16 %v1456, %v1455
      %v1497 = vpack.c.b16 %v1458, %v1457
      %v1498 = vpack.c.b16 %v1460, %v1459
      %v1499 = vpack.c.b16 %v1462, %v1461
      %v1500 = vpack.c.b16 %v1464, %v1463
      %v1501 = vpack.c.b16 %v1466, %v1465
      %v1502 = vpack.c.b16 %v1468, %v1467
      %v1503 = vpack.c.b16 %v1470, %v1469
      %v1504 = vpack.c.b16 %v1472, %v1471
      %v1505 = vpack.c.b16 %v1474, %v1473
      %v1506 = vpack.c.b16 %v1476, %v1475
      %v1507 = vpack.c.b16 %v1478, %v1477
      %v1508 = vpack.c.b16 %v1480, %v1479
      %v1509 = vpack.c.b16 %v1482, %v1481
      %v1510 = vpack.c.b16 %v1484, %v1483
      %v1511 = vpack.c.b16 %v1486, %v1485
      %v1512 = vpack.c.b16 %v1488, %v1487
      %v1513 = vpack.c.b16 %v1490, %v1489
      %v1514 = vpack.c.b16 %v1492, %v1491
      %v1515 = vpack.c.b16 %v1494, %v1493
      %v1516 = vpack.c.b16 %v1495, %v1495
      %v1517 = vrot.slane %v1496, 1
      %v1518 = vrot.slane %v1497, 1
      %v1519 = vsel %vm1010, %v1517, %v1518
      %v1520 = vrot.slane %v1498, 1
      %v1521 = vsel %vm1010, %v1518, %v1520
      %v1522 = vrot.slane %v1499, 1
      %v1523 = vsel %vm1010, %v1520, %v1522
      %v1524 = vrot.slane %v1500, 1
      %v1525 = vsel %vm1010, %v1522, %v1524
      %v1526 = vrot.slane %v1501, 1
      %v1527 = vsel %vm1010, %v1524, %v1526
      %v1528 = vrot.slane %v1502, 1
      %v1529 = vsel %vm1010, %v1526, %v1528
      %v1530 = vrot.slane %v1503, 1
      %v1531 = vsel %vm1010, %v1528, %v1530
      %v1532 = vrot.slane %v1504, 1
      %v1533 = vsel %vm1010, %v1530, %v1532
      %v1534 = vrot.slane %v1505, 1
      %v1535 = vsel %vm1010, %v1532, %v1534
      %v1536 = vrot.slane %v1506, 1
      %v1537 = vsel %vm1010, %v1534, %v1536
      %v1538 = vrot.slane %v1507, 1
      %v1539 = vsel %vm1010, %v1536, %v1538
      %v1540 = vrot.slane %v1508, 1
      %v1541 = vsel %vm1010, %v1538, %v1540
      %v1542 = vrot.slane %v1509, 1
      %v1543 = vsel %vm1010, %v1540, %v1542
      %v1544 = vrot.slane %v1510, 1
      %v1545 = vsel %vm1010, %v1542, %v1544
      %v1546 = vrot.slane %v1511, 1
      %v1547 = vsel %vm1010, %v1544, %v1546
      %v1548 = vrot.slane %v1512, 1
      %v1549 = vsel %vm1010, %v1546, %v1548
      %v1550 = vrot.slane %v1513, 1
      %v1551 = vsel %vm1010, %v1548, %v1550
      %v1552 = vrot.slane %v1514, 1
      %v1553 = vsel %vm1010, %v1550, %v1552
      %v1554 = vrot.slane %v1515, 1
      %v1555 = vsel %vm1010, %v1552, %v1554
      %v1556 = vrot.slane %v1516, 1
      %v1557 = vsel %vm1010, %v1554, %v1556
      %v1562 = vunpack.c.l.b16 %v1410
      %v1563 = vunpack.c.l.b16 %v1411
      %v1564 = vunpack.c.l.b16 %v1412
      %v1565 = vunpack.c.l.b16 %v1413
      %v1566 = vpack.c.b16 %v1563, %v1562
      %v1567 = vpack.c.b16 %v1565, %v1564
      %v1571 = vsel %vm479, %v1519, 0
      %v1574 = vsel %vm479, %v1521, 0
      %v1577 = vsel %vm479, %v1523, 0
      %v1580 = vsel %vm479, %v1525, 0
      %v1583 = vsel %vm479, %v1527, 0
      %v1586 = vsel %vm479, %v1529, 0
      %v1589 = vsel %vm479, %v1531, 0
      %v1592 = vsel %vm479, %v1533, 0
      %v1595 = vsel %vm479, %v1535, 0
      %v1598 = vsel %vm479, %v1537, 0
      %v1601 = vsel %vm479, %v1539, 0
      %v1604 = vsel %vm479, %v1541, 0
      %v1607 = vsel %vm479, %v1543, 0
      %v1610 = vsel %vm479, %v1545, 0
      %v1613 = vsel %vm479, %v1547, 0
      %v1616 = vsel %vm479, %v1549, 0
      %v1619 = vsel %vm479, %v1551, 0
      %v1622 = vsel %vm479, %v1553, 0
      %v1625 = vsel %vm479, %v1555, 0
      %v1628 = vsel %vm479, %v1557, 0
      %v1631 = vsel %vm479, %v1556, 0
      %1633 = vmatprep.subr.bf16.mxu0 0
      %1634 = vmatpush1.bf16.msra.mxu0 %v1566
      %1635 = vmatprep.subr.bf16.mxu0 0
      %1636 = vmatpush1.bf16.msra.mxu0 %v1567
      %1637 = vmatprep.subr.bf16.mxu0 0
      %1638 = vmatpush1.bf16.msra.mxu0 0
      %1639 = vmatprep.subr.bf16.mxu0 0
      %1640 = vmatpush1.bf16.msra.mxu0 0
      %1641 = vmatprep.subr.bf16.mxu0 0
      %1642 = vmatpush1.bf16.msra.mxu0 0
      %1643 = vmatprep.subr.bf16.mxu0 0
      %1644 = vmatpush1.bf16.msra.mxu0 0
      %1645 = vmatprep.subr.bf16.mxu0 0
      %1646 = vmatpush1.bf16.msra.mxu0 0
      %1647 = vmatprep.subr.bf16.mxu0 0
      %1648 = vmatpush1.bf16.msra.mxu0 0
      %1649 = vmatprep.subr.bf16.mxu0 0
      %1650 = vmatpush1.bf16.msra.mxu0 0
      %1651 = vmatprep.subr.bf16.mxu0 0
      %1652 = vmatpush1.bf16.msra.mxu0 0
      %1653 = vmatprep.subr.bf16.mxu0 0
      %1654 = vmatpush1.bf16.msra.mxu0 0
      %1655 = vmatprep.subr.bf16.mxu0 0
      %1656 = vmatpush1.bf16.msra.mxu0 0
      %1657 = vmatprep.subr.bf16.mxu0 0
      %1658 = vmatpush1.bf16.msra.mxu0 0
      %1659 = vmatprep.subr.bf16.mxu0 0
      %1660 = vmatpush1.bf16.msra.mxu0 0
      %1661 = vmatprep.subr.bf16.mxu0 0
      %1662 = vmatpush1.bf16.msra.mxu0 0
      %1663 = vmatprep.subr.bf16.mxu0 0
      %1664 = vmatpush1.bf16.msra.mxu0 0
      %1665 = vmatprep.mubr.bf16.mxu0 0
      %1666 = vmatmul.mubr.bf16.gmra.mrb[0].mxu0 %v1571
      %v1667 = vpop.f32.mrb[0].mxu0
      %v1668 = vadd.f32 0.0, %v1667
      %v1669 = vpop.f32.mrb[0].mxu0
      %v1670 = vpop.f32.mrb[0].mxu0
      %v1671 = vadd.f32 0.0, %v1670
      %v1672 = vpop.f32.mrb[0].mxu0
      %1673 = vmatprep.mubr.bf16.mxu0 0
      %1674 = vmatmul.mubr.bf16.gmra.mrb[0].mxu0 %v1574
      %v1675 = vpop.f32.mrb[0].mxu0
      %v1676 = vadd.f32 0.0, %v1675
      %v1677 = vpop.f32.mrb[0].mxu0
      %v1678 = vpop.f32.mrb[0].mxu0
      %v1679 = vadd.f32 0.0, %v1678
      %v1680 = vpop.f32.mrb[0].mxu0
      %1681 = vmatprep.mubr.bf16.mxu0 0
      %1682 = vmatmul.mubr.bf16.gmra.mrb[0].mxu0 %v1577
      %v1683 = vpop.f32.mrb[0].mxu0
      %v1684 = vadd.f32 0.0, %v1683
      %v1685 = vpop.f32.mrb[0].mxu0
      %v1686 = vpop.f32.mrb[0].mxu0
      %v1687 = vadd.f32 0.0, %v1686
      %v1688 = vpop.f32.mrb[0].mxu0
      %1689 = vmatprep.mubr.bf16.mxu0 0
      %1690 = vmatmul.mubr.bf16.gmra.mrb[0].mxu0 %v1580
      %v1691 = vpop.f32.mrb[0].mxu0
      %v1692 = vadd.f32 0.0, %v1691
      %v1693 = vpop.f32.mrb[0].mxu0
      %v1694 = vpop.f32.mrb[0].mxu0
      %v1695 = vadd.f32 0.0, %v1694
      %v1696 = vpop.f32.mrb[0].mxu0
      %1697 = vmatprep.mubr.bf16.mxu0 0
      %1698 = vmatmul.mubr.bf16.gmra.mrb[0].mxu0 %v1583
      %v1699 = vpop.f32.mrb[0].mxu0
      %v1700 = vadd.f32 0.0, %v1699
      %v1701 = vpop.f32.mrb[0].mxu0
      %v1702 = vpop.f32.mrb[0].mxu0
      %v1703 = vadd.f32 0.0, %v1702
      %v1704 = vpop.f32.mrb[0].mxu0
      %1705 = vmatprep.mubr.bf16.mxu0 0
      %1706 = vmatmul.mubr.bf16.gmra.mrb[0].mxu0 %v1586
      %v1707 = vpop.f32.mrb[0].mxu0
      %v1708 = vadd.f32 0.0, %v1707
      %v1709 = vpop.f32.mrb[0].mxu0
      %v1710 = vpop.f32.mrb[0].mxu0
      %v1711 = vadd.f32 0.0, %v1710
      %v1712 = vpop.f32.mrb[0].mxu0
      %1713 = vmatprep.mubr.bf16.mxu0 0
      %1714 = vmatmul.mubr.bf16.gmra.mrb[0].mxu0 %v1589
      %v1715 = vpop.f32.mrb[0].mxu0
      %v1716 = vadd.f32 0.0, %v1715
      %v1717 = vpop.f32.mrb[0].mxu0
      %v1718 = vpop.f32.mrb[0].mxu0
      %v1719 = vadd.f32 0.0, %v1718
      %v1720 = vpop.f32.mrb[0].mxu0
      %1721 = vmatprep.mubr.bf16.mxu0 0
      %1722 = vmatmul.mubr.bf16.gmra.mrb[0].mxu0 %v1592
      %v1723 = vpop.f32.mrb[0].mxu0
      %v1724 = vadd.f32 0.0, %v1723
      %v1725 = vpop.f32.mrb[0].mxu0
      %v1726 = vpop.f32.mrb[0].mxu0
      %v1727 = vadd.f32 0.0, %v1726
      %v1728 = vpop.f32.mrb[0].mxu0
      %1729 = vmatprep.mubr.bf16.mxu0 0
      %1730 = vmatmul.mubr.bf16.gmra.mrb[0].mxu0 %v1595
      %v1731 = vpop.f32.mrb[0].mxu0
      %v1732 = vadd.f32 0.0, %v1731
      %v1733 = vpop.f32.mrb[0].mxu0
      %v1734 = vpop.f32.mrb[0].mxu0
      %v1735 = vadd.f32 0.0, %v1734
      %v1736 = vpop.f32.mrb[0].mxu0
      %1737 = vmatprep.mubr.bf16.mxu0 0
      %1738 = vmatmul.mubr.bf16.gmra.mrb[0].mxu0 %v1598
      %v1739 = vpop.f32.mrb[0].mxu0
      %v1740 = vadd.f32 0.0, %v1739
      %v1741 = vpop.f32.mrb[0].mxu0
      %v1742 = vpop.f32.mrb[0].mxu0
      %v1743 = vadd.f32 0.0, %v1742
      %v1744 = vpop.f32.mrb[0].mxu0
      %1745 = vmatprep.mubr.bf16.mxu0 0
      %1746 = vmatmul.mubr.bf16.gmra.mrb[0].mxu0 %v1601
      %v1747 = vpop.f32.mrb[0].mxu0
      %v1748 = vadd.f32 0.0, %v1747
      %v1749 = vpop.f32.mrb[0].mxu0
      %v1750 = vpop.f32.mrb[0].mxu0
      %v1751 = vadd.f32 0.0, %v1750
      %v1752 = vpop.f32.mrb[0].mxu0
      %1753 = vmatprep.mubr.bf16.mxu0 0
      %1754 = vmatmul.mubr.bf16.gmra.mrb[0].mxu0 %v1604
      %v1755 = vpop.f32.mrb[0].mxu0
      %v1756 = vadd.f32 0.0, %v1755
      %v1757 = vpop.f32.mrb[0].mxu0
      %v1758 = vpop.f32.mrb[0].mxu0
      %v1759 = vadd.f32 0.0, %v1758
      %v1760 = vpop.f32.mrb[0].mxu0
      %1761 = vmatprep.mubr.bf16.mxu0 0
      %1762 = vmatmul.mubr.bf16.gmra.mrb[0].mxu0 %v1607
      %v1763 = vpop.f32.mrb[0].mxu0
      %v1764 = vadd.f32 0.0, %v1763
      %v1765 = vpop.f32.mrb[0].mxu0
      %v1766 = vpop.f32.mrb[0].mxu0
      %v1767 = vadd.f32 0.0, %v1766
      %v1768 = vpop.f32.mrb[0].mxu0
      %1769 = vmatprep.mubr.bf16.mxu0 0
      %1770 = vmatmul.mubr.bf16.gmra.mrb[0].mxu0 %v1610
      %v1771 = vpop.f32.mrb[0].mxu0
      %v1772 = vadd.f32 0.0, %v1771
      %v1773 = vpop.f32.mrb[0].mxu0
      %v1774 = vpop.f32.mrb[0].mxu0
      %v1775 = vadd.f32 0.0, %v1774
      %v1776 = vpop.f32.mrb[0].mxu0
      %1777 = vmatprep.mubr.bf16.mxu0 0
      %1778 = vmatmul.mubr.bf16.gmra.mrb[0].mxu0 %v1613
      %v1779 = vpop.f32.mrb[0].mxu0
      %v1780 = vadd.f32 0.0, %v1779
      %v1781 = vpop.f32.mrb[0].mxu0
      %v1782 = vpop.f32.mrb[0].mxu0
      %v1783 = vadd.f32 0.0, %v1782
      %v1784 = vpop.f32.mrb[0].mxu0
      %1785 = vmatprep.mubr.bf16.mxu0 0
      %1786 = vmatmul.mubr.bf16.gmra.mrb[0].mxu0 %v1616
      %v1787 = vpop.f32.mrb[0].mxu0
      %v1788 = vadd.f32 0.0, %v1787
      %v1789 = vpop.f32.mrb[0].mxu0
      %v1790 = vpop.f32.mrb[0].mxu0
      %v1791 = vadd.f32 0.0, %v1790
      %v1792 = vpop.f32.mrb[0].mxu0
      %1793 = vmatprep.mubr.bf16.mxu0 0
      %1794 = vmatmul.mubr.bf16.gmra.mrb[0].mxu0 %v1619
      %v1795 = vpop.f32.mrb[0].mxu0
      %v1796 = vadd.f32 0.0, %v1795
      %v1797 = vpop.f32.mrb[0].mxu0
      %v1798 = vpop.f32.mrb[0].mxu0
      %v1799 = vadd.f32 0.0, %v1798
      %v1800 = vpop.f32.mrb[0].mxu0
      %1801 = vmatprep.mubr.bf16.mxu0 0
      %1802 = vmatmul.mubr.bf16.gmra.mrb[0].mxu0 %v1622
      %v1803 = vpop.f32.mrb[0].mxu0
      %v1804 = vadd.f32 0.0, %v1803
      %v1805 = vpop.f32.mrb[0].mxu0
      %v1806 = vpop.f32.mrb[0].mxu0
      %v1807 = vadd.f32 0.0, %v1806
      %v1808 = vpop.f32.mrb[0].mxu0
      %1809 = vmatprep.mubr.bf16.mxu0 0
      %1810 = vmatmul.mubr.bf16.gmra.mrb[0].mxu0 %v1625
      %v1811 = vpop.f32.mrb[0].mxu0
      %v1812 = vadd.f32 0.0, %v1811
      %v1813 = vpop.f32.mrb[0].mxu0
      %v1814 = vpop.f32.mrb[0].mxu0
      %v1815 = vadd.f32 0.0, %v1814
      %v1816 = vpop.f32.mrb[0].mxu0
      %1817 = vmatprep.mubr.bf16.mxu0 0
      %1818 = vmatmul.mubr.bf16.gmra.mrb[0].mxu0 %v1628
      %v1819 = vpop.f32.mrb[0].mxu0
      %v1820 = vadd.f32 0.0, %v1819
      %v1821 = vpop.f32.mrb[0].mxu0
      %v1822 = vpop.f32.mrb[0].mxu0
      %v1823 = vadd.f32 0.0, %v1822
      %v1824 = vpop.f32.mrb[0].mxu0
      %1825 = vmatprep.mubr.bf16.mxu0 0
      %1826 = vmatmul.mubr.bf16.gmra.mrb[0].mxu0 %v1631
      %v1827 = vpop.f32.mrb[0].mxu0
      %v1828 = vadd.f32 0.0, %v1827
      %v1829 = vpop.f32.mrb[0].mxu0
      %v1830 = vpop.f32.mrb[0].mxu0
      %v1831 = vpop.f32.mrb[0].mxu0
      %1832 = vdwg.mxu0
      %v1833 = vadd.f32 %v1327, %v1668
      %v1834 = vadd.f32 %v1328, %v1671
      %v1835 = vadd.f32 %v1329, %v1676
      %v1836 = vadd.f32 %v1330, %v1679
      %v1837 = vadd.f32 %v1331, %v1684
      %v1838 = vadd.f32 %v1332, %v1687
      %v1839 = vadd.f32 %v1333, %v1692
      %v1840 = vadd.f32 %v1334, %v1695
      %v1841 = vadd.f32 %v1335, %v1700
      %v1842 = vadd.f32 %v1336, %v1703
      %v1843 = vadd.f32 %v1337, %v1708
      %v1844 = vadd.f32 %v1338, %v1711
      %v1845 = vadd.f32 %v1339, %v1716
      %v1846 = vadd.f32 %v1340, %v1719
      %v1847 = vadd.f32 %v1341, %v1724
      %v1848 = vadd.f32 %v1342, %v1727
      %v1849 = vadd.f32 %v1343, %v1732
      %v1850 = vadd.f32 %v1344, %v1735
      %v1851 = vadd.f32 %v1345, %v1740
      %v1852 = vadd.f32 %v1346, %v1743
      %v1853 = vadd.f32 %v1347, %v1748
      %v1854 = vadd.f32 %v1348, %v1751
      %v1855 = vadd.f32 %v1349, %v1756
      %v1856 = vadd.f32 %v1350, %v1759
      %v1857 = vadd.f32 %v1351, %v1764
      %v1858 = vadd.f32 %v1352, %v1767
      %v1859 = vadd.f32 %v1353, %v1772
      %v1860 = vadd.f32 %v1354, %v1775
      %v1861 = vadd.f32 %v1355, %v1780
      %v1862 = vadd.f32 %v1356, %v1783
      %v1863 = vadd.f32 %v1357, %v1788
      %v1864 = vadd.f32 %v1358, %v1791
      %v1865 = vadd.f32 %v1359, %v1796
      %v1866 = vadd.f32 %v1360, %v1799
      %v1867 = vadd.f32 %v1361, %v1804
      %v1868 = vadd.f32 %v1362, %v1807
      %v1869 = vadd.f32 %v1363, %v1812
      %v1870 = vadd.f32 %v1364, %v1815
      %v1871 = vadd.f32 %v1365, %v1820
      %v1872 = vadd.f32 %v1366, %v1823
      %v1873 = vadd.f32 %v1367, %v1828
      %v1874 = vld [vmem:[%s138 + $0xa8] sm:$0xf]
      %s1875 = scalar_lea.vmem %s1, 64
      %v1876 = vld [vmem:[%s1875] sm:$0xf]
      %v1877 = vld [vmem:[%s1875 + $0x4] sm:$0xf]
      %v1878 = vld [vmem:[%s1875 + $0x8] sm:$0xf]
      %v1879 = vld [vmem:[%s1875 + $0xc] sm:$0xf]
      %v1881 = vunpack.c.l.b16 %v1874
      %v1882 = vpack.c.b16 %v1881, %v1881
      %vm1883 = vsmask.f32 6400
      %v1885 = vshrl.u32 %v1496, 16
      %v1887 = vrot.slane %v1885, 1
      %v1888 = vshll.u32 %v1496, 16
      %v1890 = vrot.slane %v1888, 2
      %v1891 = vor.u32 %v1887, %v1890
      %v1893 = vshrl.u32 %v1497, 16
      %v1895 = vrot.slane %v1893, 1
      %v1896 = vshll.u32 %v1497, 16
      %v1898 = vrot.slane %v1896, 2
      %v1899 = vor.u32 %v1895, %v1898
      %v1900 = vsel %vm1883, %v1891, %v1899
      %v1902 = vshrl.u32 %v1498, 16
      %v1904 = vrot.slane %v1902, 1
      %v1905 = vshll.u32 %v1498, 16
      %v1907 = vrot.slane %v1905, 2
      %v1908 = vor.u32 %v1904, %v1907
      %v1909 = vsel %vm1883, %v1899, %v1908
      %v1911 = vshrl.u32 %v1499, 16
      %v1913 = vrot.slane %v1911, 1
      %v1914 = vshll.u32 %v1499, 16
      %v1916 = vrot.slane %v1914, 2
      %v1917 = vor.u32 %v1913, %v1916
      %v1918 = vsel %vm1883, %v1908, %v1917
      %v1920 = vshrl.u32 %v1500, 16
      %v1922 = vrot.slane %v1920, 1
      %v1923 = vshll.u32 %v1500, 16
      %v1925 = vrot.slane %v1923, 2
      %v1926 = vor.u32 %v1922, %v1925
      %v1927 = vsel %vm1883, %v1917, %v1926
      %v1929 = vshrl.u32 %v1501, 16
      %v1931 = vrot.slane %v1929, 1
      %v1932 = vshll.u32 %v1501, 16
      %v1934 = vrot.slane %v1932, 2
      %v1935 = vor.u32 %v1931, %v1934
      %v1936 = vsel %vm1883, %v1926, %v1935
      %v1938 = vshrl.u32 %v1502, 16
      %v1940 = vrot.slane %v1938, 1
      %v1941 = vshll.u32 %v1502, 16
      %v1943 = vrot.slane %v1941, 2
      %v1944 = vor.u32 %v1940, %v1943
      %v1945 = vsel %vm1883, %v1935, %v1944
      %v1947 = vshrl.u32 %v1503, 16
      %v1949 = vrot.slane %v1947, 1
      %v1950 = vshll.u32 %v1503, 16
      %v1952 = vrot.slane %v1950, 2
      %v1953 = vor.u32 %v1949, %v1952
      %v1954 = vsel %vm1883, %v1944, %v1953
      %v1956 = vshrl.u32 %v1504, 16
      %v1958 = vrot.slane %v1956, 1
      %v1959 = vshll.u32 %v1504, 16
      %v1961 = vrot.slane %v1959, 2
      %v1962 = vor.u32 %v1958, %v1961
      %v1963 = vsel %vm1883, %v1953, %v1962
      %v1965 = vshrl.u32 %v1505, 16
      %v1967 = vrot.slane %v1965, 1
      %v1968 = vshll.u32 %v1505, 16
      %v1970 = vrot.slane %v1968, 2
      %v1971 = vor.u32 %v1967, %v1970
      %v1972 = vsel %vm1883, %v1962, %v1971
      %v1974 = vshrl.u32 %v1506, 16
      %v1976 = vrot.slane %v1974, 1
      %v1977 = vshll.u32 %v1506, 16
      %v1979 = vrot.slane %v1977, 2
      %v1980 = vor.u32 %v1976, %v1979
      %v1981 = vsel %vm1883, %v1971, %v1980
      %v1983 = vshrl.u32 %v1507, 16
      %v1985 = vrot.slane %v1983, 1
      %v1986 = vshll.u32 %v1507, 16
      %v1988 = vrot.slane %v1986, 2
      %v1989 = vor.u32 %v1985, %v1988
      %v1990 = vsel %vm1883, %v1980, %v1989
      %v1992 = vshrl.u32 %v1508, 16
      %v1994 = vrot.slane %v1992, 1
      %v1995 = vshll.u32 %v1508, 16
      %v1997 = vrot.slane %v1995, 2
      %v1998 = vor.u32 %v1994, %v1997
      %v1999 = vsel %vm1883, %v1989, %v1998
      %v2001 = vshrl.u32 %v1509, 16
      %v2003 = vrot.slane %v2001, 1
      %v2004 = vshll.u32 %v1509, 16
      %v2006 = vrot.slane %v2004, 2
      %v2007 = vor.u32 %v2003, %v2006
      %v2008 = vsel %vm1883, %v1998, %v2007
      %v2010 = vshrl.u32 %v1510, 16
      %v2012 = vrot.slane %v2010, 1
      %v2013 = vshll.u32 %v1510, 16
      %v2015 = vrot.slane %v2013, 2
      %v2016 = vor.u32 %v2012, %v2015
      %v2017 = vsel %vm1883, %v2007, %v2016
      %v2019 = vshrl.u32 %v1511, 16
      %v2021 = vrot.slane %v2019, 1
      %v2022 = vshll.u32 %v1511, 16
      %v2024 = vrot.slane %v2022, 2
      %v2025 = vor.u32 %v2021, %v2024
      %v2026 = vsel %vm1883, %v2016, %v2025
      %v2028 = vshrl.u32 %v1512, 16
      %v2030 = vrot.slane %v2028, 1
      %v2031 = vshll.u32 %v1512, 16
      %v2033 = vrot.slane %v2031, 2
      %v2034 = vor.u32 %v2030, %v2033
      %v2035 = vsel %vm1883, %v2025, %v2034
      %v2037 = vshrl.u32 %v1513, 16
      %v2039 = vrot.slane %v2037, 1
      %v2040 = vshll.u32 %v1513, 16
      %v2042 = vrot.slane %v2040, 2
      %v2043 = vor.u32 %v2039, %v2042
      %v2044 = vsel %vm1883, %v2034, %v2043
      %v2046 = vshrl.u32 %v1514, 16
      %v2048 = vrot.slane %v2046, 1
      %v2049 = vshll.u32 %v1514, 16
      %v2051 = vrot.slane %v2049, 2
      %v2052 = vor.u32 %v2048, %v2051
      %v2053 = vsel %vm1883, %v2043, %v2052
      %v2055 = vshrl.u32 %v1515, 16
      %v2057 = vrot.slane %v2055, 1
      %v2058 = vshll.u32 %v1515, 16
      %v2060 = vrot.slane %v2058, 2
      %v2061 = vor.u32 %v2057, %v2060
      %v2062 = vsel %vm1883, %v2052, %v2061
      %v2064 = vshrl.u32 %v1882, 16
      %v2066 = vrot.slane %v2064, 1
      %v2067 = vshll.u32 %v1882, 16
      %v2069 = vrot.slane %v2067, 2
      %v2070 = vor.u32 %v2066, %v2069
      %v2071 = vsel %vm1883, %v2061, %v2070
      %v2076 = vunpack.c.l.b16 %v1876
      %v2077 = vunpack.c.l.b16 %v1877
      %v2078 = vunpack.c.l.b16 %v1878
      %v2079 = vunpack.c.l.b16 %v1879
      %v2080 = vpack.c.b16 %v2077, %v2076
      %v2081 = vpack.c.b16 %v2079, %v2078
      %v2085 = vsel %vm479, %v1900, 0
      %v2088 = vsel %vm479, %v1909, 0
      %v2091 = vsel %vm479, %v1918, 0
      %v2094 = vsel %vm479, %v1927, 0
      %v2097 = vsel %vm479, %v1936, 0
      %v2100 = vsel %vm479, %v1945, 0
      %v2103 = vsel %vm479, %v1954, 0
      %v2106 = vsel %vm479, %v1963, 0
      %v2109 = vsel %vm479, %v1972, 0
      %v2112 = vsel %vm479, %v1981, 0
      %v2115 = vsel %vm479, %v1990, 0
      %v2118 = vsel %vm479, %v1999, 0
      %v2121 = vsel %vm479, %v2008, 0
      %v2124 = vsel %vm479, %v2017, 0
      %v2127 = vsel %vm479, %v2026, 0
      %v2130 = vsel %vm479, %v2035, 0
      %v2133 = vsel %vm479, %v2044, 0
      %v2136 = vsel %vm479, %v2053, 0
      %v2139 = vsel %vm479, %v2062, 0
      %v2142 = vsel %vm479, %v2071, 0
      %v2145 = vsel %vm479, %v2070, 0
      %2147 = vmatprep.subr.bf16.mxu0 0
      %2148 = vmatpush1.bf16.msra.mxu0 %v2080
      %2149 = vmatprep.subr.bf16.mxu0 0
      %2150 = vmatpush1.bf16.msra.mxu0 %v2081
      %2151 = vmatprep.subr.bf16.mxu0 0
      %2152 = vmatpush1.bf16.msra.mxu0 0
      %2153 = vmatprep.subr.bf16.mxu0 0
      %2154 = vmatpush1.bf16.msra.mxu0 0
      %2155 = vmatprep.subr.bf16.mxu0 0
      %2156 = vmatpush1.bf16.msra.mxu0 0
      %2157 = vmatprep.subr.bf16.mxu0 0
      %2158 = vmatpush1.bf16.msra.mxu0 0
      %2159 = vmatprep.subr.bf16.mxu0 0
      %2160 = vmatpush1.bf16.msra.mxu0 0
      %2161 = vmatprep.subr.bf16.mxu0 0
      %2162 = vmatpush1.bf16.msra.mxu0 0
      %2163 = vmatprep.subr.bf16.mxu0 0
      %2164 = vmatpush1.bf16.msra.mxu0 0
      %2165 = vmatprep.subr.bf16.mxu0 0
      %2166 = vmatpush1.bf16.msra.mxu0 0
      %2167 = vmatprep.subr.bf16.mxu0 0
      %2168 = vmatpush1.bf16.msra.mxu0 0
      %2169 = vmatprep.subr.bf16.mxu0 0
      %2170 = vmatpush1.bf16.msra.mxu0 0
      %2171 = vmatprep.subr.bf16.mxu0 0
      %2172 = vmatpush1.bf16.msra.mxu0 0
      %2173 = vmatprep.subr.bf16.mxu0 0
      %2174 = vmatpush1.bf16.msra.mxu0 0
      %2175 = vmatprep.subr.bf16.mxu0 0
      %2176 = vmatpush1.bf16.msra.mxu0 0
      %2177 = vmatprep.subr.bf16.mxu0 0
      %2178 = vmatpush1.bf16.msra.mxu0 0
      %2179 = vmatprep.mubr.bf16.mxu0 0
      %2180 = vmatmul.mubr.bf16.gmra.mrb[0].mxu0 %v2085
      %v2181 = vpop.f32.mrb[0].mxu0
      %v2182 = vadd.f32 0.0, %v2181
      %v2183 = vpop.f32.mrb[0].mxu0
      %v2184 = vpop.f32.mrb[0].mxu0
      %v2185 = vadd.f32 0.0, %v2184
      %v2186 = vpop.f32.mrb[0].mxu0
      %2187 = vmatprep.mubr.bf16.mxu0 0
      %2188 = vmatmul.mubr.bf16.gmra.mrb[0].mxu0 %v2088
      %v2189 = vpop.f32.mrb[0].mxu0
      %v2190 = vadd.f32 0.0, %v2189
      %v2191 = vpop.f32.mrb[0].mxu0
      %v2192 = vpop.f32.mrb[0].mxu0
      %v2193 = vadd.f32 0.0, %v2192
      %v2194 = vpop.f32.mrb[0].mxu0
      %2195 = vmatprep.mubr.bf16.mxu0 0
      %2196 = vmatmul.mubr.bf16.gmra.mrb[0].mxu0 %v2091
      %v2197 = vpop.f32.mrb[0].mxu0
      %v2198 = vadd.f32 0.0, %v2197
      %v2199 = vpop.f32.mrb[0].mxu0
      %v2200 = vpop.f32.mrb[0].mxu0
      %v2201 = vadd.f32 0.0, %v2200
      %v2202 = vpop.f32.mrb[0].mxu0
      %2203 = vmatprep.mubr.bf16.mxu0 0
      %2204 = vmatmul.mubr.bf16.gmra.mrb[0].mxu0 %v2094
      %v2205 = vpop.f32.mrb[0].mxu0
      %v2206 = vadd.f32 0.0, %v2205
      %v2207 = vpop.f32.mrb[0].mxu0
      %v2208 = vpop.f32.mrb[0].mxu0
      %v2209 = vadd.f32 0.0, %v2208
      %v2210 = vpop.f32.mrb[0].mxu0
      %2211 = vmatprep.mubr.bf16.mxu0 0
      %2212 = vmatmul.mubr.bf16.gmra.mrb[0].mxu0 %v2097
      %v2213 = vpop.f32.mrb[0].mxu0
      %v2214 = vadd.f32 0.0, %v2213
      %v2215 = vpop.f32.mrb[0].mxu0
      %v2216 = vpop.f32.mrb[0].mxu0
      %v2217 = vadd.f32 0.0, %v2216
      %v2218 = vpop.f32.mrb[0].mxu0
      %2219 = vmatprep.mubr.bf16.mxu0 0
      %2220 = vmatmul.mubr.bf16.gmra.mrb[0].mxu0 %v2100
      %v2221 = vpop.f32.mrb[0].mxu0
      %v2222 = vadd.f32 0.0, %v2221
      %v2223 = vpop.f32.mrb[0].mxu0
      %v2224 = vpop.f32.mrb[0].mxu0
      %v2225 = vadd.f32 0.0, %v2224
      %v2226 = vpop.f32.mrb[0].mxu0
      %2227 = vmatprep.mubr.bf16.mxu0 0
      %2228 = vmatmul.mubr.bf16.gmra.mrb[0].mxu0 %v2103
      %v2229 = vpop.f32.mrb[0].mxu0
      %v2230 = vadd.f32 0.0, %v2229
      %v2231 = vpop.f32.mrb[0].mxu0
      %v2232 = vpop.f32.mrb[0].mxu0
      %v2233 = vadd.f32 0.0, %v2232
      %v2234 = vpop.f32.mrb[0].mxu0
      %2235 = vmatprep.mubr.bf16.mxu0 0
      %2236 = vmatmul.mubr.bf16.gmra.mrb[0].mxu0 %v2106
      %v2237 = vpop.f32.mrb[0].mxu0
      %v2238 = vadd.f32 0.0, %v2237
      %v2239 = vpop.f32.mrb[0].mxu0
      %v2240 = vpop.f32.mrb[0].mxu0
      %v2241 = vadd.f32 0.0, %v2240
      %v2242 = vpop.f32.mrb[0].mxu0
      %2243 = vmatprep.mubr.bf16.mxu0 0
      %2244 = vmatmul.mubr.bf16.gmra.mrb[0].mxu0 %v2109
      %v2245 = vpop.f32.mrb[0].mxu0
      %v2246 = vadd.f32 0.0, %v2245
      %v2247 = vpop.f32.mrb[0].mxu0
      %v2248 = vpop.f32.mrb[0].mxu0
      %v2249 = vadd.f32 0.0, %v2248
      %v2250 = vpop.f32.mrb[0].mxu0
      %2251 = vmatprep.mubr.bf16.mxu0 0
      %2252 = vmatmul.mubr.bf16.gmra.mrb[0].mxu0 %v2112
      %v2253 = vpop.f32.mrb[0].mxu0
      %v2254 = vadd.f32 0.0, %v2253
      %v2255 = vpop.f32.mrb[0].mxu0
      %v2256 = vpop.f32.mrb[0].mxu0
      %v2257 = vadd.f32 0.0, %v2256
      %v2258 = vpop.f32.mrb[0].mxu0
      %2259 = vmatprep.mubr.bf16.mxu0 0
      %2260 = vmatmul.mubr.bf16.gmra.mrb[0].mxu0 %v2115
      %v2261 = vpop.f32.mrb[0].mxu0
      %v2262 = vadd.f32 0.0, %v2261
      %v2263 = vpop.f32.mrb[0].mxu0
      %v2264 = vpop.f32.mrb[0].mxu0
      %v2265 = vadd.f32 0.0, %v2264
      %v2266 = vpop.f32.mrb[0].mxu0
      %2267 = vmatprep.mubr.bf16.mxu0 0
      %2268 = vmatmul.mubr.bf16.gmra.mrb[0].mxu0 %v2118
      %v2269 = vpop.f32.mrb[0].mxu0
      %v2270 = vadd.f32 0.0, %v2269
      %v2271 = vpop.f32.mrb[0].mxu0
      %v2272 = vpop.f32.mrb[0].mxu0
      %v2273 = vadd.f32 0.0, %v2272
      %v2274 = vpop.f32.mrb[0].mxu0
      %2275 = vmatprep.mubr.bf16.mxu0 0
      %2276 = vmatmul.mubr.bf16.gmra.mrb[0].mxu0 %v2121
      %v2277 = vpop.f32.mrb[0].mxu0
      %v2278 = vadd.f32 0.0, %v2277
      %v2279 = vpop.f32.mrb[0].mxu0
      %v2280 = vpop.f32.mrb[0].mxu0
      %v2281 = vadd.f32 0.0, %v2280
      %v2282 = vpop.f32.mrb[0].mxu0
      %2283 = vmatprep.mubr.bf16.mxu0 0
      %2284 = vmatmul.mubr.bf16.gmra.mrb[0].mxu0 %v2124
      %v2285 = vpop.f32.mrb[0].mxu0
      %v2286 = vadd.f32 0.0, %v2285
      %v2287 = vpop.f32.mrb[0].mxu0
      %v2288 = vpop.f32.mrb[0].mxu0
      %v2289 = vadd.f32 0.0, %v2288
      %v2290 = vpop.f32.mrb[0].mxu0
      %2291 = vmatprep.mubr.bf16.mxu0 0
      %2292 = vmatmul.mubr.bf16.gmra.mrb[0].mxu0 %v2127
      %v2293 = vpop.f32.mrb[0].mxu0
      %v2294 = vadd.f32 0.0, %v2293
      %v2295 = vpop.f32.mrb[0].mxu0
      %v2296 = vpop.f32.mrb[0].mxu0
      %v2297 = vadd.f32 0.0, %v2296
      %v2298 = vpop.f32.mrb[0].mxu0
      %2299 = vmatprep.mubr.bf16.mxu0 0
      %2300 = vmatmul.mubr.bf16.gmra.mrb[0].mxu0 %v2130
      %v2301 = vpop.f32.mrb[0].mxu0
      %v2302 = vadd.f32 0.0, %v2301
      %v2303 = vpop.f32.mrb[0].mxu0
      %v2304 = vpop.f32.mrb[0].mxu0
      %v2305 = vadd.f32 0.0, %v2304
      %v2306 = vpop.f32.mrb[0].mxu0
      %2307 = vmatprep.mubr.bf16.mxu0 0
      %2308 = vmatmul.mubr.bf16.gmra.mrb[0].mxu0 %v2133
      %v2309 = vpop.f32.mrb[0].mxu0
      %v2310 = vadd.f32 0.0, %v2309
      %v2311 = vpop.f32.mrb[0].mxu0
      %v2312 = vpop.f32.mrb[0].mxu0
      %v2313 = vadd.f32 0.0, %v2312
      %v2314 = vpop.f32.mrb[0].mxu0
      %2315 = vmatprep.mubr.bf16.mxu0 0
      %2316 = vmatmul.mubr.bf16.gmra.mrb[0].mxu0 %v2136
      %v2317 = vpop.f32.mrb[0].mxu0
      %v2318 = vadd.f32 0.0, %v2317
      %v2319 = vpop.f32.mrb[0].mxu0
      %v2320 = vpop.f32.mrb[0].mxu0
      %v2321 = vadd.f32 0.0, %v2320
      %v2322 = vpop.f32.mrb[0].mxu0
      %2323 = vmatprep.mubr.bf16.mxu0 0
      %2324 = vmatmul.mubr.bf16.gmra.mrb[0].mxu0 %v2139
      %v2325 = vpop.f32.mrb[0].mxu0
      %v2326 = vadd.f32 0.0, %v2325
      %v2327 = vpop.f32.mrb[0].mxu0
      %v2328 = vpop.f32.mrb[0].mxu0
      %v2329 = vadd.f32 0.0, %v2328
      %v2330 = vpop.f32.mrb[0].mxu0
      %2331 = vmatprep.mubr.bf16.mxu0 0
      %2332 = vmatmul.mubr.bf16.gmra.mrb[0].mxu0 %v2142
      %v2333 = vpop.f32.mrb[0].mxu0
      %v2334 = vadd.f32 0.0, %v2333
      %v2335 = vpop.f32.mrb[0].mxu0
      %v2336 = vpop.f32.mrb[0].mxu0
      %v2337 = vadd.f32 0.0, %v2336
      %v2338 = vpop.f32.mrb[0].mxu0
      %2339 = vmatprep.mubr.bf16.mxu0 0
      %2340 = vmatmul.mubr.bf16.gmra.mrb[0].mxu0 %v2145
      %v2341 = vpop.f32.mrb[0].mxu0
      %v2342 = vadd.f32 0.0, %v2341
      %v2343 = vpop.f32.mrb[0].mxu0
      %v2344 = vpop.f32.mrb[0].mxu0
      %v2345 = vpop.f32.mrb[0].mxu0
      %2346 = vdwg.mxu0
      %v2347 = vadd.f32 %v1833, %v2182
      %v2348 = vadd.f32 %v1834, %v2185
      %v2349 = vadd.f32 %v1835, %v2190
      %v2350 = vadd.f32 %v1836, %v2193
      %v2351 = vadd.f32 %v1837, %v2198
      %v2352 = vadd.f32 %v1838, %v2201
      %v2353 = vadd.f32 %v1839, %v2206
      %v2354 = vadd.f32 %v1840, %v2209
      %v2355 = vadd.f32 %v1841, %v2214
      %v2356 = vadd.f32 %v1842, %v2217
      %v2357 = vadd.f32 %v1843, %v2222
      %v2358 = vadd.f32 %v1844, %v2225
      %v2359 = vadd.f32 %v1845, %v2230
      %v2360 = vadd.f32 %v1846, %v2233
      %v2361 = vadd.f32 %v1847, %v2238
      %v2362 = vadd.f32 %v1848, %v2241
      %v2363 = vadd.f32 %v1849, %v2246
      %v2364 = vadd.f32 %v1850, %v2249
      %v2365 = vadd.f32 %v1851, %v2254
      %v2366 = vadd.f32 %v1852, %v2257
      %v2367 = vadd.f32 %v1853, %v2262
      %v2368 = vadd.f32 %v1854, %v2265
      %v2369 = vadd.f32 %v1855, %v2270
      %v2370 = vadd.f32 %v1856, %v2273
      %v2371 = vadd.f32 %v1857, %v2278
      %v2372 = vadd.f32 %v1858, %v2281
      %v2373 = vadd.f32 %v1859, %v2286
      %v2374 = vadd.f32 %v1860, %v2289
      %v2375 = vadd.f32 %v1861, %v2294
      %v2376 = vadd.f32 %v1862, %v2297
      %v2377 = vadd.f32 %v1863, %v2302
      %v2378 = vadd.f32 %v1864, %v2305
      %v2379 = vadd.f32 %v1865, %v2310
      %v2380 = vadd.f32 %v1866, %v2313
      %v2381 = vadd.f32 %v1867, %v2318
      %v2382 = vadd.f32 %v1868, %v2321
      %v2383 = vadd.f32 %v1869, %v2326
      %v2384 = vadd.f32 %v1870, %v2329
      %v2385 = vadd.f32 %v1871, %v2334
      %v2386 = vadd.f32 %v1872, %v2337
      %v2387 = vadd.f32 %v1873, %v2342
      %v2388 = vld [vmem:[%s138 + $0x8] sm:$0xc]
      %s2389 = scalar_lea.vmem %s1, 80
      %v2390 = vld [vmem:[%s2389] sm:$0xf]
      %v2391 = vld [vmem:[%s2389 + $0x4] sm:$0xf]
      %v2392 = vld [vmem:[%s2389 + $0x8] sm:$0xf]
      %v2393 = vld [vmem:[%s2389 + $0xc] sm:$0xf]
      %v2395 = vunpack.c.l.b16 %v2388
      %v2396 = vpack.c.b16 %v1456, %v2395
      %vm2397 = vcmask 1045504
      %v2398 = vrot.slane %v2396, 2
      %v2399 = vrot.slane %v1497, 2
      %v2400 = vsel %vm2397, %v2398, %v2399
      %v2401 = vrot.slane %v1498, 2
      %v2402 = vsel %vm2397, %v2399, %v2401
      %v2403 = vrot.slane %v1499, 2
      %v2404 = vsel %vm2397, %v2401, %v2403
      %v2405 = vrot.slane %v1500, 2
      %v2406 = vsel %vm2397, %v2403, %v2405
      %v2407 = vrot.slane %v1501, 2
      %v2408 = vsel %vm2397, %v2405, %v2407
      %v2409 = vrot.slane %v1502, 2
      %v2410 = vsel %vm2397, %v2407, %v2409
      %v2411 = vrot.slane %v1503, 2
      %v2412 = vsel %vm2397, %v2409, %v2411
      %v2413 = vrot.slane %v1504, 2
      %v2414 = vsel %vm2397, %v2411, %v2413
      %v2415 = vrot.slane %v1505, 2
      %v2416 = vsel %vm2397, %v2413, %v2415
      %v2417 = vrot.slane %v1506, 2
      %v2418 = vsel %vm2397, %v2415, %v2417
      %v2419 = vrot.slane %v1507, 2
      %v2420 = vsel %vm2397, %v2417, %v2419
      %v2421 = vrot.slane %v1508, 2
      %v2422 = vsel %vm2397, %v2419, %v2421
      %v2423 = vrot.slane %v1509, 2
      %v2424 = vsel %vm2397, %v2421, %v2423
      %v2425 = vrot.slane %v1510, 2
      %v2426 = vsel %vm2397, %v2423, %v2425
      %v2427 = vrot.slane %v1511, 2
      %v2428 = vsel %vm2397, %v2425, %v2427
      %v2429 = vrot.slane %v1512, 2
      %v2430 = vsel %vm2397, %v2427, %v2429
      %v2431 = vrot.slane %v1513, 2
      %v2432 = vsel %vm2397, %v2429, %v2431
      %v2433 = vrot.slane %v1514, 2
      %v2434 = vsel %vm2397, %v2431, %v2433
      %v2435 = vrot.slane %v1515, 2
      %v2436 = vsel %vm2397, %v2433, %v2435
      %v2437 = vrot.slane %v1882, 2
      %v2438 = vsel %vm2397, %v2435, %v2437
      %v2443 = vunpack.c.l.b16 %v2390
      %v2444 = vunpack.c.l.b16 %v2391
      %v2445 = vunpack.c.l.b16 %v2392
      %v2446 = vunpack.c.l.b16 %v2393
      %v2447 = vpack.c.b16 %v2444, %v2443
      %v2448 = vpack.c.b16 %v2446, %v2445
      %v2452 = vsel %vm479, %v2400, 0
      %v2455 = vsel %vm479, %v2402, 0
      %v2458 = vsel %vm479, %v2404, 0
      %v2461 = vsel %vm479, %v2406, 0
      %v2464 = vsel %vm479, %v2408, 0
      %v2467 = vsel %vm479, %v2410, 0
      %v2470 = vsel %vm479, %v2412, 0
      %v2473 = vsel %vm479, %v2414, 0
      %v2476 = vsel %vm479, %v2416, 0
      %v2479 = vsel %vm479, %v2418, 0
      %v2482 = vsel %vm479, %v2420, 0
      %v2485 = vsel %vm479, %v2422, 0
      %v2488 = vsel %vm479, %v2424, 0
      %v2491 = vsel %vm479, %v2426, 0
      %v2494 = vsel %vm479, %v2428, 0
      %v2497 = vsel %vm479, %v2430, 0
      %v2500 = vsel %vm479, %v2432, 0
      %v2503 = vsel %vm479, %v2434, 0
      %v2506 = vsel %vm479, %v2436, 0
      %v2509 = vsel %vm479, %v2438, 0
      %v2512 = vsel %vm479, %v2437, 0
      %2514 = vmatprep.subr.bf16.mxu0 0
      %2515 = vmatpush1.bf16.msra.mxu0 %v2447
      %2516 = vmatprep.subr.bf16.mxu0 0
      %2517 = vmatpush1.bf16.msra.mxu0 %v2448
      %2518 = vmatprep.subr.bf16.mxu0 0
      %2519 = vmatpush1.bf16.msra.mxu0 0
      %2520 = vmatprep.subr.bf16.mxu0 0
      %2521 = vmatpush1.bf16.msra.mxu0 0
      %2522 = vmatprep.subr.bf16.mxu0 0
      %2523 = vmatpush1.bf16.msra.mxu0 0
      %2524 = vmatprep.subr.bf16.mxu0 0
      %2525 = vmatpush1.bf16.msra.mxu0 0
      %2526 = vmatprep.subr.bf16.mxu0 0
      %2527 = vmatpush1.bf16.msra.mxu0 0
      %2528 = vmatprep.subr.bf16.mxu0 0
      %2529 = vmatpush1.bf16.msra.mxu0 0
      %2530 = vmatprep.subr.bf16.mxu0 0
      %2531 = vmatpush1.bf16.msra.mxu0 0
      %2532 = vmatprep.subr.bf16.mxu0 0
      %2533 = vmatpush1.bf16.msra.mxu0 0
      %2534 = vmatprep.subr.bf16.mxu0 0
      %2535 = vmatpush1.bf16.msra.mxu0 0
      %2536 = vmatprep.subr.bf16.mxu0 0
      %2537 = vmatpush1.bf16.msra.mxu0 0
      %2538 = vmatprep.subr.bf16.mxu0 0
      %2539 = vmatpush1.bf16.msra.mxu0 0
      %2540 = vmatprep.subr.bf16.mxu0 0
      %2541 = vmatpush1.bf16.msra.mxu0 0
      %2542 = vmatprep.subr.bf16.mxu0 0
      %2543 = vmatpush1.bf16.msra.mxu0 0
      %2544 = vmatprep.subr.bf16.mxu0 0
      %2545 = vmatpush1.bf16.msra.mxu0 0
      %2546 = vmatprep.mubr.bf16.mxu0 0
      %2547 = vmatmul.mubr.bf16.gmra.mrb[0].mxu0 %v2452
      %v2548 = vpop.f32.mrb[0].mxu0
      %v2549 = vadd.f32 0.0, %v2548
      %v2550 = vpop.f32.mrb[0].mxu0
      %v2551 = vpop.f32.mrb[0].mxu0
      %v2552 = vadd.f32 0.0, %v2551
      %v2553 = vpop.f32.mrb[0].mxu0
      %2554 = vmatprep.mubr.bf16.mxu0 0
      %2555 = vmatmul.mubr.bf16.gmra.mrb[0].mxu0 %v2455
      %v2556 = vpop.f32.mrb[0].mxu0
      %v2557 = vadd.f32 0.0, %v2556
      %v2558 = vpop.f32.mrb[0].mxu0
      %v2559 = vpop.f32.mrb[0].mxu0
      %v2560 = vadd.f32 0.0, %v2559
      %v2561 = vpop.f32.mrb[0].mxu0
      %2562 = vmatprep.mubr.bf16.mxu0 0
      %2563 = vmatmul.mubr.bf16.gmra.mrb[0].mxu0 %v2458
      %v2564 = vpop.f32.mrb[0].mxu0
      %v2565 = vadd.f32 0.0, %v2564
      %v2566 = vpop.f32.mrb[0].mxu0
      %v2567 = vpop.f32.mrb[0].mxu0
      %v2568 = vadd.f32 0.0, %v2567
      %v2569 = vpop.f32.mrb[0].mxu0
      %2570 = vmatprep.mubr.bf16.mxu0 0
      %2571 = vmatmul.mubr.bf16.gmra.mrb[0].mxu0 %v2461
      %v2572 = vpop.f32.mrb[0].mxu0
      %v2573 = vadd.f32 0.0, %v2572
      %v2574 = vpop.f32.mrb[0].mxu0
      %v2575 = vpop.f32.mrb[0].mxu0
      %v2576 = vadd.f32 0.0, %v2575
      %v2577 = vpop.f32.mrb[0].mxu0
      %2578 = vmatprep.mubr.bf16.mxu0 0
      %2579 = vmatmul.mubr.bf16.gmra.mrb[0].mxu0 %v2464
      %v2580 = vpop.f32.mrb[0].mxu0
      %v2581 = vadd.f32 0.0, %v2580
      %v2582 = vpop.f32.mrb[0].mxu0
      %v2583 = vpop.f32.mrb[0].mxu0
      %v2584 = vadd.f32 0.0, %v2583
      %v2585 = vpop.f32.mrb[0].mxu0
      %2586 = vmatprep.mubr.bf16.mxu0 0
      %2587 = vmatmul.mubr.bf16.gmra.mrb[0].mxu0 %v2467
      %v2588 = vpop.f32.mrb[0].mxu0
      %v2589 = vadd.f32 0.0, %v2588
      %v2590 = vpop.f32.mrb[0].mxu0
      %v2591 = vpop.f32.mrb[0].mxu0
      %v2592 = vadd.f32 0.0, %v2591
      %v2593 = vpop.f32.mrb[0].mxu0
      %2594 = vmatprep.mubr.bf16.mxu0 0
      %2595 = vmatmul.mubr.bf16.gmra.mrb[0].mxu0 %v2470
      %v2596 = vpop.f32.mrb[0].mxu0
      %v2597 = vadd.f32 0.0, %v2596
      %v2598 = vpop.f32.mrb[0].mxu0
      %v2599 = vpop.f32.mrb[0].mxu0
      %v2600 = vadd.f32 0.0, %v2599
      %v2601 = vpop.f32.mrb[0].mxu0
      %2602 = vmatprep.mubr.bf16.mxu0 0
      %2603 = vmatmul.mubr.bf16.gmra.mrb[0].mxu0 %v2473
      %v2604 = vpop.f32.mrb[0].mxu0
      %v2605 = vadd.f32 0.0, %v2604
      %v2606 = vpop.f32.mrb[0].mxu0
      %v2607 = vpop.f32.mrb[0].mxu0
      %v2608 = vadd.f32 0.0, %v2607
      %v2609 = vpop.f32.mrb[0].mxu0
      %2610 = vmatprep.mubr.bf16.mxu0 0
      %2611 = vmatmul.mubr.bf16.gmra.mrb[0].mxu0 %v2476
      %v2612 = vpop.f32.mrb[0].mxu0
      %v2613 = vadd.f32 0.0, %v2612
      %v2614 = vpop.f32.mrb[0].mxu0
      %v2615 = vpop.f32.mrb[0].mxu0
      %v2616 = vadd.f32 0.0, %v2615
      %v2617 = vpop.f32.mrb[0].mxu0
      %2618 = vmatprep.mubr.bf16.mxu0 0
      %2619 = vmatmul.mubr.bf16.gmra.mrb[0].mxu0 %v2479
      %v2620 = vpop.f32.mrb[0].mxu0
      %v2621 = vadd.f32 0.0, %v2620
      %v2622 = vpop.f32.mrb[0].mxu0
      %v2623 = vpop.f32.mrb[0].mxu0
      %v2624 = vadd.f32 0.0, %v2623
      %v2625 = vpop.f32.mrb[0].mxu0
      %2626 = vmatprep.mubr.bf16.mxu0 0
      %2627 = vmatmul.mubr.bf16.gmra.mrb[0].mxu0 %v2482
      %v2628 = vpop.f32.mrb[0].mxu0
      %v2629 = vadd.f32 0.0, %v2628
      %v2630 = vpop.f32.mrb[0].mxu0
      %v2631 = vpop.f32.mrb[0].mxu0
      %v2632 = vadd.f32 0.0, %v2631
      %v2633 = vpop.f32.mrb[0].mxu0
      %2634 = vmatprep.mubr.bf16.mxu0 0
      %2635 = vmatmul.mubr.bf16.gmra.mrb[0].mxu0 %v2485
      %v2636 = vpop.f32.mrb[0].mxu0
      %v2637 = vadd.f32 0.0, %v2636
      %v2638 = vpop.f32.mrb[0].mxu0
      %v2639 = vpop.f32.mrb[0].mxu0
      %v2640 = vadd.f32 0.0, %v2639
      %v2641 = vpop.f32.mrb[0].mxu0
      %2642 = vmatprep.mubr.bf16.mxu0 0
      %2643 = vmatmul.mubr.bf16.gmra.mrb[0].mxu0 %v2488
      %v2644 = vpop.f32.mrb[0].mxu0
      %v2645 = vadd.f32 0.0, %v2644
      %v2646 = vpop.f32.mrb[0].mxu0
      %v2647 = vpop.f32.mrb[0].mxu0
      %v2648 = vadd.f32 0.0, %v2647
      %v2649 = vpop.f32.mrb[0].mxu0
      %2650 = vmatprep.mubr.bf16.mxu0 0
      %2651 = vmatmul.mubr.bf16.gmra.mrb[0].mxu0 %v2491
      %v2652 = vpop.f32.mrb[0].mxu0
      %v2653 = vadd.f32 0.0, %v2652
      %v2654 = vpop.f32.mrb[0].mxu0
      %v2655 = vpop.f32.mrb[0].mxu0
      %v2656 = vadd.f32 0.0, %v2655
      %v2657 = vpop.f32.mrb[0].mxu0
      %2658 = vmatprep.mubr.bf16.mxu0 0
      %2659 = vmatmul.mubr.bf16.gmra.mrb[0].mxu0 %v2494
      %v2660 = vpop.f32.mrb[0].mxu0
      %v2661 = vadd.f32 0.0, %v2660
      %v2662 = vpop.f32.mrb[0].mxu0
      %v2663 = vpop.f32.mrb[0].mxu0
      %v2664 = vadd.f32 0.0, %v2663
      %v2665 = vpop.f32.mrb[0].mxu0
      %2666 = vmatprep.mubr.bf16.mxu0 0
      %2667 = vmatmul.mubr.bf16.gmra.mrb[0].mxu0 %v2497
      %v2668 = vpop.f32.mrb[0].mxu0
      %v2669 = vadd.f32 0.0, %v2668
      %v2670 = vpop.f32.mrb[0].mxu0
      %v2671 = vpop.f32.mrb[0].mxu0
      %v2672 = vadd.f32 0.0, %v2671
      %v2673 = vpop.f32.mrb[0].mxu0
      %2674 = vmatprep.mubr.bf16.mxu0 0
      %2675 = vmatmul.mubr.bf16.gmra.mrb[0].mxu0 %v2500
      %v2676 = vpop.f32.mrb[0].mxu0
      %v2677 = vadd.f32 0.0, %v2676
      %v2678 = vpop.f32.mrb[0].mxu0
      %v2679 = vpop.f32.mrb[0].mxu0
      %v2680 = vadd.f32 0.0, %v2679
      %v2681 = vpop.f32.mrb[0].mxu0
      %2682 = vmatprep.mubr.bf16.mxu0 0
      %2683 = vmatmul.mubr.bf16.gmra.mrb[0].mxu0 %v2503
      %v2684 = vpop.f32.mrb[0].mxu0
      %v2685 = vadd.f32 0.0, %v2684
      %v2686 = vpop.f32.mrb[0].mxu0
      %v2687 = vpop.f32.mrb[0].mxu0
      %v2688 = vadd.f32 0.0, %v2687
      %v2689 = vpop.f32.mrb[0].mxu0
      %2690 = vmatprep.mubr.bf16.mxu0 0
      %2691 = vmatmul.mubr.bf16.gmra.mrb[0].mxu0 %v2506
      %v2692 = vpop.f32.mrb[0].mxu0
      %v2693 = vadd.f32 0.0, %v2692
      %v2694 = vpop.f32.mrb[0].mxu0
      %v2695 = vpop.f32.mrb[0].mxu0
      %v2696 = vadd.f32 0.0, %v2695
      %v2697 = vpop.f32.mrb[0].mxu0
      %2698 = vmatprep.mubr.bf16.mxu0 0
      %2699 = vmatmul.mubr.bf16.gmra.mrb[0].mxu0 %v2509
      %v2700 = vpop.f32.mrb[0].mxu0
      %v2701 = vadd.f32 0.0, %v2700
      %v2702 = vpop.f32.mrb[0].mxu0
      %v2703 = vpop.f32.mrb[0].mxu0
      %v2704 = vadd.f32 0.0, %v2703
      %v2705 = vpop.f32.mrb[0].mxu0
      %2706 = vmatprep.mubr.bf16.mxu0 0
      %2707 = vmatmul.mubr.bf16.gmra.mrb[0].mxu0 %v2512
      %v2708 = vpop.f32.mrb[0].mxu0
      %v2709 = vadd.f32 0.0, %v2708
      %v2710 = vpop.f32.mrb[0].mxu0
      %v2711 = vpop.f32.mrb[0].mxu0
      %v2712 = vpop.f32.mrb[0].mxu0
      %2713 = vdwg.mxu0
      %v2714 = vadd.f32 %v2347, %v2549
      %v2715 = vadd.f32 %v2348, %v2552
      %v2716 = vadd.f32 %v2349, %v2557
      %v2717 = vadd.f32 %v2350, %v2560
      %v2718 = vadd.f32 %v2351, %v2565
      %v2719 = vadd.f32 %v2352, %v2568
      %v2720 = vadd.f32 %v2353, %v2573
      %v2721 = vadd.f32 %v2354, %v2576
      %v2722 = vadd.f32 %v2355, %v2581
      %v2723 = vadd.f32 %v2356, %v2584
      %v2724 = vadd.f32 %v2357, %v2589
      %v2725 = vadd.f32 %v2358, %v2592
      %v2726 = vadd.f32 %v2359, %v2597
      %v2727 = vadd.f32 %v2360, %v2600
      %v2728 = vadd.f32 %v2361, %v2605
      %v2729 = vadd.f32 %v2362, %v2608
      %v2730 = vadd.f32 %v2363, %v2613
      %v2731 = vadd.f32 %v2364, %v2616
      %v2732 = vadd.f32 %v2365, %v2621
      %v2733 = vadd.f32 %v2366, %v2624
      %v2734 = vadd.f32 %v2367, %v2629
      %v2735 = vadd.f32 %v2368, %v2632
      %v2736 = vadd.f32 %v2369, %v2637
      %v2737 = vadd.f32 %v2370, %v2640
      %v2738 = vadd.f32 %v2371, %v2645
      %v2739 = vadd.f32 %v2372, %v2648
      %v2740 = vadd.f32 %v2373, %v2653
      %v2741 = vadd.f32 %v2374, %v2656
      %v2742 = vadd.f32 %v2375, %v2661
      %v2743 = vadd.f32 %v2376, %v2664
      %v2744 = vadd.f32 %v2377, %v2669
      %v2745 = vadd.f32 %v2378, %v2672
      %v2746 = vadd.f32 %v2379, %v2677
      %v2747 = vadd.f32 %v2380, %v2680
      %v2748 = vadd.f32 %v2381, %v2685
      %v2749 = vadd.f32 %v2382, %v2688
      %v2750 = vadd.f32 %v2383, %v2693
      %v2751 = vadd.f32 %v2384, %v2696
      %v2752 = vadd.f32 %v2385, %v2701
      %v2753 = vadd.f32 %v2386, %v2704
      %v2754 = vadd.f32 %v2387, %v2709
      %v2755 = vld [vmem:[%s138 + $0x10] sm:$0xc]
      %v2756 = vld [vmem:[%s138 + $0x14] sm:$0xf]
      %v2757 = vld [vmem:[%s138 + $0x18] sm:$0xf]
      %v2758 = vld [vmem:[%s138 + $0x1c] sm:$0xf]
      %v2759 = vld [vmem:[%s138 + $0x20] sm:$0xf]
      %v2760 = vld [vmem:[%s138 + $0x24] sm:$0xf]
      %v2761 = vld [vmem:[%s138 + $0x28] sm:$0xf]
      %v2762 = vld [vmem:[%s138 + $0x2c] sm:$0xf]
      %v2763 = vld [vmem:[%s138 + $0x30] sm:$0xf]
      %v2764 = vld [vmem:[%s138 + $0x34] sm:$0xf]
      %v2765 = vld [vmem:[%s138 + $0x38] sm:$0xf]
      %v2766 = vld [vmem:[%s138 + $0x3c] sm:$0xf]
      %v2767 = vld [vmem:[%s138 + $0x40] sm:$0xf]
      %v2768 = vld [vmem:[%s138 + $0x44] sm:$0xf]
      %v2769 = vld [vmem:[%s138 + $0x48] sm:$0xf]
      %v2770 = vld [vmem:[%s138 + $0x4c] sm:$0xf]
      %v2771 = vld [vmem:[%s138 + $0x50] sm:$0xf]
      %v2772 = vld [vmem:[%s138 + $0x54] sm:$0xf]
      %v2773 = vld [vmem:[%s138 + $0x58] sm:$0xf]
      %v2774 = vld [vmem:[%s138 + $0x5c] sm:$0xf]
      %v2775 = vld [vmem:[%s138 + $0x60] sm:$0xf]
      %v2776 = vld [vmem:[%s138 + $0x64] sm:$0xf]
      %v2777 = vld [vmem:[%s138 + $0x68] sm:$0xf]
      %v2778 = vld [vmem:[%s138 + $0x6c] sm:$0xf]
      %v2779 = vld [vmem:[%s138 + $0x70] sm:$0xf]
      %v2780 = vld [vmem:[%s138 + $0x74] sm:$0xf]
      %v2781 = vld [vmem:[%s138 + $0x78] sm:$0xf]
      %v2782 = vld [vmem:[%s138 + $0x7c] sm:$0xf]
      %v2783 = vld [vmem:[%s138 + $0x80] sm:$0xf]
      %v2784 = vld [vmem:[%s138 + $0x84] sm:$0xf]
      %v2785 = vld [vmem:[%s138 + $0x88] sm:$0xf]
      %v2786 = vld [vmem:[%s138 + $0x8c] sm:$0xf]
      %v2787 = vld [vmem:[%s138 + $0x90] sm:$0xf]
      %v2788 = vld [vmem:[%s138 + $0x94] sm:$0xf]
      %v2789 = vld [vmem:[%s138 + $0x98] sm:$0xf]
      %v2790 = vld [vmem:[%s138 + $0x9c] sm:$0xf]
      %v2791 = vld [vmem:[%s138 + $0xa0] sm:$0xf]
      %v2792 = vld [vmem:[%s138 + $0xa4] sm:$0xf]
      %v2793 = vld [vmem:[%s138 + $0xa8] sm:$0xf]
      %v2794 = vld [vmem:[%s138 + $0xac] sm:$0xf]
      %v2795 = vld [vmem:[%s138 + $0xb0] sm:$0xf]
      %s2796 = scalar_lea.vmem %s1, 96
      %v2797 = vld [vmem:[%s2796] sm:$0xf]
      %v2798 = vld [vmem:[%s2796 + $0x4] sm:$0xf]
      %v2799 = vld [vmem:[%s2796 + $0x8] sm:$0xf]
      %v2800 = vld [vmem:[%s2796 + $0xc] sm:$0xf]
      %v2842 = vunpack.c.l.b16 %v2755
      %v2843 = vunpack.c.l.b16 %v2756
      %v2844 = vunpack.c.l.b16 %v2757
      %v2845 = vunpack.c.l.b16 %v2758
      %v2846 = vunpack.c.l.b16 %v2759
      %v2847 = vunpack.c.l.b16 %v2760
      %v2848 = vunpack.c.l.b16 %v2761
      %v2849 = vunpack.c.l.b16 %v2762
      %v2850 = vunpack.c.l.b16 %v2763
      %v2851 = vunpack.c.l.b16 %v2764
      %v2852 = vunpack.c.l.b16 %v2765
      %v2853 = vunpack.c.l.b16 %v2766
      %v2854 = vunpack.c.l.b16 %v2767
      %v2855 = vunpack.c.l.b16 %v2768
      %v2856 = vunpack.c.l.b16 %v2769
      %v2857 = vunpack.c.l.b16 %v2770
      %v2858 = vunpack.c.l.b16 %v2771
      %v2859 = vunpack.c.l.b16 %v2772
      %v2860 = vunpack.c.l.b16 %v2773
      %v2861 = vunpack.c.l.b16 %v2774
      %v2862 = vunpack.c.l.b16 %v2775
      %v2863 = vunpack.c.l.b16 %v2776
      %v2864 = vunpack.c.l.b16 %v2777
      %v2865 = vunpack.c.l.b16 %v2778
      %v2866 = vunpack.c.l.b16 %v2779
      %v2867 = vunpack.c.l.b16 %v2780
      %v2868 = vunpack.c.l.b16 %v2781
      %v2869 = vunpack.c.l.b16 %v2782
      %v2870 = vunpack.c.l.b16 %v2783
      %v2871 = vunpack.c.l.b16 %v2784
      %v2872 = vunpack.c.l.b16 %v2785
      %v2873 = vunpack.c.l.b16 %v2786
      %v2874 = vunpack.c.l.b16 %v2787
      %v2875 = vunpack.c.l.b16 %v2788
      %v2876 = vunpack.c.l.b16 %v2789
      %v2877 = vunpack.c.l.b16 %v2790
      %v2878 = vunpack.c.l.b16 %v2791
      %v2879 = vunpack.c.l.b16 %v2792
      %v2880 = vunpack.c.l.b16 %v2793
      %v2881 = vunpack.c.l.b16 %v2794
      %v2882 = vunpack.c.l.b16 %v2795
      %v2883 = vpack.c.b16 %v2843, %v2842
      %v2884 = vpack.c.b16 %v2845, %v2844
      %v2885 = vpack.c.b16 %v2847, %v2846
      %v2886 = vpack.c.b16 %v2849, %v2848
      %v2887 = vpack.c.b16 %v2851, %v2850
      %v2888 = vpack.c.b16 %v2853, %v2852
      %v2889 = vpack.c.b16 %v2855, %v2854
      %v2890 = vpack.c.b16 %v2857, %v2856
      %v2891 = vpack.c.b16 %v2859, %v2858
      %v2892 = vpack.c.b16 %v2861, %v2860
      %v2893 = vpack.c.b16 %v2863, %v2862
      %v2894 = vpack.c.b16 %v2865, %v2864
      %v2895 = vpack.c.b16 %v2867, %v2866
      %v2896 = vpack.c.b16 %v2869, %v2868
      %v2897 = vpack.c.b16 %v2871, %v2870
      %v2898 = vpack.c.b16 %v2873, %v2872
      %v2899 = vpack.c.b16 %v2875, %v2874
      %v2900 = vpack.c.b16 %v2877, %v2876
      %v2901 = vpack.c.b16 %v2879, %v2878
      %v2902 = vpack.c.b16 %v2881, %v2880
      %v2903 = vpack.c.b16 %v2882, %v2882
      %v2904 = vrot.slane %v2883, 2
      %v2905 = vrot.slane %v2884, 2
      %v2906 = vsel %vm2397, %v2904, %v2905
      %v2907 = vrot.slane %v2885, 2
      %v2908 = vsel %vm2397, %v2905, %v2907
      %v2909 = vrot.slane %v2886, 2
      %v2910 = vsel %vm2397, %v2907, %v2909
      %v2911 = vrot.slane %v2887, 2
      %v2912 = vsel %vm2397, %v2909, %v2911
      %v2913 = vrot.slane %v2888, 2
      %v2914 = vsel %vm2397, %v2911, %v2913
      %v2915 = vrot.slane %v2889, 2
      %v2916 = vsel %vm2397, %v2913, %v2915
      %v2917 = vrot.slane %v2890, 2
      %v2918 = vsel %vm2397, %v2915, %v2917
      %v2919 = vrot.slane %v2891, 2
      %v2920 = vsel %vm2397, %v2917, %v2919
      %v2921 = vrot.slane %v2892, 2
      %v2922 = vsel %vm2397, %v2919, %v2921
      %v2923 = vrot.slane %v2893, 2
      %v2924 = vsel %vm2397, %v2921, %v2923
      %v2925 = vrot.slane %v2894, 2
      %v2926 = vsel %vm2397, %v2923, %v2925
      %v2927 = vrot.slane %v2895, 2
      %v2928 = vsel %vm2397, %v2925, %v2927
      %v2929 = vrot.slane %v2896, 2
      %v2930 = vsel %vm2397, %v2927, %v2929
      %v2931 = vrot.slane %v2897, 2
      %v2932 = vsel %vm2397, %v2929, %v2931
      %v2933 = vrot.slane %v2898, 2
      %v2934 = vsel %vm2397, %v2931, %v2933
      %v2935 = vrot.slane %v2899, 2
      %v2936 = vsel %vm2397, %v2933, %v2935
      %v2937 = vrot.slane %v2900, 2
      %v2938 = vsel %vm2397, %v2935, %v2937
      %v2939 = vrot.slane %v2901, 2
      %v2940 = vsel %vm2397, %v2937, %v2939
      %v2941 = vrot.slane %v2902, 2
      %v2942 = vsel %vm2397, %v2939, %v2941
      %v2943 = vrot.slane %v2903, 2
      %v2944 = vsel %vm2397, %v2941, %v2943
      %v2949 = vunpack.c.l.b16 %v2797
      %v2950 = vunpack.c.l.b16 %v2798
      %v2951 = vunpack.c.l.b16 %v2799
      %v2952 = vunpack.c.l.b16 %v2800
      %v2953 = vpack.c.b16 %v2950, %v2949
      %v2954 = vpack.c.b16 %v2952, %v2951
      %v2958 = vsel %vm479, %v2906, 0
      %v2961 = vsel %vm479, %v2908, 0
      %v2964 = vsel %vm479, %v2910, 0
      %v2967 = vsel %vm479, %v2912, 0
      %v2970 = vsel %vm479, %v2914, 0
      %v2973 = vsel %vm479, %v2916, 0
      %v2976 = vsel %vm479, %v2918, 0
      %v2979 = vsel %vm479, %v2920, 0
      %v2982 = vsel %vm479, %v2922, 0
      %v2985 = vsel %vm479, %v2924, 0
      %v2988 = vsel %vm479, %v2926, 0
      %v2991 = vsel %vm479, %v2928, 0
      %v2994 = vsel %vm479, %v2930, 0
      %v2997 = vsel %vm479, %v2932, 0
      %v3000 = vsel %vm479, %v2934, 0
      %v3003 = vsel %vm479, %v2936, 0
      %v3006 = vsel %vm479, %v2938, 0
      %v3009 = vsel %vm479, %v2940, 0
      %v3012 = vsel %vm479, %v2942, 0
      %v3015 = vsel %vm479, %v2944, 0
      %v3018 = vsel %vm479, %v2943, 0
      %3020 = vmatprep.subr.bf16.mxu0 0
      %3021 = vmatpush1.bf16.msra.mxu0 %v2953
      %3022 = vmatprep.subr.bf16.mxu0 0
      %3023 = vmatpush1.bf16.msra.mxu0 %v2954
      %3024 = vmatprep.subr.bf16.mxu0 0
      %3025 = vmatpush1.bf16.msra.mxu0 0
      %3026 = vmatprep.subr.bf16.mxu0 0
      %3027 = vmatpush1.bf16.msra.mxu0 0
      %3028 = vmatprep.subr.bf16.mxu0 0
      %3029 = vmatpush1.bf16.msra.mxu0 0
      %3030 = vmatprep.subr.bf16.mxu0 0
      %3031 = vmatpush1.bf16.msra.mxu0 0
      %3032 = vmatprep.subr.bf16.mxu0 0
      %3033 = vmatpush1.bf16.msra.mxu0 0
      %3034 = vmatprep.subr.bf16.mxu0 0
      %3035 = vmatpush1.bf16.msra.mxu0 0
      %3036 = vmatprep.subr.bf16.mxu0 0
      %3037 = vmatpush1.bf16.msra.mxu0 0
      %3038 = vmatprep.subr.bf16.mxu0 0
      %3039 = vmatpush1.bf16.msra.mxu0 0
      %3040 = vmatprep.subr.bf16.mxu0 0
      %3041 = vmatpush1.bf16.msra.mxu0 0
      %3042 = vmatprep.subr.bf16.mxu0 0
      %3043 = vmatpush1.bf16.msra.mxu0 0
      %3044 = vmatprep.subr.bf16.mxu0 0
      %3045 = vmatpush1.bf16.msra.mxu0 0
      %3046 = vmatprep.subr.bf16.mxu0 0
      %3047 = vmatpush1.bf16.msra.mxu0 0
      %3048 = vmatprep.subr.bf16.mxu0 0
      %3049 = vmatpush1.bf16.msra.mxu0 0
      %3050 = vmatprep.subr.bf16.mxu0 0
      %3051 = vmatpush1.bf16.msra.mxu0 0
      %3052 = vmatprep.mubr.bf16.mxu0 0
      %3053 = vmatmul.mubr.bf16.gmra.mrb[0].mxu0 %v2958
      %v3054 = vpop.f32.mrb[0].mxu0
      %v3055 = vadd.f32 0.0, %v3054
      %v3056 = vpop.f32.mrb[0].mxu0
      %v3057 = vpop.f32.mrb[0].mxu0
      %v3058 = vadd.f32 0.0, %v3057
      %v3059 = vpop.f32.mrb[0].mxu0
      %3060 = vmatprep.mubr.bf16.mxu0 0
      %3061 = vmatmul.mubr.bf16.gmra.mrb[0].mxu0 %v2961
      %v3062 = vpop.f32.mrb[0].mxu0
      %v3063 = vadd.f32 0.0, %v3062
      %v3064 = vpop.f32.mrb[0].mxu0
      %v3065 = vpop.f32.mrb[0].mxu0
      %v3066 = vadd.f32 0.0, %v3065
      %v3067 = vpop.f32.mrb[0].mxu0
      %3068 = vmatprep.mubr.bf16.mxu0 0
      %3069 = vmatmul.mubr.bf16.gmra.mrb[0].mxu0 %v2964
      %v3070 = vpop.f32.mrb[0].mxu0
      %v3071 = vadd.f32 0.0, %v3070
      %v3072 = vpop.f32.mrb[0].mxu0
      %v3073 = vpop.f32.mrb[0].mxu0
      %v3074 = vadd.f32 0.0, %v3073
      %v3075 = vpop.f32.mrb[0].mxu0
      %3076 = vmatprep.mubr.bf16.mxu0 0
      %3077 = vmatmul.mubr.bf16.gmra.mrb[0].mxu0 %v2967
      %v3078 = vpop.f32.mrb[0].mxu0
      %v3079 = vadd.f32 0.0, %v3078
      %v3080 = vpop.f32.mrb[0].mxu0
      %v3081 = vpop.f32.mrb[0].mxu0
      %v3082 = vadd.f32 0.0, %v3081
      %v3083 = vpop.f32.mrb[0].mxu0
      %3084 = vmatprep.mubr.bf16.mxu0 0
      %3085 = vmatmul.mubr.bf16.gmra.mrb[0].mxu0 %v2970
      %v3086 = vpop.f32.mrb[0].mxu0
      %v3087 = vadd.f32 0.0, %v3086
      %v3088 = vpop.f32.mrb[0].mxu0
      %v3089 = vpop.f32.mrb[0].mxu0
      %v3090 = vadd.f32 0.0, %v3089
      %v3091 = vpop.f32.mrb[0].mxu0
      %3092 = vmatprep.mubr.bf16.mxu0 0
      %3093 = vmatmul.mubr.bf16.gmra.mrb[0].mxu0 %v2973
      %v3094 = vpop.f32.mrb[0].mxu0
      %v3095 = vadd.f32 0.0, %v3094
      %v3096 = vpop.f32.mrb[0].mxu0
      %v3097 = vpop.f32.mrb[0].mxu0
      %v3098 = vadd.f32 0.0, %v3097
      %v3099 = vpop.f32.mrb[0].mxu0
      %3100 = vmatprep.mubr.bf16.mxu0 0
      %3101 = vmatmul.mubr.bf16.gmra.mrb[0].mxu0 %v2976
      %v3102 = vpop.f32.mrb[0].mxu0
      %v3103 = vadd.f32 0.0, %v3102
      %v3104 = vpop.f32.mrb[0].mxu0
      %v3105 = vpop.f32.mrb[0].mxu0
      %v3106 = vadd.f32 0.0, %v3105
      %v3107 = vpop.f32.mrb[0].mxu0
      %3108 = vmatprep.mubr.bf16.mxu0 0
      %3109 = vmatmul.mubr.bf16.gmra.mrb[0].mxu0 %v2979
      %v3110 = vpop.f32.mrb[0].mxu0
      %v3111 = vadd.f32 0.0, %v3110
      %v3112 = vpop.f32.mrb[0].mxu0
      %v3113 = vpop.f32.mrb[0].mxu0
      %v3114 = vadd.f32 0.0, %v3113
      %v3115 = vpop.f32.mrb[0].mxu0
      %3116 = vmatprep.mubr.bf16.mxu0 0
      %3117 = vmatmul.mubr.bf16.gmra.mrb[0].mxu0 %v2982
      %v3118 = vpop.f32.mrb[0].mxu0
      %v3119 = vadd.f32 0.0, %v3118
      %v3120 = vpop.f32.mrb[0].mxu0
      %v3121 = vpop.f32.mrb[0].mxu0
      %v3122 = vadd.f32 0.0, %v3121
      %v3123 = vpop.f32.mrb[0].mxu0
      %3124 = vmatprep.mubr.bf16.mxu0 0
      %3125 = vmatmul.mubr.bf16.gmra.mrb[0].mxu0 %v2985
      %v3126 = vpop.f32.mrb[0].mxu0
      %v3127 = vadd.f32 0.0, %v3126
      %v3128 = vpop.f32.mrb[0].mxu0
      %v3129 = vpop.f32.mrb[0].mxu0
      %v3130 = vadd.f32 0.0, %v3129
      %v3131 = vpop.f32.mrb[0].mxu0
      %3132 = vmatprep.mubr.bf16.mxu0 0
      %3133 = vmatmul.mubr.bf16.gmra.mrb[0].mxu0 %v2988
      %v3134 = vpop.f32.mrb[0].mxu0
      %v3135 = vadd.f32 0.0, %v3134
      %v3136 = vpop.f32.mrb[0].mxu0
      %v3137 = vpop.f32.mrb[0].mxu0
      %v3138 = vadd.f32 0.0, %v3137
      %v3139 = vpop.f32.mrb[0].mxu0
      %3140 = vmatprep.mubr.bf16.mxu0 0
      %3141 = vmatmul.mubr.bf16.gmra.mrb[0].mxu0 %v2991
      %v3142 = vpop.f32.mrb[0].mxu0
      %v3143 = vadd.f32 0.0, %v3142
      %v3144 = vpop.f32.mrb[0].mxu0
      %v3145 = vpop.f32.mrb[0].mxu0
      %v3146 = vadd.f32 0.0, %v3145
      %v3147 = vpop.f32.mrb[0].mxu0
      %3148 = vmatprep.mubr.bf16.mxu0 0
      %3149 = vmatmul.mubr.bf16.gmra.mrb[0].mxu0 %v2994
      %v3150 = vpop.f32.mrb[0].mxu0
      %v3151 = vadd.f32 0.0, %v3150
      %v3152 = vpop.f32.mrb[0].mxu0
      %v3153 = vpop.f32.mrb[0].mxu0
      %v3154 = vadd.f32 0.0, %v3153
      %v3155 = vpop.f32.mrb[0].mxu0
      %3156 = vmatprep.mubr.bf16.mxu0 0
      %3157 = vmatmul.mubr.bf16.gmra.mrb[0].mxu0 %v2997
      %v3158 = vpop.f32.mrb[0].mxu0
      %v3159 = vadd.f32 0.0, %v3158
      %v3160 = vpop.f32.mrb[0].mxu0
      %v3161 = vpop.f32.mrb[0].mxu0
      %v3162 = vadd.f32 0.0, %v3161
      %v3163 = vpop.f32.mrb[0].mxu0
      %3164 = vmatprep.mubr.bf16.mxu0 0
      %3165 = vmatmul.mubr.bf16.gmra.mrb[0].mxu0 %v3000
      %v3166 = vpop.f32.mrb[0].mxu0
      %v3167 = vadd.f32 0.0, %v3166
      %v3168 = vpop.f32.mrb[0].mxu0
      %v3169 = vpop.f32.mrb[0].mxu0
      %v3170 = vadd.f32 0.0, %v3169
      %v3171 = vpop.f32.mrb[0].mxu0
      %3172 = vmatprep.mubr.bf16.mxu0 0
      %3173 = vmatmul.mubr.bf16.gmra.mrb[0].mxu0 %v3003
      %v3174 = vpop.f32.mrb[0].mxu0
      %v3175 = vadd.f32 0.0, %v3174
      %v3176 = vpop.f32.mrb[0].mxu0
      %v3177 = vpop.f32.mrb[0].mxu0
      %v3178 = vadd.f32 0.0, %v3177
      %v3179 = vpop.f32.mrb[0].mxu0
      %3180 = vmatprep.mubr.bf16.mxu0 0
      %3181 = vmatmul.mubr.bf16.gmra.mrb[0].mxu0 %v3006
      %v3182 = vpop.f32.mrb[0].mxu0
      %v3183 = vadd.f32 0.0, %v3182
      %v3184 = vpop.f32.mrb[0].mxu0
      %v3185 = vpop.f32.mrb[0].mxu0
      %v3186 = vadd.f32 0.0, %v3185
      %v3187 = vpop.f32.mrb[0].mxu0
      %3188 = vmatprep.mubr.bf16.mxu0 0
      %3189 = vmatmul.mubr.bf16.gmra.mrb[0].mxu0 %v3009
      %v3190 = vpop.f32.mrb[0].mxu0
      %v3191 = vadd.f32 0.0, %v3190
      %v3192 = vpop.f32.mrb[0].mxu0
      %v3193 = vpop.f32.mrb[0].mxu0
      %v3194 = vadd.f32 0.0, %v3193
      %v3195 = vpop.f32.mrb[0].mxu0
      %3196 = vmatprep.mubr.bf16.mxu0 0
      %3197 = vmatmul.mubr.bf16.gmra.mrb[0].mxu0 %v3012
      %v3198 = vpop.f32.mrb[0].mxu0
      %v3199 = vadd.f32 0.0, %v3198
      %v3200 = vpop.f32.mrb[0].mxu0
      %v3201 = vpop.f32.mrb[0].mxu0
      %v3202 = vadd.f32 0.0, %v3201
      %v3203 = vpop.f32.mrb[0].mxu0
      %3204 = vmatprep.mubr.bf16.mxu0 0
      %3205 = vmatmul.mubr.bf16.gmra.mrb[0].mxu0 %v3015
      %v3206 = vpop.f32.mrb[0].mxu0
      %v3207 = vadd.f32 0.0, %v3206
      %v3208 = vpop.f32.mrb[0].mxu0
      %v3209 = vpop.f32.mrb[0].mxu0
      %v3210 = vadd.f32 0.0, %v3209
      %v3211 = vpop.f32.mrb[0].mxu0
      %3212 = vmatprep.mubr.bf16.mxu0 0
      %3213 = vmatmul.mubr.bf16.gmra.mrb[0].mxu0 %v3018
      %v3214 = vpop.f32.mrb[0].mxu0
      %v3215 = vadd.f32 0.0, %v3214
      %v3216 = vpop.f32.mrb[0].mxu0
      %v3217 = vpop.f32.mrb[0].mxu0
      %v3218 = vpop.f32.mrb[0].mxu0
      %3219 = vdwg.mxu0
      %v3220 = vadd.f32 %v2714, %v3055
      %v3221 = vadd.f32 %v2715, %v3058
      %v3222 = vadd.f32 %v2716, %v3063
      %v3223 = vadd.f32 %v2717, %v3066
      %v3224 = vadd.f32 %v2718, %v3071
      %v3225 = vadd.f32 %v2719, %v3074
      %v3226 = vadd.f32 %v2720, %v3079
      %v3227 = vadd.f32 %v2721, %v3082
      %v3228 = vadd.f32 %v2722, %v3087
      %v3229 = vadd.f32 %v2723, %v3090
      %v3230 = vadd.f32 %v2724, %v3095
      %v3231 = vadd.f32 %v2725, %v3098
      %v3232 = vadd.f32 %v2726, %v3103
      %v3233 = vadd.f32 %v2727, %v3106
      %v3234 = vadd.f32 %v2728, %v3111
      %v3235 = vadd.f32 %v2729, %v3114
      %v3236 = vadd.f32 %v2730, %v3119
      %v3237 = vadd.f32 %v2731, %v3122
      %v3238 = vadd.f32 %v2732, %v3127
      %v3239 = vadd.f32 %v2733, %v3130
      %v3240 = vadd.f32 %v2734, %v3135
      %v3241 = vadd.f32 %v2735, %v3138
      %v3242 = vadd.f32 %v2736, %v3143
      %v3243 = vadd.f32 %v2737, %v3146
      %v3244 = vadd.f32 %v2738, %v3151
      %v3245 = vadd.f32 %v2739, %v3154
      %v3246 = vadd.f32 %v2740, %v3159
      %v3247 = vadd.f32 %v2741, %v3162
      %v3248 = vadd.f32 %v2742, %v3167
      %v3249 = vadd.f32 %v2743, %v3170
      %v3250 = vadd.f32 %v2744, %v3175
      %v3251 = vadd.f32 %v2745, %v3178
      %v3252 = vadd.f32 %v2746, %v3183
      %v3253 = vadd.f32 %v2747, %v3186
      %v3254 = vadd.f32 %v2748, %v3191
      %v3255 = vadd.f32 %v2749, %v3194
      %v3256 = vadd.f32 %v2750, %v3199
      %v3257 = vadd.f32 %v2751, %v3202
      %v3258 = vadd.f32 %v2752, %v3207
      %v3259 = vadd.f32 %v2753, %v3210
      %v3260 = vadd.f32 %v2754, %v3215
      %v3261 = vld [vmem:[%s138 + $0x10] sm:$0xc]
      %v3262 = vld [vmem:[%s138 + $0x14] sm:$0xf]
      %v3263 = vld [vmem:[%s138 + $0x18] sm:$0xf]
      %v3264 = vld [vmem:[%s138 + $0x1c] sm:$0xf]
      %v3265 = vld [vmem:[%s138 + $0x20] sm:$0xf]
      %v3266 = vld [vmem:[%s138 + $0x24] sm:$0xf]
      %v3267 = vld [vmem:[%s138 + $0x28] sm:$0xf]
      %v3268 = vld [vmem:[%s138 + $0x2c] sm:$0xf]
      %v3269 = vld [vmem:[%s138 + $0x30] sm:$0xf]
      %v3270 = vld [vmem:[%s138 + $0x34] sm:$0xf]
      %v3271 = vld [vmem:[%s138 + $0x38] sm:$0xf]
      %v3272 = vld [vmem:[%s138 + $0x3c] sm:$0xf]
      %v3273 = vld [vmem:[%s138 + $0x40] sm:$0xf]
      %v3274 = vld [vmem:[%s138 + $0x44] sm:$0xf]
      %v3275 = vld [vmem:[%s138 + $0x48] sm:$0xf]
      %v3276 = vld [vmem:[%s138 + $0x4c] sm:$0xf]
      %v3277 = vld [vmem:[%s138 + $0x50] sm:$0xf]
      %v3278 = vld [vmem:[%s138 + $0x54] sm:$0xf]
      %v3279 = vld [vmem:[%s138 + $0x58] sm:$0xf]
      %v3280 = vld [vmem:[%s138 + $0x5c] sm:$0xf]
      %v3281 = vld [vmem:[%s138 + $0x60] sm:$0xf]
      %v3282 = vld [vmem:[%s138 + $0x64] sm:$0xf]
      %v3283 = vld [vmem:[%s138 + $0x68] sm:$0xf]
      %v3284 = vld [vmem:[%s138 + $0x6c] sm:$0xf]
      %v3285 = vld [vmem:[%s138 + $0x70] sm:$0xf]
      %v3286 = vld [vmem:[%s138 + $0x74] sm:$0xf]
      %v3287 = vld [vmem:[%s138 + $0x78] sm:$0xf]
      %v3288 = vld [vmem:[%s138 + $0x7c] sm:$0xf]
      %v3289 = vld [vmem:[%s138 + $0x80] sm:$0xf]
      %v3290 = vld [vmem:[%s138 + $0x84] sm:$0xf]
      %v3291 = vld [vmem:[%s138 + $0x88] sm:$0xf]
      %v3292 = vld [vmem:[%s138 + $0x8c] sm:$0xf]
      %v3293 = vld [vmem:[%s138 + $0x90] sm:$0xf]
      %v3294 = vld [vmem:[%s138 + $0x94] sm:$0xf]
      %v3295 = vld [vmem:[%s138 + $0x98] sm:$0xf]
      %v3296 = vld [vmem:[%s138 + $0x9c] sm:$0xf]
      %v3297 = vld [vmem:[%s138 + $0xa0] sm:$0xf]
      %v3298 = vld [vmem:[%s138 + $0xa4] sm:$0xf]
      %v3299 = vld [vmem:[%s138 + $0xa8] sm:$0xf]
      %v3300 = vld [vmem:[%s138 + $0xac] sm:$0xf]
      %v3301 = vld [vmem:[%s138 + $0xb0] sm:$0xf]
      %v3302 = vld [vmem:[%s138 + $0xb4] sm:$0x1]
      %s3303 = scalar_lea.vmem %s1, 112
      %v3304 = vld [vmem:[%s3303] sm:$0xf]
      %v3305 = vld [vmem:[%s3303 + $0x4] sm:$0xf]
      %v3306 = vld [vmem:[%s3303 + $0x8] sm:$0xf]
      %v3307 = vld [vmem:[%s3303 + $0xc] sm:$0xf]
      %v3350 = vunpack.c.l.b16 %v3261
      %v3351 = vunpack.c.l.b16 %v3262
      %v3352 = vunpack.c.l.b16 %v3263
      %v3353 = vunpack.c.l.b16 %v3264
      %v3354 = vunpack.c.l.b16 %v3265
      %v3355 = vunpack.c.l.b16 %v3266
      %v3356 = vunpack.c.l.b16 %v3267
      %v3357 = vunpack.c.l.b16 %v3268
      %v3358 = vunpack.c.l.b16 %v3269
      %v3359 = vunpack.c.l.b16 %v3270
      %v3360 = vunpack.c.l.b16 %v3271
      %v3361 = vunpack.c.l.b16 %v3272
      %v3362 = vunpack.c.l.b16 %v3273
      %v3363 = vunpack.c.l.b16 %v3274
      %v3364 = vunpack.c.l.b16 %v3275
      %v3365 = vunpack.c.l.b16 %v3276
      %v3366 = vunpack.c.l.b16 %v3277
      %v3367 = vunpack.c.l.b16 %v3278
      %v3368 = vunpack.c.l.b16 %v3279
      %v3369 = vunpack.c.l.b16 %v3280
      %v3370 = vunpack.c.l.b16 %v3281
      %v3371 = vunpack.c.l.b16 %v3282
      %v3372 = vunpack.c.l.b16 %v3283
      %v3373 = vunpack.c.l.b16 %v3284
      %v3374 = vunpack.c.l.b16 %v3285
      %v3375 = vunpack.c.l.b16 %v3286
      %v3376 = vunpack.c.l.b16 %v3287
      %v3377 = vunpack.c.l.b16 %v3288
      %v3378 = vunpack.c.l.b16 %v3289
      %v3379 = vunpack.c.l.b16 %v3290
      %v3380 = vunpack.c.l.b16 %v3291
      %v3381 = vunpack.c.l.b16 %v3292
      %v3382 = vunpack.c.l.b16 %v3293
      %v3383 = vunpack.c.l.b16 %v3294
      %v3384 = vunpack.c.l.b16 %v3295
      %v3385 = vunpack.c.l.b16 %v3296
      %v3386 = vunpack.c.l.b16 %v3297
      %v3387 = vunpack.c.l.b16 %v3298
      %v3388 = vunpack.c.l.b16 %v3299
      %v3389 = vunpack.c.l.b16 %v3300
      %v3390 = vunpack.c.l.b16 %v3301
      %v3391 = vunpack.c.l.b16 %v3302
      %v3392 = vpack.c.b16 %v3351, %v3350
      %v3393 = vpack.c.b16 %v3353, %v3352
      %v3394 = vpack.c.b16 %v3355, %v3354
      %v3395 = vpack.c.b16 %v3357, %v3356
      %v3396 = vpack.c.b16 %v3359, %v3358
      %v3397 = vpack.c.b16 %v3361, %v3360
      %v3398 = vpack.c.b16 %v3363, %v3362
      %v3399 = vpack.c.b16 %v3365, %v3364
      %v3400 = vpack.c.b16 %v3367, %v3366
      %v3401 = vpack.c.b16 %v3369, %v3368
      %v3402 = vpack.c.b16 %v3371, %v3370
      %v3403 = vpack.c.b16 %v3373, %v3372
      %v3404 = vpack.c.b16 %v3375, %v3374
      %v3405 = vpack.c.b16 %v3377, %v3376
      %v3406 = vpack.c.b16 %v3379, %v3378
      %v3407 = vpack.c.b16 %v3381, %v3380
      %v3408 = vpack.c.b16 %v3383, %v3382
      %v3409 = vpack.c.b16 %v3385, %v3384
      %v3410 = vpack.c.b16 %v3387, %v3386
      %v3411 = vpack.c.b16 %v3389, %v3388
      %v3412 = vpack.c.b16 %v3391, %v3390
      %vm3413 = vsmask.f32 5376
      %v3415 = vshrl.u32 %v3392, 16
      %v3417 = vrot.slane %v3415, 2
      %v3418 = vshll.u32 %v3392, 16
      %v3420 = vrot.slane %v3418, 3
      %v3421 = vor.u32 %v3417, %v3420
      %v3423 = vshrl.u32 %v3393, 16
      %v3425 = vrot.slane %v3423, 2
      %v3426 = vshll.u32 %v3393, 16
      %v3428 = vrot.slane %v3426, 3
      %v3429 = vor.u32 %v3425, %v3428
      %v3430 = vsel %vm3413, %v3421, %v3429
      %v3432 = vshrl.u32 %v3394, 16
      %v3434 = vrot.slane %v3432, 2
      %v3435 = vshll.u32 %v3394, 16
      %v3437 = vrot.slane %v3435, 3
      %v3438 = vor.u32 %v3434, %v3437
      %v3439 = vsel %vm3413, %v3429, %v3438
      %v3441 = vshrl.u32 %v3395, 16
      %v3443 = vrot.slane %v3441, 2
      %v3444 = vshll.u32 %v3395, 16
      %v3446 = vrot.slane %v3444, 3
      %v3447 = vor.u32 %v3443, %v3446
      %v3448 = vsel %vm3413, %v3438, %v3447
      %v3450 = vshrl.u32 %v3396, 16
      %v3452 = vrot.slane %v3450, 2
      %v3453 = vshll.u32 %v3396, 16
      %v3455 = vrot.slane %v3453, 3
      %v3456 = vor.u32 %v3452, %v3455
      %v3457 = vsel %vm3413, %v3447, %v3456
      %v3459 = vshrl.u32 %v3397, 16
      %v3461 = vrot.slane %v3459, 2
      %v3462 = vshll.u32 %v3397, 16
      %v3464 = vrot.slane %v3462, 3
      %v3465 = vor.u32 %v3461, %v3464
      %v3466 = vsel %vm3413, %v3456, %v3465
      %v3468 = vshrl.u32 %v3398, 16
      %v3470 = vrot.slane %v3468, 2
      %v3471 = vshll.u32 %v3398, 16
      %v3473 = vrot.slane %v3471, 3
      %v3474 = vor.u32 %v3470, %v3473
      %v3475 = vsel %vm3413, %v3465, %v3474
      %v3477 = vshrl.u32 %v3399, 16
      %v3479 = vrot.slane %v3477, 2
      %v3480 = vshll.u32 %v3399, 16
      %v3482 = vrot.slane %v3480, 3
      %v3483 = vor.u32 %v3479, %v3482
      %v3484 = vsel %vm3413, %v3474, %v3483
      %v3486 = vshrl.u32 %v3400, 16
      %v3488 = vrot.slane %v3486, 2
      %v3489 = vshll.u32 %v3400, 16
      %v3491 = vrot.slane %v3489, 3
      %v3492 = vor.u32 %v3488, %v3491
      %v3493 = vsel %vm3413, %v3483, %v3492
      %v3495 = vshrl.u32 %v3401, 16
      %v3497 = vrot.slane %v3495, 2
      %v3498 = vshll.u32 %v3401, 16
      %v3500 = vrot.slane %v3498, 3
      %v3501 = vor.u32 %v3497, %v3500
      %v3502 = vsel %vm3413, %v3492, %v3501
      %v3504 = vshrl.u32 %v3402, 16
      %v3506 = vrot.slane %v3504, 2
      %v3507 = vshll.u32 %v3402, 16
      %v3509 = vrot.slane %v3507, 3
      %v3510 = vor.u32 %v3506, %v3509
      %v3511 = vsel %vm3413, %v3501, %v3510
      %v3513 = vshrl.u32 %v3403, 16
      %v3515 = vrot.slane %v3513, 2
      %v3516 = vshll.u32 %v3403, 16
      %v3518 = vrot.slane %v3516, 3
      %v3519 = vor.u32 %v3515, %v3518
      %v3520 = vsel %vm3413, %v3510, %v3519
      %v3522 = vshrl.u32 %v3404, 16
      %v3524 = vrot.slane %v3522, 2
      %v3525 = vshll.u32 %v3404, 16
      %v3527 = vrot.slane %v3525, 3
      %v3528 = vor.u32 %v3524, %v3527
      %v3529 = vsel %vm3413, %v3519, %v3528
      %v3531 = vshrl.u32 %v3405, 16
      %v3533 = vrot.slane %v3531, 2
      %v3534 = vshll.u32 %v3405, 16
      %v3536 = vrot.slane %v3534, 3
      %v3537 = vor.u32 %v3533, %v3536
      %v3538 = vsel %vm3413, %v3528, %v3537
      %v3540 = vshrl.u32 %v3406, 16
      %v3542 = vrot.slane %v3540, 2
      %v3543 = vshll.u32 %v3406, 16
      %v3545 = vrot.slane %v3543, 3
      %v3546 = vor.u32 %v3542, %v3545
      %v3547 = vsel %vm3413, %v3537, %v3546
      %v3549 = vshrl.u32 %v3407, 16
      %v3551 = vrot.slane %v3549, 2
      %v3552 = vshll.u32 %v3407, 16
      %v3554 = vrot.slane %v3552, 3
      %v3555 = vor.u32 %v3551, %v3554
      %v3556 = vsel %vm3413, %v3546, %v3555
      %v3558 = vshrl.u32 %v3408, 16
      %v3560 = vrot.slane %v3558, 2
      %v3561 = vshll.u32 %v3408, 16
      %v3563 = vrot.slane %v3561, 3
      %v3564 = vor.u32 %v3560, %v3563
      %v3565 = vsel %vm3413, %v3555, %v3564
      %v3567 = vshrl.u32 %v3409, 16
      %v3569 = vrot.slane %v3567, 2
      %v3570 = vshll.u32 %v3409, 16
      %v3572 = vrot.slane %v3570, 3
      %v3573 = vor.u32 %v3569, %v3572
      %v3574 = vsel %vm3413, %v3564, %v3573
      %v3576 = vshrl.u32 %v3410, 16
      %v3578 = vrot.slane %v3576, 2
      %v3579 = vshll.u32 %v3410, 16
      %v3581 = vrot.slane %v3579, 3
      %v3582 = vor.u32 %v3578, %v3581
      %v3583 = vsel %vm3413, %v3573, %v3582
      %v3585 = vshrl.u32 %v3411, 16
      %v3587 = vrot.slane %v3585, 2
      %v3588 = vshll.u32 %v3411, 16
      %v3590 = vrot.slane %v3588, 3
      %v3591 = vor.u32 %v3587, %v3590
      %v3592 = vsel %vm3413, %v3582, %v3591
      %v3594 = vshrl.u32 %v3412, 16
      %v3596 = vrot.slane %v3594, 2
      %v3597 = vshll.u32 %v3412, 16
      %v3599 = vrot.slane %v3597, 3
      %v3600 = vor.u32 %v3596, %v3599
      %v3601 = vsel %vm3413, %v3591, %v3600
      %v3606 = vunpack.c.l.b16 %v3304
      %v3607 = vunpack.c.l.b16 %v3305
      %v3608 = vunpack.c.l.b16 %v3306
      %v3609 = vunpack.c.l.b16 %v3307
      %v3610 = vpack.c.b16 %v3607, %v3606
      %v3611 = vpack.c.b16 %v3609, %v3608
      %v3615 = vsel %vm479, %v3430, 0
      %v3618 = vsel %vm479, %v3439, 0
      %v3621 = vsel %vm479, %v3448, 0
      %v3624 = vsel %vm479, %v3457, 0
      %v3627 = vsel %vm479, %v3466, 0
      %v3630 = vsel %vm479, %v3475, 0
      %v3633 = vsel %vm479, %v3484, 0
      %v3636 = vsel %vm479, %v3493, 0
      %v3639 = vsel %vm479, %v3502, 0
      %v3642 = vsel %vm479, %v3511, 0
      %v3645 = vsel %vm479, %v3520, 0
      %v3648 = vsel %vm479, %v3529, 0
      %v3651 = vsel %vm479, %v3538, 0
      %v3654 = vsel %vm479, %v3547, 0
      %v3657 = vsel %vm479, %v3556, 0
      %v3660 = vsel %vm479, %v3565, 0
      %v3663 = vsel %vm479, %v3574, 0
      %v3666 = vsel %vm479, %v3583, 0
      %v3669 = vsel %vm479, %v3592, 0
      %v3672 = vsel %vm479, %v3601, 0
      %v3675 = vsel %vm479, %v3600, 0
      %3677 = vmatprep.subr.bf16.mxu0 0
      %3678 = vmatpush1.bf16.msra.mxu0 %v3610
      %3679 = vmatprep.subr.bf16.mxu0 0
      %3680 = vmatpush1.bf16.msra.mxu0 %v3611
      %3681 = vmatprep.subr.bf16.mxu0 0
      %3682 = vmatpush1.bf16.msra.mxu0 0
      %3683 = vmatprep.subr.bf16.mxu0 0
      %3684 = vmatpush1.bf16.msra.mxu0 0
      %3685 = vmatprep.subr.bf16.mxu0 0
      %3686 = vmatpush1.bf16.msra.mxu0 0
      %3687 = vmatprep.subr.bf16.mxu0 0
      %3688 = vmatpush1.bf16.msra.mxu0 0
      %3689 = vmatprep.subr.bf16.mxu0 0
      %3690 = vmatpush1.bf16.msra.mxu0 0
      %3691 = vmatprep.subr.bf16.mxu0 0
      %3692 = vmatpush1.bf16.msra.mxu0 0
      %3693 = vmatprep.subr.bf16.mxu0 0
      %3694 = vmatpush1.bf16.msra.mxu0 0
      %3695 = vmatprep.subr.bf16.mxu0 0
      %3696 = vmatpush1.bf16.msra.mxu0 0
      %3697 = vmatprep.subr.bf16.mxu0 0
      %3698 = vmatpush1.bf16.msra.mxu0 0
      %3699 = vmatprep.subr.bf16.mxu0 0
      %3700 = vmatpush1.bf16.msra.mxu0 0
      %3701 = vmatprep.subr.bf16.mxu0 0
      %3702 = vmatpush1.bf16.msra.mxu0 0
      %3703 = vmatprep.subr.bf16.mxu0 0
      %3704 = vmatpush1.bf16.msra.mxu0 0
      %3705 = vmatprep.subr.bf16.mxu0 0
      %3706 = vmatpush1.bf16.msra.mxu0 0
      %3707 = vmatprep.subr.bf16.mxu0 0
      %3708 = vmatpush1.bf16.msra.mxu0 0
      %3709 = vmatprep.mubr.bf16.mxu0 0
      %3710 = vmatmul.mubr.bf16.gmra.mrb[0].mxu0 %v3615
      %v3711 = vpop.f32.mrb[0].mxu0
      %v3712 = vadd.f32 0.0, %v3711
      %v3713 = vpop.f32.mrb[0].mxu0
      %v3714 = vpop.f32.mrb[0].mxu0
      %v3715 = vadd.f32 0.0, %v3714
      %v3716 = vpop.f32.mrb[0].mxu0
      %3717 = vmatprep.mubr.bf16.mxu0 0
      %3718 = vmatmul.mubr.bf16.gmra.mrb[0].mxu0 %v3618
      %v3719 = vpop.f32.mrb[0].mxu0
      %v3720 = vadd.f32 0.0, %v3719
      %v3721 = vpop.f32.mrb[0].mxu0
      %v3722 = vpop.f32.mrb[0].mxu0
      %v3723 = vadd.f32 0.0, %v3722
      %v3724 = vpop.f32.mrb[0].mxu0
      %3725 = vmatprep.mubr.bf16.mxu0 0
      %3726 = vmatmul.mubr.bf16.gmra.mrb[0].mxu0 %v3621
      %v3727 = vpop.f32.mrb[0].mxu0
      %v3728 = vadd.f32 0.0, %v3727
      %v3729 = vpop.f32.mrb[0].mxu0
      %v3730 = vpop.f32.mrb[0].mxu0
      %v3731 = vadd.f32 0.0, %v3730
      %v3732 = vpop.f32.mrb[0].mxu0
      %3733 = vmatprep.mubr.bf16.mxu0 0
      %3734 = vmatmul.mubr.bf16.gmra.mrb[0].mxu0 %v3624
      %v3735 = vpop.f32.mrb[0].mxu0
      %v3736 = vadd.f32 0.0, %v3735
      %v3737 = vpop.f32.mrb[0].mxu0
      %v3738 = vpop.f32.mrb[0].mxu0
      %v3739 = vadd.f32 0.0, %v3738
      %v3740 = vpop.f32.mrb[0].mxu0
      %3741 = vmatprep.mubr.bf16.mxu0 0
      %3742 = vmatmul.mubr.bf16.gmra.mrb[0].mxu0 %v3627
      %v3743 = vpop.f32.mrb[0].mxu0
      %v3744 = vadd.f32 0.0, %v3743
      %v3745 = vpop.f32.mrb[0].mxu0
      %v3746 = vpop.f32.mrb[0].mxu0
      %v3747 = vadd.f32 0.0, %v3746
      %v3748 = vpop.f32.mrb[0].mxu0
      %3749 = vmatprep.mubr.bf16.mxu0 0
      %3750 = vmatmul.mubr.bf16.gmra.mrb[0].mxu0 %v3630
      %v3751 = vpop.f32.mrb[0].mxu0
      %v3752 = vadd.f32 0.0, %v3751
      %v3753 = vpop.f32.mrb[0].mxu0
      %v3754 = vpop.f32.mrb[0].mxu0
      %v3755 = vadd.f32 0.0, %v3754
      %v3756 = vpop.f32.mrb[0].mxu0
      %3757 = vmatprep.mubr.bf16.mxu0 0
      %3758 = vmatmul.mubr.bf16.gmra.mrb[0].mxu0 %v3633
      %v3759 = vpop.f32.mrb[0].mxu0
      %v3760 = vadd.f32 0.0, %v3759
      %v3761 = vpop.f32.mrb[0].mxu0
      %v3762 = vpop.f32.mrb[0].mxu0
      %v3763 = vadd.f32 0.0, %v3762
      %v3764 = vpop.f32.mrb[0].mxu0
      %3765 = vmatprep.mubr.bf16.mxu0 0
      %3766 = vmatmul.mubr.bf16.gmra.mrb[0].mxu0 %v3636
      %v3767 = vpop.f32.mrb[0].mxu0
      %v3768 = vadd.f32 0.0, %v3767
      %v3769 = vpop.f32.mrb[0].mxu0
      %v3770 = vpop.f32.mrb[0].mxu0
      %v3771 = vadd.f32 0.0, %v3770
      %v3772 = vpop.f32.mrb[0].mxu0
      %3773 = vmatprep.mubr.bf16.mxu0 0
      %3774 = vmatmul.mubr.bf16.gmra.mrb[0].mxu0 %v3639
      %v3775 = vpop.f32.mrb[0].mxu0
      %v3776 = vadd.f32 0.0, %v3775
      %v3777 = vpop.f32.mrb[0].mxu0
      %v3778 = vpop.f32.mrb[0].mxu0
      %v3779 = vadd.f32 0.0, %v3778
      %v3780 = vpop.f32.mrb[0].mxu0
      %3781 = vmatprep.mubr.bf16.mxu0 0
      %3782 = vmatmul.mubr.bf16.gmra.mrb[0].mxu0 %v3642
      %v3783 = vpop.f32.mrb[0].mxu0
      %v3784 = vadd.f32 0.0, %v3783
      %v3785 = vpop.f32.mrb[0].mxu0
      %v3786 = vpop.f32.mrb[0].mxu0
      %v3787 = vadd.f32 0.0, %v3786
      %v3788 = vpop.f32.mrb[0].mxu0
      %3789 = vmatprep.mubr.bf16.mxu0 0
      %3790 = vmatmul.mubr.bf16.gmra.mrb[0].mxu0 %v3645
      %v3791 = vpop.f32.mrb[0].mxu0
      %v3792 = vadd.f32 0.0, %v3791
      %v3793 = vpop.f32.mrb[0].mxu0
      %v3794 = vpop.f32.mrb[0].mxu0
      %v3795 = vadd.f32 0.0, %v3794
      %v3796 = vpop.f32.mrb[0].mxu0
      %3797 = vmatprep.mubr.bf16.mxu0 0
      %3798 = vmatmul.mubr.bf16.gmra.mrb[0].mxu0 %v3648
      %v3799 = vpop.f32.mrb[0].mxu0
      %v3800 = vadd.f32 0.0, %v3799
      %v3801 = vpop.f32.mrb[0].mxu0
      %v3802 = vpop.f32.mrb[0].mxu0
      %v3803 = vadd.f32 0.0, %v3802
      %v3804 = vpop.f32.mrb[0].mxu0
      %3805 = vmatprep.mubr.bf16.mxu0 0
      %3806 = vmatmul.mubr.bf16.gmra.mrb[0].mxu0 %v3651
      %v3807 = vpop.f32.mrb[0].mxu0
      %v3808 = vadd.f32 0.0, %v3807
      %v3809 = vpop.f32.mrb[0].mxu0
      %v3810 = vpop.f32.mrb[0].mxu0
      %v3811 = vadd.f32 0.0, %v3810
      %v3812 = vpop.f32.mrb[0].mxu0
      %3813 = vmatprep.mubr.bf16.mxu0 0
      %3814 = vmatmul.mubr.bf16.gmra.mrb[0].mxu0 %v3654
      %v3815 = vpop.f32.mrb[0].mxu0
      %v3816 = vadd.f32 0.0, %v3815
      %v3817 = vpop.f32.mrb[0].mxu0
      %v3818 = vpop.f32.mrb[0].mxu0
      %v3819 = vadd.f32 0.0, %v3818
      %v3820 = vpop.f32.mrb[0].mxu0
      %3821 = vmatprep.mubr.bf16.mxu0 0
      %3822 = vmatmul.mubr.bf16.gmra.mrb[0].mxu0 %v3657
      %v3823 = vpop.f32.mrb[0].mxu0
      %v3824 = vadd.f32 0.0, %v3823
      %v3825 = vpop.f32.mrb[0].mxu0
      %v3826 = vpop.f32.mrb[0].mxu0
      %v3827 = vadd.f32 0.0, %v3826
      %v3828 = vpop.f32.mrb[0].mxu0
      %3829 = vmatprep.mubr.bf16.mxu0 0
      %3830 = vmatmul.mubr.bf16.gmra.mrb[0].mxu0 %v3660
      %v3831 = vpop.f32.mrb[0].mxu0
      %v3832 = vadd.f32 0.0, %v3831
      %v3833 = vpop.f32.mrb[0].mxu0
      %v3834 = vpop.f32.mrb[0].mxu0
      %v3835 = vadd.f32 0.0, %v3834
      %v3836 = vpop.f32.mrb[0].mxu0
      %3837 = vmatprep.mubr.bf16.mxu0 0
      %3838 = vmatmul.mubr.bf16.gmra.mrb[0].mxu0 %v3663
      %v3839 = vpop.f32.mrb[0].mxu0
      %v3840 = vadd.f32 0.0, %v3839
      %v3841 = vpop.f32.mrb[0].mxu0
      %v3842 = vpop.f32.mrb[0].mxu0
      %v3843 = vadd.f32 0.0, %v3842
      %v3844 = vpop.f32.mrb[0].mxu0
      %3845 = vmatprep.mubr.bf16.mxu0 0
      %3846 = vmatmul.mubr.bf16.gmra.mrb[0].mxu0 %v3666
      %v3847 = vpop.f32.mrb[0].mxu0
      %v3848 = vadd.f32 0.0, %v3847
      %v3849 = vpop.f32.mrb[0].mxu0
      %v3850 = vpop.f32.mrb[0].mxu0
      %v3851 = vadd.f32 0.0, %v3850
      %v3852 = vpop.f32.mrb[0].mxu0
      %3853 = vmatprep.mubr.bf16.mxu0 0
      %3854 = vmatmul.mubr.bf16.gmra.mrb[0].mxu0 %v3669
      %v3855 = vpop.f32.mrb[0].mxu0
      %v3856 = vadd.f32 0.0, %v3855
      %v3857 = vpop.f32.mrb[0].mxu0
      %v3858 = vpop.f32.mrb[0].mxu0
      %v3859 = vadd.f32 0.0, %v3858
      %v3860 = vpop.f32.mrb[0].mxu0
      %3861 = vmatprep.mubr.bf16.mxu0 0
      %3862 = vmatmul.mubr.bf16.gmra.mrb[0].mxu0 %v3672
      %v3863 = vpop.f32.mrb[0].mxu0
      %v3864 = vadd.f32 0.0, %v3863
      %v3865 = vpop.f32.mrb[0].mxu0
      %v3866 = vpop.f32.mrb[0].mxu0
      %v3867 = vadd.f32 0.0, %v3866
      %v3868 = vpop.f32.mrb[0].mxu0
      %3869 = vmatprep.mubr.bf16.mxu0 0
      %3870 = vmatmul.mubr.bf16.gmra.mrb[0].mxu0 %v3675
      %v3871 = vpop.f32.mrb[0].mxu0
      %v3872 = vadd.f32 0.0, %v3871
      %v3873 = vpop.f32.mrb[0].mxu0
      %v3874 = vpop.f32.mrb[0].mxu0
      %v3875 = vpop.f32.mrb[0].mxu0
      %3876 = vdwg.mxu0
      %v3877 = vadd.f32 %v3220, %v3712
      %v3878 = vadd.f32 %v3221, %v3715
      %v3879 = vadd.f32 %v3222, %v3720
      %v3880 = vadd.f32 %v3223, %v3723
      %v3881 = vadd.f32 %v3224, %v3728
      %v3882 = vadd.f32 %v3225, %v3731
      %v3883 = vadd.f32 %v3226, %v3736
      %v3884 = vadd.f32 %v3227, %v3739
      %v3885 = vadd.f32 %v3228, %v3744
      %v3886 = vadd.f32 %v3229, %v3747
      %v3887 = vadd.f32 %v3230, %v3752
      %v3888 = vadd.f32 %v3231, %v3755
      %v3889 = vadd.f32 %v3232, %v3760
      %v3890 = vadd.f32 %v3233, %v3763
      %v3891 = vadd.f32 %v3234, %v3768
      %v3892 = vadd.f32 %v3235, %v3771
      %v3893 = vadd.f32 %v3236, %v3776
      %v3894 = vadd.f32 %v3237, %v3779
      %v3895 = vadd.f32 %v3238, %v3784
      %v3896 = vadd.f32 %v3239, %v3787
      %v3897 = vadd.f32 %v3240, %v3792
      %v3898 = vadd.f32 %v3241, %v3795
      %v3899 = vadd.f32 %v3242, %v3800
      %v3900 = vadd.f32 %v3243, %v3803
      %v3901 = vadd.f32 %v3244, %v3808
      %v3902 = vadd.f32 %v3245, %v3811
      %v3903 = vadd.f32 %v3246, %v3816
      %v3904 = vadd.f32 %v3247, %v3819
      %v3905 = vadd.f32 %v3248, %v3824
      %v3906 = vadd.f32 %v3249, %v3827
      %v3907 = vadd.f32 %v3250, %v3832
      %v3908 = vadd.f32 %v3251, %v3835
      %v3909 = vadd.f32 %v3252, %v3840
      %v3910 = vadd.f32 %v3253, %v3843
      %v3911 = vadd.f32 %v3254, %v3848
      %v3912 = vadd.f32 %v3255, %v3851
      %v3913 = vadd.f32 %v3256, %v3856
      %v3914 = vadd.f32 %v3257, %v3859
      %v3915 = vadd.f32 %v3258, %v3864
      %v3916 = vadd.f32 %v3259, %v3867
      %v3917 = vadd.f32 %v3260, %v3872
      %v3918 = vld [vmem:[%s138 + $0x10] sm:$0x8]
      %s3919 = scalar_lea.vmem %s1, 128
      %v3920 = vld [vmem:[%s3919] sm:$0xf]
      %v3921 = vld [vmem:[%s3919 + $0x4] sm:$0xf]
      %v3922 = vld [vmem:[%s3919 + $0x8] sm:$0xf]
      %v3923 = vld [vmem:[%s3919 + $0xc] sm:$0xf]
      %v3925 = vunpack.c.l.b16 %v3918
      %v3926 = vpack.c.b16 %v3351, %v3925
      %vm3927 = vcmask 1044480
      %v3928 = vrot.slane %v3926, 3
      %v3929 = vrot.slane %v3393, 3
      %v3930 = vsel %vm3927, %v3928, %v3929
      %v3931 = vrot.slane %v3394, 3
      %v3932 = vsel %vm3927, %v3929, %v3931
      %v3933 = vrot.slane %v3395, 3
      %v3934 = vsel %vm3927, %v3931, %v3933
      %v3935 = vrot.slane %v3396, 3
      %v3936 = vsel %vm3927, %v3933, %v3935
      %v3937 = vrot.slane %v3397, 3
      %v3938 = vsel %vm3927, %v3935, %v3937
      %v3939 = vrot.slane %v3398, 3
      %v3940 = vsel %vm3927, %v3937, %v3939
      %v3941 = vrot.slane %v3399, 3
      %v3942 = vsel %vm3927, %v3939, %v3941
      %v3943 = vrot.slane %v3400, 3
      %v3944 = vsel %vm3927, %v3941, %v3943
      %v3945 = vrot.slane %v3401, 3
      %v3946 = vsel %vm3927, %v3943, %v3945
      %v3947 = vrot.slane %v3402, 3
      %v3948 = vsel %vm3927, %v3945, %v3947
      %v3949 = vrot.slane %v3403, 3
      %v3950 = vsel %vm3927, %v3947, %v3949
      %v3951 = vrot.slane %v3404, 3
      %v3952 = vsel %vm3927, %v3949, %v3951
      %v3953 = vrot.slane %v3405, 3
      %v3954 = vsel %vm3927, %v3951, %v3953
      %v3955 = vrot.slane %v3406, 3
      %v3956 = vsel %vm3927, %v3953, %v3955
      %v3957 = vrot.slane %v3407, 3
      %v3958 = vsel %vm3927, %v3955, %v3957
      %v3959 = vrot.slane %v3408, 3
      %v3960 = vsel %vm3927, %v3957, %v3959
      %v3961 = vrot.slane %v3409, 3
      %v3962 = vsel %vm3927, %v3959, %v3961
      %v3963 = vrot.slane %v3410, 3
      %v3964 = vsel %vm3927, %v3961, %v3963
      %v3965 = vrot.slane %v3411, 3
      %v3966 = vsel %vm3927, %v3963, %v3965
      %v3967 = vrot.slane %v3412, 3
      %v3968 = vsel %vm3927, %v3965, %v3967
      %v3973 = vunpack.c.l.b16 %v3920
      %v3974 = vunpack.c.l.b16 %v3921
      %v3975 = vunpack.c.l.b16 %v3922
      %v3976 = vunpack.c.l.b16 %v3923
      %v3977 = vpack.c.b16 %v3974, %v3973
      %v3978 = vpack.c.b16 %v3976, %v3975
      %v3982 = vsel %vm479, %v3930, 0
      %v3985 = vsel %vm479, %v3932, 0
      %v3988 = vsel %vm479, %v3934, 0
      %v3991 = vsel %vm479, %v3936, 0
      %v3994 = vsel %vm479, %v3938, 0
      %v3997 = vsel %vm479, %v3940, 0
      %v4000 = vsel %vm479, %v3942, 0
      %v4003 = vsel %vm479, %v3944, 0
      %v4006 = vsel %vm479, %v3946, 0
      %v4009 = vsel %vm479, %v3948, 0
      %v4012 = vsel %vm479, %v3950, 0
      %v4015 = vsel %vm479, %v3952, 0
      %v4018 = vsel %vm479, %v3954, 0
      %v4021 = vsel %vm479, %v3956, 0
      %v4024 = vsel %vm479, %v3958, 0
      %v4027 = vsel %vm479, %v3960, 0
      %v4030 = vsel %vm479, %v3962, 0
      %v4033 = vsel %vm479, %v3964, 0
      %v4036 = vsel %vm479, %v3966, 0
      %v4039 = vsel %vm479, %v3968, 0
      %v4042 = vsel %vm479, %v3967, 0
      %4044 = vmatprep.subr.bf16.mxu0 0
      %4045 = vmatpush1.bf16.msra.mxu0 %v3977
      %4046 = vmatprep.subr.bf16.mxu0 0
      %4047 = vmatpush1.bf16.msra.mxu0 %v3978
      %4048 = vmatprep.subr.bf16.mxu0 0
      %4049 = vmatpush1.bf16.msra.mxu0 0
      %4050 = vmatprep.subr.bf16.mxu0 0
      %4051 = vmatpush1.bf16.msra.mxu0 0
      %4052 = vmatprep.subr.bf16.mxu0 0
      %4053 = vmatpush1.bf16.msra.mxu0 0
      %4054 = vmatprep.subr.bf16.mxu0 0
      %4055 = vmatpush1.bf16.msra.mxu0 0
      %4056 = vmatprep.subr.bf16.mxu0 0
      %4057 = vmatpush1.bf16.msra.mxu0 0
      %4058 = vmatprep.subr.bf16.mxu0 0
      %4059 = vmatpush1.bf16.msra.mxu0 0
      %4060 = vmatprep.subr.bf16.mxu0 0
      %4061 = vmatpush1.bf16.msra.mxu0 0
      %4062 = vmatprep.subr.bf16.mxu0 0
      %4063 = vmatpush1.bf16.msra.mxu0 0
      %4064 = vmatprep.subr.bf16.mxu0 0
      %4065 = vmatpush1.bf16.msra.mxu0 0
      %4066 = vmatprep.subr.bf16.mxu0 0
      %4067 = vmatpush1.bf16.msra.mxu0 0
      %4068 = vmatprep.subr.bf16.mxu0 0
      %4069 = vmatpush1.bf16.msra.mxu0 0
      %4070 = vmatprep.subr.bf16.mxu0 0
      %4071 = vmatpush1.bf16.msra.mxu0 0
      %4072 = vmatprep.subr.bf16.mxu0 0
      %4073 = vmatpush1.bf16.msra.mxu0 0
      %4074 = vmatprep.subr.bf16.mxu0 0
      %4075 = vmatpush1.bf16.msra.mxu0 0
      %4076 = vmatprep.mubr.bf16.mxu0 0
      %4077 = vmatmul.mubr.bf16.gmra.mrb[0].mxu0 %v3982
      %v4078 = vpop.f32.mrb[0].mxu0
      %v4079 = vadd.f32 0.0, %v4078
      %v4080 = vpop.f32.mrb[0].mxu0
      %v4081 = vpop.f32.mrb[0].mxu0
      %v4082 = vadd.f32 0.0, %v4081
      %v4083 = vpop.f32.mrb[0].mxu0
      %4084 = vmatprep.mubr.bf16.mxu0 0
      %4085 = vmatmul.mubr.bf16.gmra.mrb[0].mxu0 %v3985
      %v4086 = vpop.f32.mrb[0].mxu0
      %v4087 = vadd.f32 0.0, %v4086
      %v4088 = vpop.f32.mrb[0].mxu0
      %v4089 = vpop.f32.mrb[0].mxu0
      %v4090 = vadd.f32 0.0, %v4089
      %v4091 = vpop.f32.mrb[0].mxu0
      %4092 = vmatprep.mubr.bf16.mxu0 0
      %4093 = vmatmul.mubr.bf16.gmra.mrb[0].mxu0 %v3988
      %v4094 = vpop.f32.mrb[0].mxu0
      %v4095 = vadd.f32 0.0, %v4094
      %v4096 = vpop.f32.mrb[0].mxu0
      %v4097 = vpop.f32.mrb[0].mxu0
      %v4098 = vadd.f32 0.0, %v4097
      %v4099 = vpop.f32.mrb[0].mxu0
      %4100 = vmatprep.mubr.bf16.mxu0 0
      %4101 = vmatmul.mubr.bf16.gmra.mrb[0].mxu0 %v3991
      %v4102 = vpop.f32.mrb[0].mxu0
      %v4103 = vadd.f32 0.0, %v4102
      %v4104 = vpop.f32.mrb[0].mxu0
      %v4105 = vpop.f32.mrb[0].mxu0
      %v4106 = vadd.f32 0.0, %v4105
      %v4107 = vpop.f32.mrb[0].mxu0
      %4108 = vmatprep.mubr.bf16.mxu0 0
      %4109 = vmatmul.mubr.bf16.gmra.mrb[0].mxu0 %v3994
      %v4110 = vpop.f32.mrb[0].mxu0
      %v4111 = vadd.f32 0.0, %v4110
      %v4112 = vpop.f32.mrb[0].mxu0
      %v4113 = vpop.f32.mrb[0].mxu0
      %v4114 = vadd.f32 0.0, %v4113
      %v4115 = vpop.f32.mrb[0].mxu0
      %4116 = vmatprep.mubr.bf16.mxu0 0
      %4117 = vmatmul.mubr.bf16.gmra.mrb[0].mxu0 %v3997
      %v4118 = vpop.f32.mrb[0].mxu0
      %v4119 = vadd.f32 0.0, %v4118
      %v4120 = vpop.f32.mrb[0].mxu0
      %v4121 = vpop.f32.mrb[0].mxu0
      %v4122 = vadd.f32 0.0, %v4121
      %v4123 = vpop.f32.mrb[0].mxu0
      %4124 = vmatprep.mubr.bf16.mxu0 0
      %4125 = vmatmul.mubr.bf16.gmra.mrb[0].mxu0 %v4000
      %v4126 = vpop.f32.mrb[0].mxu0
      %v4127 = vadd.f32 0.0, %v4126
      %v4128 = vpop.f32.mrb[0].mxu0
      %v4129 = vpop.f32.mrb[0].mxu0
      %v4130 = vadd.f32 0.0, %v4129
      %v4131 = vpop.f32.mrb[0].mxu0
      %4132 = vmatprep.mubr.bf16.mxu0 0
      %4133 = vmatmul.mubr.bf16.gmra.mrb[0].mxu0 %v4003
      %v4134 = vpop.f32.mrb[0].mxu0
      %v4135 = vadd.f32 0.0, %v4134
      %v4136 = vpop.f32.mrb[0].mxu0
      %v4137 = vpop.f32.mrb[0].mxu0
      %v4138 = vadd.f32 0.0, %v4137
      %v4139 = vpop.f32.mrb[0].mxu0
      %4140 = vmatprep.mubr.bf16.mxu0 0
      %4141 = vmatmul.mubr.bf16.gmra.mrb[0].mxu0 %v4006
      %v4142 = vpop.f32.mrb[0].mxu0
      %v4143 = vadd.f32 0.0, %v4142
      %v4144 = vpop.f32.mrb[0].mxu0
      %v4145 = vpop.f32.mrb[0].mxu0
      %v4146 = vadd.f32 0.0, %v4145
      %v4147 = vpop.f32.mrb[0].mxu0
      %4148 = vmatprep.mubr.bf16.mxu0 0
      %4149 = vmatmul.mubr.bf16.gmra.mrb[0].mxu0 %v4009
      %v4150 = vpop.f32.mrb[0].mxu0
      %v4151 = vadd.f32 0.0, %v4150
      %v4152 = vpop.f32.mrb[0].mxu0
      %v4153 = vpop.f32.mrb[0].mxu0
      %v4154 = vadd.f32 0.0, %v4153
      %v4155 = vpop.f32.mrb[0].mxu0
      %4156 = vmatprep.mubr.bf16.mxu0 0
      %4157 = vmatmul.mubr.bf16.gmra.mrb[0].mxu0 %v4012
      %v4158 = vpop.f32.mrb[0].mxu0
      %v4159 = vadd.f32 0.0, %v4158
      %v4160 = vpop.f32.mrb[0].mxu0
      %v4161 = vpop.f32.mrb[0].mxu0
      %v4162 = vadd.f32 0.0, %v4161
      %v4163 = vpop.f32.mrb[0].mxu0
      %4164 = vmatprep.mubr.bf16.mxu0 0
      %4165 = vmatmul.mubr.bf16.gmra.mrb[0].mxu0 %v4015
      %v4166 = vpop.f32.mrb[0].mxu0
      %v4167 = vadd.f32 0.0, %v4166
      %v4168 = vpop.f32.mrb[0].mxu0
      %v4169 = vpop.f32.mrb[0].mxu0
      %v4170 = vadd.f32 0.0, %v4169
      %v4171 = vpop.f32.mrb[0].mxu0
      %4172 = vmatprep.mubr.bf16.mxu0 0
      %4173 = vmatmul.mubr.bf16.gmra.mrb[0].mxu0 %v4018
      %v4174 = vpop.f32.mrb[0].mxu0
      %v4175 = vadd.f32 0.0, %v4174
      %v4176 = vpop.f32.mrb[0].mxu0
      %v4177 = vpop.f32.mrb[0].mxu0
      %v4178 = vadd.f32 0.0, %v4177
      %v4179 = vpop.f32.mrb[0].mxu0
      %4180 = vmatprep.mubr.bf16.mxu0 0
      %4181 = vmatmul.mubr.bf16.gmra.mrb[0].mxu0 %v4021
      %v4182 = vpop.f32.mrb[0].mxu0
      %v4183 = vadd.f32 0.0, %v4182
      %v4184 = vpop.f32.mrb[0].mxu0
      %v4185 = vpop.f32.mrb[0].mxu0
      %v4186 = vadd.f32 0.0, %v4185
      %v4187 = vpop.f32.mrb[0].mxu0
      %4188 = vmatprep.mubr.bf16.mxu0 0
      %4189 = vmatmul.mubr.bf16.gmra.mrb[0].mxu0 %v4024
      %v4190 = vpop.f32.mrb[0].mxu0
      %v4191 = vadd.f32 0.0, %v4190
      %v4192 = vpop.f32.mrb[0].mxu0
      %v4193 = vpop.f32.mrb[0].mxu0
      %v4194 = vadd.f32 0.0, %v4193
      %v4195 = vpop.f32.mrb[0].mxu0
      %4196 = vmatprep.mubr.bf16.mxu0 0
      %4197 = vmatmul.mubr.bf16.gmra.mrb[0].mxu0 %v4027
      %v4198 = vpop.f32.mrb[0].mxu0
      %v4199 = vadd.f32 0.0, %v4198
      %v4200 = vpop.f32.mrb[0].mxu0
      %v4201 = vpop.f32.mrb[0].mxu0
      %v4202 = vadd.f32 0.0, %v4201
      %v4203 = vpop.f32.mrb[0].mxu0
      %4204 = vmatprep.mubr.bf16.mxu0 0
      %4205 = vmatmul.mubr.bf16.gmra.mrb[0].mxu0 %v4030
      %v4206 = vpop.f32.mrb[0].mxu0
      %v4207 = vadd.f32 0.0, %v4206
      %v4208 = vpop.f32.mrb[0].mxu0
      %v4209 = vpop.f32.mrb[0].mxu0
      %v4210 = vadd.f32 0.0, %v4209
      %v4211 = vpop.f32.mrb[0].mxu0
      %4212 = vmatprep.mubr.bf16.mxu0 0
      %4213 = vmatmul.mubr.bf16.gmra.mrb[0].mxu0 %v4033
      %v4214 = vpop.f32.mrb[0].mxu0
      %v4215 = vadd.f32 0.0, %v4214
      %v4216 = vpop.f32.mrb[0].mxu0
      %v4217 = vpop.f32.mrb[0].mxu0
      %v4218 = vadd.f32 0.0, %v4217
      %v4219 = vpop.f32.mrb[0].mxu0
      %4220 = vmatprep.mubr.bf16.mxu0 0
      %4221 = vmatmul.mubr.bf16.gmra.mrb[0].mxu0 %v4036
      %v4222 = vpop.f32.mrb[0].mxu0
      %v4223 = vadd.f32 0.0, %v4222
      %v4224 = vpop.f32.mrb[0].mxu0
      %v4225 = vpop.f32.mrb[0].mxu0
      %v4226 = vadd.f32 0.0, %v4225
      %v4227 = vpop.f32.mrb[0].mxu0
      %4228 = vmatprep.mubr.bf16.mxu0 0
      %4229 = vmatmul.mubr.bf16.gmra.mrb[0].mxu0 %v4039
      %v4230 = vpop.f32.mrb[0].mxu0
      %v4231 = vadd.f32 0.0, %v4230
      %v4232 = vpop.f32.mrb[0].mxu0
      %v4233 = vpop.f32.mrb[0].mxu0
      %v4234 = vadd.f32 0.0, %v4233
      %v4235 = vpop.f32.mrb[0].mxu0
      %4236 = vmatprep.mubr.bf16.mxu0 0
      %4237 = vmatmul.mubr.bf16.gmra.mrb[0].mxu0 %v4042
      %v4238 = vpop.f32.mrb[0].mxu0
      %v4239 = vadd.f32 0.0, %v4238
      %v4240 = vpop.f32.mrb[0].mxu0
      %v4241 = vpop.f32.mrb[0].mxu0
      %v4242 = vpop.f32.mrb[0].mxu0
      %4243 = vdwg.mxu0
      %v4244 = vadd.f32 %v3877, %v4079
      %v4245 = vadd.f32 %v3878, %v4082
      %v4246 = vadd.f32 %v3879, %v4087
      %v4247 = vadd.f32 %v3880, %v4090
      %v4248 = vadd.f32 %v3881, %v4095
      %v4249 = vadd.f32 %v3882, %v4098
      %v4250 = vadd.f32 %v3883, %v4103
      %v4251 = vadd.f32 %v3884, %v4106
      %v4252 = vadd.f32 %v3885, %v4111
      %v4253 = vadd.f32 %v3886, %v4114
      %v4254 = vadd.f32 %v3887, %v4119
      %v4255 = vadd.f32 %v3888, %v4122
      %v4256 = vadd.f32 %v3889, %v4127
      %v4257 = vadd.f32 %v3890, %v4130
      %v4258 = vadd.f32 %v3891, %v4135
      %v4259 = vadd.f32 %v3892, %v4138
      %v4260 = vadd.f32 %v3893, %v4143
      %v4261 = vadd.f32 %v3894, %v4146
      %v4262 = vadd.f32 %v3895, %v4151
      %v4263 = vadd.f32 %v3896, %v4154
      %v4264 = vadd.f32 %v3897, %v4159
      %v4265 = vadd.f32 %v3898, %v4162
      %v4266 = vadd.f32 %v3899, %v4167
      %v4267 = vadd.f32 %v3900, %v4170
      %v4268 = vadd.f32 %v3901, %v4175
      %v4269 = vadd.f32 %v3902, %v4178
      %v4270 = vadd.f32 %v3903, %v4183
      %v4271 = vadd.f32 %v3904, %v4186
      %v4272 = vadd.f32 %v3905, %v4191
      %v4273 = vadd.f32 %v3906, %v4194
      %v4274 = vadd.f32 %v3907, %v4199
      %v4275 = vadd.f32 %v3908, %v4202
      %v4276 = vadd.f32 %v3909, %v4207
      %v4277 = vadd.f32 %v3910, %v4210
      %v4278 = vadd.f32 %v3911, %v4215
      %v4279 = vadd.f32 %v3912, %v4218
      %v4280 = vadd.f32 %v3913, %v4223
      %v4281 = vadd.f32 %v3914, %v4226
      %v4282 = vadd.f32 %v3915, %v4231
      %v4283 = vadd.f32 %v3916, %v4234
      %v4284 = vadd.f32 %v3917, %v4239
      %4285 = vst [vmem:[%s143] sm:$0xff] %v4244
      %4286 = vst [vmem:[%s143 + $0x8] sm:$0xff] %v4245
      %4287 = vst [vmem:[%s143 + $0x10] sm:$0xff] %v4246
      %4288 = vst [vmem:[%s143 + $0x18] sm:$0xff] %v4247
      %4289 = vst [vmem:[%s143 + $0x20] sm:$0xff] %v4248
      %4290 = vst [vmem:[%s143 + $0x28] sm:$0xff] %v4249
      %4291 = vst [vmem:[%s143 + $0x30] sm:$0xff] %v4250
      %4292 = vst [vmem:[%s143 + $0x38] sm:$0xff] %v4251
      %4293 = vst [vmem:[%s143 + $0x40] sm:$0xff] %v4252
      %4294 = vst [vmem:[%s143 + $0x48] sm:$0xff] %v4253
      %4295 = vst [vmem:[%s143 + $0x50] sm:$0xff] %v4254
      %4296 = vst [vmem:[%s143 + $0x58] sm:$0xff] %v4255
      %4297 = vst [vmem:[%s143 + $0x60] sm:$0xff] %v4256
      %4298 = vst [vmem:[%s143 + $0x68] sm:$0xff] %v4257
      %4299 = vst [vmem:[%s143 + $0x70] sm:$0xff] %v4258
      %4300 = vst [vmem:[%s143 + $0x78] sm:$0xff] %v4259
      %4301 = vst [vmem:[%s143 + $0x80] sm:$0xff] %v4260
      %4302 = vst [vmem:[%s143 + $0x88] sm:$0xff] %v4261
      %4303 = vst [vmem:[%s143 + $0x90] sm:$0xff] %v4262
      %4304 = vst [vmem:[%s143 + $0x98] sm:$0xff] %v4263
      %4305 = vst [vmem:[%s143 + $0xa0] sm:$0xff] %v4264
      %4306 = vst [vmem:[%s143 + $0xa8] sm:$0xff] %v4265
      %4307 = vst [vmem:[%s143 + $0xb0] sm:$0xff] %v4266
      %4308 = vst [vmem:[%s143 + $0xb8] sm:$0xff] %v4267
      %4309 = vst [vmem:[%s143 + $0xc0] sm:$0xff] %v4268
      %4310 = vst [vmem:[%s143 + $0xc8] sm:$0xff] %v4269
      %4311 = vst [vmem:[%s143 + $0xd0] sm:$0xff] %v4270
      %4312 = vst [vmem:[%s143 + $0xd8] sm:$0xff] %v4271
      %4313 = vst [vmem:[%s143 + $0xe0] sm:$0xff] %v4272
      %4314 = vst [vmem:[%s143 + $0xe8] sm:$0xff] %v4273
      %4315 = vst [vmem:[%s143 + $0xf0] sm:$0xff] %v4274
      %4316 = vst [vmem:[%s143 + $0xf8] sm:$0xff] %v4275
      %4317 = vst [vmem:[%s143 + $0x100] sm:$0xff] %v4276
      %4318 = vst [vmem:[%s143 + $0x108] sm:$0xff] %v4277
      %4319 = vst [vmem:[%s143 + $0x110] sm:$0xff] %v4278
      %4320 = vst [vmem:[%s143 + $0x118] sm:$0xff] %v4279
      %4321 = vst [vmem:[%s143 + $0x120] sm:$0xff] %v4280
      %4322 = vst [vmem:[%s143 + $0x128] sm:$0xff] %v4281
      %4323 = vst [vmem:[%s143 + $0x130] sm:$0xff] %v4282
      %4324 = vst [vmem:[%s143 + $0x138] sm:$0xff] %v4283
      %4325 = vst [vmem:[%s143 + $0x140] sm:$0xf] %v4284
      %p4326 = scmp.lt.s32.totalorder %s13, 3
      %s4327 = scalar_select %p4326, %s13, 3
      %s4328 = smul.addr %s4327, 41
      %s4329 = smul.addr %s4328, 8
      %s4330 = scalar_lea.vmem %s2, %s4329
      // Predicated region
      $region29: #{dense_block_forward.8} parent=27 // pred_check
        %p4331 = pneg %p78
      $region30: #{dense_block_forward.8} parent=27 // pred_check_branch
        %4333 = sbr.rel (%p4331) target = $region32
      $region31: #{dense_block_forward.8} parent=27 // pred_region
        _
      $region32: #{dense_block_forward.8} parent=27 // pred_fallthru
        _
    $region28: #{dense_block_forward.8} parent=5 // pred_fallthru
      _
    %p4334 = scmp.le.s32.totalorder 2, %s8
    // Predicated region
    $region33: #{dense_block_forward.8} parent=5 // pred_check
      %p4335 = pneg %p4334
    $region34: #{dense_block_forward.8} parent=5 // pred_check_branch
      %4337 = sbr.rel (%p4335) target = $region36
    $region35: #{dense_block_forward.8} parent=5 // pred_region
      %s4338 = ssub.s32 %s8, 2
      // Predicated region
      $region37: #{dense_block_forward.8} parent=35 // pred_check
        %p4339 = pneg %p84
      $region38: #{dense_block_forward.8} parent=35 // pred_check_branch
        %4341 = sbr.rel (%p4339) target = $region40
      $region39: #{dense_block_forward.8} parent=35 // pred_region
        %p4342 = scmp.lt.s32.totalorder %s14, 3
        %s4343 = scalar_select %p4342, %s14, 3
        %s4344 = smul.addr %s4343, 41
        %s4345 = smul.addr %s4344, 8
        %s4346 = scalar_lea.vmem %s2, %s4345
      $region40: #{dense_block_forward.8} parent=35 // pred_fallthru
        _
    $region36: #{dense_block_forward.8} parent=5 // pred_fallthru
      _
  $region6: #{dense_block_forward.8} parent=0 // loop_footer
    %s12 = sadd.s32 1, %s8
  $region7: #{dense_block_forward.8} parent=0 // loop_footer_branch
    %7 = sbr.rel target = $region3
  $region8: #{dense_block_forward.8} parent=0 // loop_exit
    _

// kernel: dense_block_forward.13
$region0: #{dense_block_forward.13}
  #allocation0 [shape = 'u32[]', space=smem, size = 0x4, offset = 0x4, fixed_abs, tag = 'smem constant byte address 0x4 - core index']
  #allocation1 [shape = 'u32[144,128]{1,0:T(1,128)}', space=vmem, size = 0x12000, scoped, tag = 'internal scratch']
  %s0 = inlined_call_operand.vmem [shape: f32[4,256,32], index: 0, kind: input, shape index: {}]
  %s1 = inlined_call_operand.vmem [shape: f32[1,32], index: 1, kind: input, shape index: {}]
  %s2 = inlined_call_operand.vmem [shape: f32[1,32], index: 2, kind: input, shape index: {}]
  %s3 = inlined_call_operand.vmem [shape: bf16[32,128], index: 3, kind: input, shape index: {}]
  %s4 = inlined_call_operand.hbm [shape: f32[256,128], index: 4, kind: output, shape index: {}]
  %s5 = sld [smem:[#allocation0]]
  $region87: #{dense_block_forward.13} parent=0
    _
  %s7 = ssub.s32 1, %s5
  %s8 = scalar_select 0, %s7, %s5
  $region1: #{dense_block_forward.13} parent=0
    #allocation2 [shape = 'u8[524288]{0}', space=vmem, size = 0x80000, scoped, tag = 'input window, operand 0']
    #allocation3 [shape = 'u8[131072]{0}', space=vmem, size = 0x20000, scoped, tag = 'output window, operand 0']
    #allocation4 [shape = 's32[2]{0}', space=sflag, size = 0x8, scoped, tag = 'scoped memory for dense_block_forward.13']
    %9 = vsyncpa [#allocation4], 0
    %s10 = scalar_lea.sflag [#allocation4], 1
    %11 = vsyncpa %s10, 0
    loop: start=0, step=1, limit=4
    $region2: #{dense_block_forward.13} parent=1 // loop_pre_header
      _
    $region3: #{dense_block_forward.13} parent=1 // loop_header
      %s13 = sphi 0, %s17
      %p14 = scmp.ge.s32.totalorder %s13, 4
      %s23 = sphi 0, %s25
      %s26 = sphi 0, %s23
      %s27 = sphi 0, %s26
      %s43 = sphi 0, %s27
      %s47 = sphi 0, %s47
      %s49 = sphi 0, %s47
      %s50 = sphi 0, %s49
      %s64 = sphi 0, %s50
      %s68 = sphi 0, %s68
      %s70 = sphi 0, %s68
      %s71 = sphi 0, %s70
      %s85 = sphi 0, %s71
      %s89 = sphi 0, %s89
      %s91 = sphi 0, %s89
      %s92 = sphi 0, %s91
      %s106 = sphi 0, %s92
      %s112 = sphi 0, %s114
      %s115 = sphi 0, %s112
      %s116 = sphi 0, %s115
      %s132 = sphi 0, %s116
    $region4: #{dense_block_forward.13} parent=1 // loop_header_branch
      %16 = sbr.rel (%p14) target = $region8
    $region5: #{dense_block_forward.13} parent=1 // loop_body
      %s18 = ssub.s32 %s13, 1
      %s19 = ssub.s32 %s13, 2
      %s20 = sadd.s32 %s13, 1
      %s21 = ssub.s32 %s13, %s20
      %p22 = scmp.eq.s32.totalorder %s21, 0
      %s24 = sadd.s32 %s23, 1
      %s25 = scalar_select %p22, %s23, %s24
      %p28 = pneg %p22
      %p29 = scmp.eq.s32.totalorder %s13, 1
      %p30 = por %p28, %p29
      %p31 = scmp.ne.s32.totalorder %s23, %s26
      %p32 = scmp.eq.s32.totalorder %s13, 0
      %p33 = por %p31, %p32
      %p34 = scmp.ne.s32.totalorder %s23, %s26
      %p35 = scmp.eq.s32.totalorder %s18, 1
      %p36 = por %p34, %p35
      %p37 = scmp.ne.s32.totalorder %s26, %s27
      %p38 = scmp.eq.s32.totalorder %s18, 0
      %p39 = por %p37, %p38
      %p40 = scmp.ne.s32.totalorder %s26, %s27
      %p41 = scmp.eq.s32.totalorder %s19, 1
      %p42 = por %p40, %p41
      %p44 = scmp.ne.s32.totalorder %s27, %s43
      %p45 = scmp.eq.s32.totalorder %s19, 0
      %p46 = por %p44, %p45
      %s48 = sadd.s32 %s47, 1
      %p51 = scmp.eq.s32.totalorder %s13, 1
      %p52 = scmp.ne.s32.totalorder %s47, %s49
      %p53 = scmp.eq.s32.totalorder %s13, 0
      %p54 = por %p52, %p53
      %p55 = scmp.ne.s32.totalorder %s47, %s49
      %p56 = scmp.eq.s32.totalorder %s18, 1
      %p57 = por %p55, %p56
      %p58 = scmp.ne.s32.totalorder %s49, %s50
      %p59 = scmp.eq.s32.totalorder %s18, 0
      %p60 = por %p58, %p59
      %p61 = scmp.ne.s32.totalorder %s49, %s50
      %p62 = scmp.eq.s32.totalorder %s19, 1
      %p63 = por %p61, %p62
      %p65 = scmp.ne.s32.totalorder %s50, %s64
      %p66 = scmp.eq.s32.totalorder %s19, 0
      %p67 = por %p65, %p66
      %s69 = sadd.s32 %s68, 1
      %p72 = scmp.eq.s32.totalorder %s13, 1
      %p73 = scmp.ne.s32.totalorder %s68, %s70
      %p74 = scmp.eq.s32.totalorder %s13, 0
      %p75 = por %p73, %p74
      %p76 = scmp.ne.s32.totalorder %s68, %s70
      %p77 = scmp.eq.s32.totalorder %s18, 1
      %p78 = por %p76, %p77
      %p79 = scmp.ne.s32.totalorder %s70, %s71
      %p80 = scmp.eq.s32.totalorder %s18, 0
      %p81 = por %p79, %p80
      %p82 = scmp.ne.s32.totalorder %s70, %s71
      %p83 = scmp.eq.s32.totalorder %s19, 1
      %p84 = por %p82, %p83
      %p86 = scmp.ne.s32.totalorder %s71, %s85
      %p87 = scmp.eq.s32.totalorder %s19, 0
      %p88 = por %p86, %p87
      %s90 = sadd.s32 %s89, 1
      %p93 = scmp.eq.s32.totalorder %s13, 1
      %p94 = scmp.ne.s32.totalorder %s89, %s91
      %p95 = scmp.eq.s32.totalorder %s13, 0
      %p96 = por %p94, %p95
      %p97 = scmp.ne.s32.totalorder %s89, %s91
      %p98 = scmp.eq.s32.totalorder %s18, 1
      %p99 = por %p97, %p98
      %p100 = scmp.ne.s32.totalorder %s91, %s92
      %p101 = scmp.eq.s32.totalorder %s18, 0
      %p102 = por %p100, %p101
      %p103 = scmp.ne.s32.totalorder %s91, %s92
      %p104 = scmp.eq.s32.totalorder %s19, 1
      %p105 = por %p103, %p104
      %p107 = scmp.ne.s32.totalorder %s92, %s106
      %p108 = scmp.eq.s32.totalorder %s19, 0
      %p109 = por %p107, %p108
      %s110 = ssub.s32 %s13, %s20
      %p111 = scmp.eq.s32.totalorder %s110, 0
      %s113 = sadd.s32 %s112, 1
      %s114 = scalar_select %p111, %s112, %s113
      %p117 = pneg %p111
      %p118 = scmp.eq.s32.totalorder %s13, 1
      %p119 = por %p117, %p118
      %p120 = scmp.ne.s32.totalorder %s112, %s115
      %p121 = scmp.eq.s32.totalorder %s13, 0
      %p122 = por %p120, %p121
      %p123 = scmp.ne.s32.totalorder %s112, %s115
      %p124 = scmp.eq.s32.totalorder %s18, 1
      %p125 = por %p123, %p124
      %p126 = scmp.ne.s32.totalorder %s115, %s116
      %p127 = scmp.eq.s32.totalorder %s18, 0
      %p128 = por %p126, %p127
      %p129 = scmp.ne.s32.totalorder %s115, %s116
      %p130 = scmp.eq.s32.totalorder %s19, 1
      %p131 = por %p129, %p130
      %p133 = scmp.ne.s32.totalorder %s116, %s132
      %p134 = scmp.eq.s32.totalorder %s19, 0
      %p135 = por %p133, %p134
      %p136 = scmp.le.s32.totalorder 1, %s13
      %p137 = scmp.lt.s32.totalorder %s13, 3
      %p138 = pnand %p136, %p137
      %p139 = pneg %p138
      // Predicated region
      $region9: #{dense_block_forward.13} parent=5 // pred_check
        _
      $region10: #{dense_block_forward.13} parent=5 // pred_check_branch
        %141 = sbr.rel (%p138) target = $region12
      $region11: #{dense_block_forward.13} parent=5 // pred_region
        %s142 = ssub.s32 %s13, 1
        // Predicated region
        $region13: #{dense_block_forward.13} parent=11 // pred_check
          %p143 = pneg %p60
        $region14: #{dense_block_forward.13} parent=11 // pred_check_branch
          %145 = sbr.rel (%p143) target = $region16
        $region15: #{dense_block_forward.13} parent=11 // pred_region
          _
        $region16: #{dense_block_forward.13} parent=11 // pred_fallthru
          _
        // Predicated region
        $region17: #{dense_block_forward.13} parent=11 // pred_check
          %p146 = pneg %p81
        $region18: #{dense_block_forward.13} parent=11 // pred_check_branch
          %148 = sbr.rel (%p146) target = $region20
        $region19: #{dense_block_forward.13} parent=11 // pred_region
          _
        $region20: #{dense_block_forward.13} parent=11 // pred_fallthru
          _
        // Predicated region
        $region21: #{dense_block_forward.13} parent=11 // pred_check
          %p149 = pneg %p102
        $region22: #{dense_block_forward.13} parent=11 // pred_check_branch
          %151 = sbr.rel (%p149) target = $region24
        $region23: #{dense_block_forward.13} parent=11 // pred_region
          _
        $region24: #{dense_block_forward.13} parent=11 // pred_fallthru
          _
      $region12: #{dense_block_forward.13} parent=5 // pred_fallthru
        _
      %p152 = scmp.lt.s32.totalorder %s13, 2
      // Predicated region
      $region25: #{dense_block_forward.13} parent=5 // pred_check
        %p153 = pneg %p152
      $region26: #{dense_block_forward.13} parent=5 // pred_check_branch
        %155 = sbr.rel (%p153) target = $region28
      $region27: #{dense_block_forward.13} parent=5 // pred_region
        // Predicated region
        $region29: #{dense_block_forward.13} parent=27 // pred_check
          %p156 = pneg %p33
        $region30: #{dense_block_forward.13} parent=27 // pred_check_branch
          %158 = sbr.rel (%p156) target = $region32
        $region31: #{dense_block_forward.13} parent=27 // pred_region
          %s159 = sand.u32 %s23, 1
          %s160 = sand.u32 %s23, 1
          %s161 = smul.addr %s160, 512
          %s162 = scalar_lea.vmem [#allocation2], %s161
          %s163 = smul.u32 16, %s13
          %s164 = smul.addr %s163, 8
          %s165 = scalar_lea.vmem %s0, %s164
          // Predicated region
          $region33: #{dense_block_forward.13} parent=31 // pred_check
            _
          $region34: #{dense_block_forward.13} parent=31 // pred_check_branch
            %167 = sbr.rel (0) target = $region36
          $region35: #{dense_block_forward.13} parent=31 // pred_region
            // Predicated region
            $region37: #{dense_block_forward.13} parent=35 // pred_check
              _
            $region38: #{dense_block_forward.13} parent=35 // pred_check_branch
              %169 = sbr.rel (0) target = $region40
            $region39: #{dense_block_forward.13} parent=35 // pred_region
              // Predicated region
              $region52: #{dense_block_forward.13} parent=39 // pred_check
                _
              $region53: #{dense_block_forward.13} parent=39 // pred_check_branch
                %310 = sbr.rel (0) target = $region55
              $region54: #{dense_block_forward.13} parent=39 // pred_region
                loop: start=0, step=1, limit=1
                $region56: #{dense_block_forward.13} parent=54 // loop_pre_header
                  _
                $region57: #{dense_block_forward.13} parent=54 // loop_header
                  %s312 = sphi 0, %s316
                  %p313 = scmp.ge.s32.totalorder %s312, 1
                  %s317 = sphi %s165, %s165
                  %s318 = sphi %s162, %s162
                $region58: #{dense_block_forward.13} parent=54 // loop_header_branch
                  %315 = sbr.rel (%p313) target = $region62
                $region59: #{dense_block_forward.13} parent=54 // loop_body
                  %v319 = vld [vmem:[%s317] sm:$0xff]
                  %320 = vst [vmem:[%s318] sm:$0xff] %v319
                  %v321 = vld [vmem:[%s317 + $0x8] sm:$0xff]
                  %322 = vst [vmem:[%s318 + $0x8] sm:$0xff] %v321
                  %v323 = vld [vmem:[%s317 + $0x10] sm:$0xff]
                  %324 = vst [vmem:[%s318 + $0x10] sm:$0xff] %v323
                  %v325 = vld [vmem:[%s317 + $0x18] sm:$0xff]
                  %326 = vst [vmem:[%s318 + $0x18] sm:$0xff] %v325
                  %v327 = vld [vmem:[%s317 + $0x20] sm:$0xff]
                  %328 = vst [vmem:[%s318 + $0x20] sm:$0xff] %v327
                  %v329 = vld [vmem:[%s317 + $0x28] sm:$0xff]
                  %330 = vst [vmem:[%s318 + $0x28] sm:$0xff] %v329
                  %v331 = vld [vmem:[%s317 + $0x30] sm:$0xff]
                  %332 = vst [vmem:[%s318 + $0x30] sm:$0xff] %v331
                  %v333 = vld [vmem:[%s317 + $0x38] sm:$0xff]
                  %334 = vst [vmem:[%s318 + $0x38] sm:$0xff] %v333
                  %v335 = vld [vmem:[%s317 + $0x40] sm:$0xff]
                  %336 = vst [vmem:[%s318 + $0x40] sm:$0xff] %v335
                  %v337 = vld [vmem:[%s317 + $0x48] sm:$0xff]
                  %338 = vst [vmem:[%s318 + $0x48] sm:$0xff] %v337
                  %v339 = vld [vmem:[%s317 + $0x50] sm:$0xff]
                  %340 = vst [vmem:[%s318 + $0x50] sm:$0xff] %v339
                  %v341 = vld [vmem:[%s317 + $0x58] sm:$0xff]
                  %342 = vst [vmem:[%s318 + $0x58] sm:$0xff] %v341
                  %v343 = vld [vmem:[%s317 + $0x60] sm:$0xff]
                  %344 = vst [vmem:[%s318 + $0x60] sm:$0xff] %v343
                  %v345 = vld [vmem:[%s317 + $0x68] sm:$0xff]
                  %346 = vst [vmem:[%s318 + $0x68] sm:$0xff] %v345
                  %v347 = vld [vmem:[%s317 + $0x70] sm:$0xff]
                  %348 = vst [vmem:[%s318 + $0x70] sm:$0xff] %v347
                  %v349 = vld [vmem:[%s317 + $0x78] sm:$0xff]
                  %350 = vst [vmem:[%s318 + $0x78] sm:$0xff] %v349
                  %v351 = vld [vmem:[%s317 + $0x100] sm:$0xff]
                  %352 = vst [vmem:[%s318 + $0x80] sm:$0xff] %v351
                  %v353 = vld [vmem:[%s317 + $0x108] sm:$0xff]
                  %354 = vst [vmem:[%s318 + $0x88] sm:$0xff] %v353
                  %v355 = vld [vmem:[%s317 + $0x110] sm:$0xff]
                  %356 = vst [vmem:[%s318 + $0x90] sm:$0xff] %v355
                  %v357 = vld [vmem:[%s317 + $0x118] sm:$0xff]
                  %358 = vst [vmem:[%s318 + $0x98] sm:$0xff] %v357
                  %v359 = vld [vmem:[%s317 + $0x120] sm:$0xff]
                  %360 = vst [vmem:[%s318 + $0xa0] sm:$0xff] %v359
                  %v361 = vld [vmem:[%s317 + $0x128] sm:$0xff]
                  %362 = vst [vmem:[%s318 + $0xa8] sm:$0xff] %v361
                  %v363 = vld [vmem:[%s317 + $0x130] sm:$0xff]
                  %364 = vst [vmem:[%s318 + $0xb0] sm:$0xff] %v363
                  %v365 = vld [vmem:[%s317 + $0x138] sm:$0xff]
                  %366 = vst [vmem:[%s318 + $0xb8] sm:$0xff] %v365
                  %v367 = vld [vmem:[%s317 + $0x140] sm:$0xff]
                  %368 = vst [vmem:[%s318 + $0xc0] sm:$0xff] %v367
                  %v369 = vld [vmem:[%s317 + $0x148] sm:$0xff]
                  %370 = vst [vmem:[%s318 + $0xc8] sm:$0xff] %v369
                  %v371 = vld [vmem:[%s317 + $0x150] sm:$0xff]
                  %372 = vst [vmem:[%s318 + $0xd0] sm:$0xff] %v371
                  %v373 = vld [vmem:[%s317 + $0x158] sm:$0xff]
                  %374 = vst [vmem:[%s318 + $0xd8] sm:$0xff] %v373
                  %v375 = vld [vmem:[%s317 + $0x160] sm:$0xff]
                  %376 = vst [vmem:[%s318 + $0xe0] sm:$0xff] %v375
                  %v377 = vld [vmem:[%s317 + $0x168] sm:$0xff]
                  %378 = vst [vmem:[%s318 + $0xe8] sm:$0xff] %v377
                  %v379 = vld [vmem:[%s317 + $0x170] sm:$0xff]
                  %380 = vst [vmem:[%s318 + $0xf0] sm:$0xff] %v379
                  %v381 = vld [vmem:[%s317 + $0x178] sm:$0xff]
                  %382 = vst [vmem:[%s318 + $0xf8] sm:$0xff] %v381
                  %v383 = vld [vmem:[%s317 + $0x200] sm:$0xff]
                  %384 = vst [vmem:[%s318 + $0x100] sm:$0xff] %v383
                  %v385 = vld [vmem:[%s317 + $0x208] sm:$0xff]
                  %386 = vst [vmem:[%s318 + $0x108] sm:$0xff] %v385
                  %v387 = vld [vmem:[%s317 + $0x210] sm:$0xff]
                  %388 = vst [vmem:[%s318 + $0x110] sm:$0xff] %v387
                  %v389 = vld [vmem:[%s317 + $0x218] sm:$0xff]
                  %390 = vst [vmem:[%s318 + $0x118] sm:$0xff] %v389
                  %v391 = vld [vmem:[%s317 + $0x220] sm:$0xff]
                  %392 = vst [vmem:[%s318 + $0x120] sm:$0xff] %v391
                  %v393 = vld [vmem:[%s317 + $0x228] sm:$0xff]
                  %394 = vst [vmem:[%s318 + $0x128] sm:$0xff] %v393
                  %v395 = vld [vmem:[%s317 + $0x230] sm:$0xff]
                  %396 = vst [vmem:[%s318 + $0x130] sm:$0xff] %v395
                  %v397 = vld [vmem:[%s317 + $0x238] sm:$0xff]
                  %398 = vst [vmem:[%s318 + $0x138] sm:$0xff] %v397
                  %v399 = vld [vmem:[%s317 + $0x240] sm:$0xff]
                  %400 = vst [vmem:[%s318 + $0x140] sm:$0xff] %v399
                  %v401 = vld [vmem:[%s317 + $0x248] sm:$0xff]
                  %402 = vst [vmem:[%s318 + $0x148] sm:$0xff] %v401
                  %v403 = vld [vmem:[%s317 + $0x250] sm:$0xff]
                  %404 = vst [vmem:[%s318 + $0x150] sm:$0xff] %v403
                  %v405 = vld [vmem:[%s317 + $0x258] sm:$0xff]
                  %406 = vst [vmem:[%s318 + $0x158] sm:$0xff] %v405
                  %v407 = vld [vmem:[%s317 + $0x260] sm:$0xff]
                  %408 = vst [vmem:[%s318 + $0x160] sm:$0xff] %v407
                  %v409 = vld [vmem:[%s317 + $0x268] sm:$0xff]
                  %410 = vst [vmem:[%s318 + $0x168] sm:$0xff] %v409
                  %v411 = vld [vmem:[%s317 + $0x270] sm:$0xff]
                  %412 = vst [vmem:[%s318 + $0x170] sm:$0xff] %v411
                  %v413 = vld [vmem:[%s317 + $0x278] sm:$0xff]
                  %414 = vst [vmem:[%s318 + $0x178] sm:$0xff] %v413
                  %v415 = vld [vmem:[%s317 + $0x300] sm:$0xff]
                  %416 = vst [vmem:[%s318 + $0x180] sm:$0xff] %v415
                  %v417 = vld [vmem:[%s317 + $0x308] sm:$0xff]
                  %418 = vst [vmem:[%s318 + $0x188] sm:$0xff] %v417
                  %v419 = vld [vmem:[%s317 + $0x310] sm:$0xff]
                  %420 = vst [vmem:[%s318 + $0x190] sm:$0xff] %v419
                  %v421 = vld [vmem:[%s317 + $0x318] sm:$0xff]
                  %422 = vst [vmem:[%s318 + $0x198] sm:$0xff] %v421
                  %v423 = vld [vmem:[%s317 + $0x320] sm:$0xff]
                  %424 = vst [vmem:[%s318 + $0x1a0] sm:$0xff] %v423
                  %v425 = vld [vmem:[%s317 + $0x328] sm:$0xff]
                  %426 = vst [vmem:[%s318 + $0x1a8] sm:$0xff] %v425
                  %v427 = vld [vmem:[%s317 + $0x330] sm:$0xff]
                  %428 = vst [vmem:[%s318 + $0x1b0] sm:$0xff] %v427
                  %v429 = vld [vmem:[%s317 + $0x338] sm:$0xff]
                  %430 = vst [vmem:[%s318 + $0x1b8] sm:$0xff] %v429
                  %v431 = vld [vmem:[%s317 + $0x340] sm:$0xff]
                  %432 = vst [vmem:[%s318 + $0x1c0] sm:$0xff] %v431
                  %v433 = vld [vmem:[%s317 + $0x348] sm:$0xff]
                  %434 = vst [vmem:[%s318 + $0x1c8] sm:$0xff] %v433
                  %v435 = vld [vmem:[%s317 + $0x350] sm:$0xff]
                  %436 = vst [vmem:[%s318 + $0x1d0] sm:$0xff] %v435
                  %v437 = vld [vmem:[%s317 + $0x358] sm:$0xff]
                  %438 = vst [vmem:[%s318 + $0x1d8] sm:$0xff] %v437
                  %v439 = vld [vmem:[%s317 + $0x360] sm:$0xff]
                  %440 = vst [vmem:[%s318 + $0x1e0] sm:$0xff] %v439
                  %v441 = vld [vmem:[%s317 + $0x368] sm:$0xff]
                  %442 = vst [vmem:[%s318 + $0x1e8] sm:$0xff] %v441
                  %v443 = vld [vmem:[%s317 + $0x370] sm:$0xff]
                  %444 = vst [vmem:[%s318 + $0x1f0] sm:$0xff] %v443
                  %v445 = vld [vmem:[%s317 + $0x378] sm:$0xff]
                  %446 = vst [vmem:[%s318 + $0x1f8] sm:$0xff] %v445
                $region60: #{dense_block_forward.13} parent=54 // loop_footer
                  %s316 = sadd.s32 1, %s312
                $region61: #{dense_block_forward.13} parent=54 // loop_footer_branch
                  %311 = sbr.rel target = $region57
                $region62: #{dense_block_forward.13} parent=54 // loop_exit
                  _
              $region55: #{dense_block_forward.13} parent=39 // pred_fallthru
                _
              // Predicated region
              $region63: #{dense_block_forward.13} parent=39 // pred_check
                _
              $region64: #{dense_block_forward.13} parent=39 // pred_check_branch
                %448 = sbr.rel target = $region66
              $region65: #{dense_block_forward.13} parent=39 // pred_region
                _
              $region66: #{dense_block_forward.13} parent=39 // pred_fallthru
                _
            $region40: #{dense_block_forward.13} parent=35 // pred_fallthru
              _
            // Predicated region
            $region41: #{dense_block_forward.13} parent=35 // pred_check
              _
            $region42: #{dense_block_forward.13} parent=35 // pred_check_branch
              %171 = sbr.rel target = $region44
            $region43: #{dense_block_forward.13} parent=35 // pred_region
              loop: start=0, step=1, limit=1
              $region45: #{dense_block_forward.13} parent=43 // loop_pre_header
                _
              $region46: #{dense_block_forward.13} parent=43 // loop_header
                %s174 = sphi 0, %s178
                %p175 = scmp.ge.s32.totalorder %s174, 1
                %s179 = sphi %s165, %s165
                %s180 = sphi %s162, %s162
              $region47: #{dense_block_forward.13} parent=43 // loop_header_branch
                %177 = sbr.rel (%p175) target = $region51
              $region48: #{dense_block_forward.13} parent=43 // loop_body
                %v181 = vld [vmem:[%s179] sm:$0xff]
                %182 = vst [vmem:[%s180] sm:$0xff] %v181
                %v183 = vld [vmem:[%s179 + $0x8] sm:$0xff]
                %184 = vst [vmem:[%s180 + $0x8] sm:$0xff] %v183
                %v185 = vld [vmem:[%s179 + $0x10] sm:$0xff]
                %186 = vst [vmem:[%s180 + $0x10] sm:$0xff] %v185
                %v187 = vld [vmem:[%s179 + $0x18] sm:$0xff]
                %188 = vst [vmem:[%s180 + $0x18] sm:$0xff] %v187
                %v189 = vld [vmem:[%s179 + $0x20] sm:$0xff]
                %190 = vst [vmem:[%s180 + $0x20] sm:$0xff] %v189
                %v191 = vld [vmem:[%s179 + $0x28] sm:$0xff]
                %192 = vst [vmem:[%s180 + $0x28] sm:$0xff] %v191
                %v193 = vld [vmem:[%s179 + $0x30] sm:$0xff]
                %194 = vst [vmem:[%s180 + $0x30] sm:$0xff] %v193
                %v195 = vld [vmem:[%s179 + $0x38] sm:$0xff]
                %196 = vst [vmem:[%s180 + $0x38] sm:$0xff] %v195
                %v197 = vld [vmem:[%s179 + $0x40] sm:$0xff]
                %198 = vst [vmem:[%s180 + $0x40] sm:$0xff] %v197
                %v199 = vld [vmem:[%s179 + $0x48] sm:$0xff]
                %200 = vst [vmem:[%s180 + $0x48] sm:$0xff] %v199
                %v201 = vld [vmem:[%s179 + $0x50] sm:$0xff]
                %202 = vst [vmem:[%s180 + $0x50] sm:$0xff] %v201
                %v203 = vld [vmem:[%s179 + $0x58] sm:$0xff]
                %204 = vst [vmem:[%s180 + $0x58] sm:$0xff] %v203
                %v205 = vld [vmem:[%s179 + $0x60] sm:$0xff]
                %206 = vst [vmem:[%s180 + $0x60] sm:$0xff] %v205
                %v207 = vld [vmem:[%s179 + $0x68] sm:$0xff]
                %208 = vst [vmem:[%s180 + $0x68] sm:$0xff] %v207
                %v209 = vld [vmem:[%s179 + $0x70] sm:$0xff]
                %210 = vst [vmem:[%s180 + $0x70] sm:$0xff] %v209
                %v211 = vld [vmem:[%s179 + $0x78] sm:$0xff]
                %212 = vst [vmem:[%s180 + $0x78] sm:$0xff] %v211
                %v213 = vld [vmem:[%s179 + $0x100] sm:$0xff]
                %214 = vst [vmem:[%s180 + $0x80] sm:$0xff] %v213
                %v215 = vld [vmem:[%s179 + $0x108] sm:$0xff]
                %216 = vst [vmem:[%s180 + $0x88] sm:$0xff] %v215
                %v217 = vld [vmem:[%s179 + $0x110] sm:$0xff]
                %218 = vst [vmem:[%s180 + $0x90] sm:$0xff] %v217
                %v219 = vld [vmem:[%s179 + $0x118] sm:$0xff]
                %220 = vst [vmem:[%s180 + $0x98] sm:$0xff] %v219
                %v221 = vld [vmem:[%s179 + $0x120] sm:$0xff]
                %222 = vst [vmem:[%s180 + $0xa0] sm:$0xff] %v221
                %v223 = vld [vmem:[%s179 + $0x128] sm:$0xff]
                %224 = vst [vmem:[%s180 + $0xa8] sm:$0xff] %v223
                %v225 = vld [vmem:[%s179 + $0x130] sm:$0xff]
                %226 = vst [vmem:[%s180 + $0xb0] sm:$0xff] %v225
                %v227 = vld [vmem:[%s179 + $0x138] sm:$0xff]
                %228 = vst [vmem:[%s180 + $0xb8] sm:$0xff] %v227
                %v229 = vld [vmem:[%s179 + $0x140] sm:$0xff]
                %230 = vst [vmem:[%s180 + $0xc0] sm:$0xff] %v229
                %v231 = vld [vmem:[%s179 + $0x148] sm:$0xff]
                %232 = vst [vmem:[%s180 + $0xc8] sm:$0xff] %v231
                %v233 = vld [vmem:[%s179 + $0x150] sm:$0xff]
                %234 = vst [vmem:[%s180 + $0xd0] sm:$0xff] %v233
                %v235 = vld [vmem:[%s179 + $0x158] sm:$0xff]
                %236 = vst [vmem:[%s180 + $0xd8] sm:$0xff] %v235
                %v237 = vld [vmem:[%s179 + $0x160] sm:$0xff]
                %238 = vst [vmem:[%s180 + $0xe0] sm:$0xff] %v237
                %v239 = vld [vmem:[%s179 + $0x168] sm:$0xff]
                %240 = vst [vmem:[%s180 + $0xe8] sm:$0xff] %v239
                %v241 = vld [vmem:[%s179 + $0x170] sm:$0xff]
                %242 = vst [vmem:[%s180 + $0xf0] sm:$0xff] %v241
                %v243 = vld [vmem:[%s179 + $0x178] sm:$0xff]
                %244 = vst [vmem:[%s180 + $0xf8] sm:$0xff] %v243
                %v245 = vld [vmem:[%s179 + $0x200] sm:$0xff]
                %246 = vst [vmem:[%s180 + $0x100] sm:$0xff] %v245
                %v247 = vld [vmem:[%s179 + $0x208] sm:$0xff]
                %248 = vst [vmem:[%s180 + $0x108] sm:$0xff] %v247
                %v249 = vld [vmem:[%s179 + $0x210] sm:$0xff]
                %250 = vst [vmem:[%s180 + $0x110] sm:$0xff] %v249
                %v251 = vld [vmem:[%s179 + $0x218] sm:$0xff]
                %252 = vst [vmem:[%s180 + $0x118] sm:$0xff] %v251
                %v253 = vld [vmem:[%s179 + $0x220] sm:$0xff]
                %254 = vst [vmem:[%s180 + $0x120] sm:$0xff] %v253
                %v255 = vld [vmem:[%s179 + $0x228] sm:$0xff]
                %256 = vst [vmem:[%s180 + $0x128] sm:$0xff] %v255
                %v257 = vld [vmem:[%s179 + $0x230] sm:$0xff]
                %258 = vst [vmem:[%s180 + $0x130] sm:$0xff] %v257
                %v259 = vld [vmem:[%s179 + $0x238] sm:$0xff]
                %260 = vst [vmem:[%s180 + $0x138] sm:$0xff] %v259
                %v261 = vld [vmem:[%s179 + $0x240] sm:$0xff]
                %262 = vst [vmem:[%s180 + $0x140] sm:$0xff] %v261
                %v263 = vld [vmem:[%s179 + $0x248] sm:$0xff]
                %264 = vst [vmem:[%s180 + $0x148] sm:$0xff] %v263
                %v265 = vld [vmem:[%s179 + $0x250] sm:$0xff]
                %266 = vst [vmem:[%s180 + $0x150] sm:$0xff] %v265
                %v267 = vld [vmem:[%s179 + $0x258] sm:$0xff]
                %268 = vst [vmem:[%s180 + $0x158] sm:$0xff] %v267
                %v269 = vld [vmem:[%s179 + $0x260] sm:$0xff]
                %270 = vst [vmem:[%s180 + $0x160] sm:$0xff] %v269
                %v271 = vld [vmem:[%s179 + $0x268] sm:$0xff]
                %272 = vst [vmem:[%s180 + $0x168] sm:$0xff] %v271
                %v273 = vld [vmem:[%s179 + $0x270] sm:$0xff]
                %274 = vst [vmem:[%s180 + $0x170] sm:$0xff] %v273
                %v275 = vld [vmem:[%s179 + $0x278] sm:$0xff]
                %276 = vst [vmem:[%s180 + $0x178] sm:$0xff] %v275
                %v277 = vld [vmem:[%s179 + $0x300] sm:$0xff]
                %278 = vst [vmem:[%s180 + $0x180] sm:$0xff] %v277
                %v279 = vld [vmem:[%s179 + $0x308] sm:$0xff]
                %280 = vst [vmem:[%s180 + $0x188] sm:$0xff] %v279
                %v281 = vld [vmem:[%s179 + $0x310] sm:$0xff]
                %282 = vst [vmem:[%s180 + $0x190] sm:$0xff] %v281
                %v283 = vld [vmem:[%s179 + $0x318] sm:$0xff]
                %284 = vst [vmem:[%s180 + $0x198] sm:$0xff] %v283
                %v285 = vld [vmem:[%s179 + $0x320] sm:$0xff]
                %286 = vst [vmem:[%s180 + $0x1a0] sm:$0xff] %v285
                %v287 = vld [vmem:[%s179 + $0x328] sm:$0xff]
                %288 = vst [vmem:[%s180 + $0x1a8] sm:$0xff] %v287
                %v289 = vld [vmem:[%s179 + $0x330] sm:$0xff]
                %290 = vst [vmem:[%s180 + $0x1b0] sm:$0xff] %v289
                %v291 = vld [vmem:[%s179 + $0x338] sm:$0xff]
                %292 = vst [vmem:[%s180 + $0x1b8] sm:$0xff] %v291
                %v293 = vld [vmem:[%s179 + $0x340] sm:$0xff]
                %294 = vst [vmem:[%s180 + $0x1c0] sm:$0xff] %v293
                %v295 = vld [vmem:[%s179 + $0x348] sm:$0xff]
                %296 = vst [vmem:[%s180 + $0x1c8] sm:$0xff] %v295
                %v297 = vld [vmem:[%s179 + $0x350] sm:$0xff]
                %298 = vst [vmem:[%s180 + $0x1d0] sm:$0xff] %v297
                %v299 = vld [vmem:[%s179 + $0x358] sm:$0xff]
                %300 = vst [vmem:[%s180 + $0x1d8] sm:$0xff] %v299
                %v301 = vld [vmem:[%s179 + $0x360] sm:$0xff]
                %302 = vst [vmem:[%s180 + $0x1e0] sm:$0xff] %v301
                %v303 = vld [vmem:[%s179 + $0x368] sm:$0xff]
                %304 = vst [vmem:[%s180 + $0x1e8] sm:$0xff] %v303
                %v305 = vld [vmem:[%s179 + $0x370] sm:$0xff]
                %306 = vst [vmem:[%s180 + $0x1f0] sm:$0xff] %v305
                %v307 = vld [vmem:[%s179 + $0x378] sm:$0xff]
                %308 = vst [vmem:[%s180 + $0x1f8] sm:$0xff] %v307
              $region49: #{dense_block_forward.13} parent=43 // loop_footer
                %s178 = sadd.s32 1, %s174
              $region50: #{dense_block_forward.13} parent=43 // loop_footer_branch
                %173 = sbr.rel target = $region46
              $region51: #{dense_block_forward.13} parent=43 // loop_exit
                _
            $region44: #{dense_block_forward.13} parent=35 // pred_fallthru
              _
          $region36: #{dense_block_forward.13} parent=31 // pred_fallthru
            _
          %449 = vnop
        $region32: #{dense_block_forward.13} parent=27 // pred_fallthru
          _
      $region28: #{dense_block_forward.13} parent=5 // pred_fallthru
        _
      %p450 = scmp.le.s32.totalorder 1, %s13
      %p451 = scmp.lt.s32.totalorder %s13, 3
      %p452 = pnand %p450, %p451
      %p453 = pneg %p452
      // Predicated region
      $region67: #{dense_block_forward.13} parent=5 // pred_check
        _
      $region68: #{dense_block_forward.13} parent=5 // pred_check_branch
        %455 = sbr.rel (%p452) target = $region70
      $region69: #{dense_block_forward.13} parent=5 // pred_region
        %s456 = ssub.s32 %s13, 1
        %s457 = sand.u32 %s26, 1
        %s458 = sand.u32 %s26, 1
        %s459 = smul.addr %s458, 512
        %s460 = scalar_lea.vmem [#allocation2], %s459
        // Predicated region
        $region71: #{dense_block_forward.13} parent=69 // pred_check
          %p461 = pneg %p39
        $region72: #{dense_block_forward.13} parent=69 // pred_check_branch
          %463 = sbr.rel (%p461) target = $region74
        $region73: #{dense_block_forward.13} parent=69 // pred_region
          _
        $region74: #{dense_block_forward.13} parent=69 // pred_fallthru
          _
        %s464 = sand.u32 %s26, 1
        %s465 = sand.u32 %s26, 1
        %s466 = smul.addr %s465, 512
        %s467 = scalar_lea.vmem [#allocation2], %s466
        %p468 = pneg %p39
        %p469 = pneg %p36
        %p470 = pneg %p60
        %p471 = pneg %p57
        %p472 = pneg %p81
        %p473 = pneg %p78
        %p474 = pneg %p102
        %p475 = pneg %p99
        %p476 = pneg %p128
        %p477 = pneg %p125
        %s478 = sand.u32 %s115, 1
        %s479 = scalar_lea.sflag [#allocation4], %s478
        %s480 = sand.u32 %s115, 1
        %s481 = smul.addr %s480, 128
        %s482 = scalar_lea.vmem [#allocation3], %s481
        %s483 = smul.u32 16, %s18
        %s484 = smul.u32 16, %s18
        %v486 = vld [vmem:[%s460] sm:$0xff]
        %v487 = vld [vmem:[%s460 + $0x8] sm:$0xff]
        %v488 = vld [vmem:[%s460 + $0x10] sm:$0xff]
        %v489 = vld [vmem:[%s460 + $0x18] sm:$0xff]
        %v490 = vld [vmem:[%s460 + $0x20] sm:$0xff]
        %v491 = vld [vmem:[%s460 + $0x28] sm:$0xff]
        %v492 = vld [vmem:[%s460 + $0x30] sm:$0xff]
        %v493 = vld [vmem:[%s460 + $0x38] sm:$0xff]
        %v494 = vld [vmem:[%s460 + $0x40] sm:$0xff]
        %v495 = vld [vmem:[%s460 + $0x48] sm:$0xff]
        %v496 = vld [vmem:[%s460 + $0x50] sm:$0xff]
        %v497 = vld [vmem:[%s460 + $0x58] sm:$0xff]
        %v498 = vld [vmem:[%s460 + $0x60] sm:$0xff]
        %v499 = vld [vmem:[%s460 + $0x68] sm:$0xff]
        %v500 = vld [vmem:[%s460 + $0x70] sm:$0xff]
        %v501 = vld [vmem:[%s460 + $0x78] sm:$0xff]
        %v502 = vld [vmem:[%s460 + $0x80] sm:$0xff]
        %v503 = vld [vmem:[%s460 + $0x88] sm:$0xff]
        %v504 = vld [vmem:[%s460 + $0x90] sm:$0xff]
        %v505 = vld [vmem:[%s460 + $0x98] sm:$0xff]
        %v506 = vld [vmem:[%s460 + $0xa0] sm:$0xff]
        %v507 = vld [vmem:[%s460 + $0xa8] sm:$0xff]
        %v508 = vld [vmem:[%s460 + $0xb0] sm:$0xff]
        %v509 = vld [vmem:[%s460 + $0xb8] sm:$0xff]
        %v510 = vld [vmem:[%s460 + $0xc0] sm:$0xff]
        %v511 = vld [vmem:[%s460 + $0xc8] sm:$0xff]
        %v512 = vld [vmem:[%s460 + $0xd0] sm:$0xff]
        %v513 = vld [vmem:[%s460 + $0xd8] sm:$0xff]
        %v514 = vld [vmem:[%s460 + $0xe0] sm:$0xff]
        %v515 = vld [vmem:[%s460 + $0xe8] sm:$0xff]
        %v516 = vld [vmem:[%s460 + $0xf0] sm:$0xff]
        %v517 = vld [vmem:[%s460 + $0xf8] sm:$0xff]
        %v518 = vld [vmem:[%s460 + $0x100] sm:$0xff]
        %v519 = vld [vmem:[%s460 + $0x108] sm:$0xff]
        %v520 = vld [vmem:[%s460 + $0x110] sm:$0xff]
        %v521 = vld [vmem:[%s460 + $0x118] sm:$0xff]
        %v522 = vld [vmem:[%s460 + $0x120] sm:$0xff]
        %v523 = vld [vmem:[%s460 + $0x128] sm:$0xff]
        %v524 = vld [vmem:[%s460 + $0x130] sm:$0xff]
        %v525 = vld [vmem:[%s460 + $0x138] sm:$0xff]
        %v526 = vld [vmem:[%s460 + $0x140] sm:$0xff]
        %v527 = vld [vmem:[%s460 + $0x148] sm:$0xff]
        %v528 = vld [vmem:[%s460 + $0x150] sm:$0xff]
        %v529 = vld [vmem:[%s460 + $0x158] sm:$0xff]
        %v530 = vld [vmem:[%s460 + $0x160] sm:$0xff]
        %v531 = vld [vmem:[%s460 + $0x168] sm:$0xff]
        %v532 = vld [vmem:[%s460 + $0x170] sm:$0xff]
        %v533 = vld [vmem:[%s460 + $0x178] sm:$0xff]
        %v534 = vld [vmem:[%s460 + $0x180] sm:$0xff]
        %v535 = vld [vmem:[%s460 + $0x188] sm:$0xff]
        %v536 = vld [vmem:[%s460 + $0x190] sm:$0xff]
        %v537 = vld [vmem:[%s460 + $0x198] sm:$0xff]
        %v538 = vld [vmem:[%s460 + $0x1a0] sm:$0xff]
        %v539 = vld [vmem:[%s460 + $0x1a8] sm:$0xff]
        %v540 = vld [vmem:[%s460 + $0x1b0] sm:$0xff]
        %v541 = vld [vmem:[%s460 + $0x1b8] sm:$0xff]
        %v542 = vld [vmem:[%s460 + $0x1c0] sm:$0xff]
        %v543 = vld [vmem:[%s460 + $0x1c8] sm:$0xff]
        %v544 = vld [vmem:[%s460 + $0x1d0] sm:$0xff]
        %v545 = vld [vmem:[%s460 + $0x1d8] sm:$0xff]
        %v546 = vld [vmem:[%s460 + $0x1e0] sm:$0xff]
        %v547 = vld [vmem:[%s460 + $0x1e8] sm:$0xff]
        %v548 = vld [vmem:[%s460 + $0x1f0] sm:$0xff]
        %v549 = vld [vmem:[%s460 + $0x1f8] sm:$0xff]
        %v550 = vld [vmem:[%s1] sm:$0x1]
        %v552 = vlaneseq
        %v553 = vshrl.u32 %v552, 7
        %v554 = vsub.s32 0, %v553
        %v555 = vrot.slane %v550, %v554
        %v557 = vmul.f32 %v486, %v555
        %v558 = vmul.f32 %v487, %v555
        %v559 = vmul.f32 %v488, %v555
        %v560 = vmul.f32 %v489, %v555
        %v561 = vmul.f32 %v490, %v555
        %v562 = vmul.f32 %v491, %v555
        %v563 = vmul.f32 %v492, %v555
        %v564 = vmul.f32 %v493, %v555
        %v565 = vmul.f32 %v494, %v555
        %v566 = vmul.f32 %v495, %v555
        %v567 = vmul.f32 %v496, %v555
        %v568 = vmul.f32 %v497, %v555
        %v569 = vmul.f32 %v498, %v555
        %v570 = vmul.f32 %v499, %v555
        %v571 = vmul.f32 %v500, %v555
        %v572 = vmul.f32 %v501, %v555
        %v573 = vmul.f32 %v502, %v555
        %v574 = vmul.f32 %v503, %v555
        %v575 = vmul.f32 %v504, %v555
        %v576 = vmul.f32 %v505, %v555
        %v577 = vmul.f32 %v506, %v555
        %v578 = vmul.f32 %v507, %v555
        %v579 = vmul.f32 %v508, %v555
        %v580 = vmul.f32 %v509, %v555
        %v581 = vmul.f32 %v510, %v555
        %v582 = vmul.f32 %v511, %v555
        %v583 = vmul.f32 %v512, %v555
        %v584 = vmul.f32 %v513, %v555
        %v585 = vmul.f32 %v514, %v555
        %v586 = vmul.f32 %v515, %v555
        %v587 = vmul.f32 %v516, %v555
        %v588 = vmul.f32 %v517, %v555
        %v589 = vmul.f32 %v518, %v555
        %v590 = vmul.f32 %v519, %v555
        %v591 = vmul.f32 %v520, %v555
        %v592 = vmul.f32 %v521, %v555
        %v593 = vmul.f32 %v522, %v555
        %v594 = vmul.f32 %v523, %v555
        %v595 = vmul.f32 %v524, %v555
        %v596 = vmul.f32 %v525, %v555
        %v597 = vmul.f32 %v526, %v555
        %v598 = vmul.f32 %v527, %v555
        %v599 = vmul.f32 %v528, %v555
        %v600 = vmul.f32 %v529, %v555
        %v601 = vmul.f32 %v530, %v555
        %v602 = vmul.f32 %v531, %v555
        %v603 = vmul.f32 %v532, %v555
        %v604 = vmul.f32 %v533, %v555
        %v605 = vmul.f32 %v534, %v555
        %v606 = vmul.f32 %v535, %v555
        %v607 = vmul.f32 %v536, %v555
        %v608 = vmul.f32 %v537, %v555
        %v609 = vmul.f32 %v538, %v555
        %v610 = vmul.f32 %v539, %v555
        %v611 = vmul.f32 %v540, %v555
        %v612 = vmul.f32 %v541, %v555
        %v613 = vmul.f32 %v542, %v555
        %v614 = vmul.f32 %v543, %v555
        %v615 = vmul.f32 %v544, %v555
        %v616 = vmul.f32 %v545, %v555
        %v617 = vmul.f32 %v546, %v555
        %v618 = vmul.f32 %v547, %v555
        %v619 = vmul.f32 %v548, %v555
        %v620 = vmul.f32 %v549, %v555
        %v621 = vld [vmem:[%s2] sm:$0x1]
        %v623 = vlaneseq
        %v624 = vshrl.u32 %v623, 7
        %v625 = vsub.s32 0, %v624
        %v626 = vrot.slane %v621, %v625
        %v628 = vadd.f32 %v557, %v626
        %v629 = vadd.f32 %v558, %v626
        %v630 = vadd.f32 %v559, %v626
        %v631 = vadd.f32 %v560, %v626
        %v632 = vadd.f32 %v561, %v626
        %v633 = vadd.f32 %v562, %v626
        %v634 = vadd.f32 %v563, %v626
        %v635 = vadd.f32 %v564, %v626
        %v636 = vadd.f32 %v565, %v626
        %v637 = vadd.f32 %v566, %v626
        %v638 = vadd.f32 %v567, %v626
        %v639 = vadd.f32 %v568, %v626
        %v640 = vadd.f32 %v569, %v626
        %v641 = vadd.f32 %v570, %v626
        %v642 = vadd.f32 %v571, %v626
        %v643 = vadd.f32 %v572, %v626
        %v644 = vadd.f32 %v573, %v626
        %v645 = vadd.f32 %v574, %v626
        %v646 = vadd.f32 %v575, %v626
        %v647 = vadd.f32 %v576, %v626
        %v648 = vadd.f32 %v577, %v626
        %v649 = vadd.f32 %v578, %v626
        %v650 = vadd.f32 %v579, %v626
        %v651 = vadd.f32 %v580, %v626
        %v652 = vadd.f32 %v581, %v626
        %v653 = vadd.f32 %v582, %v626
        %v654 = vadd.f32 %v583, %v626
        %v655 = vadd.f32 %v584, %v626
        %v656 = vadd.f32 %v585, %v626
        %v657 = vadd.f32 %v586, %v626
        %v658 = vadd.f32 %v587, %v626
        %v659 = vadd.f32 %v588, %v626
        %v660 = vadd.f32 %v589, %v626
        %v661 = vadd.f32 %v590, %v626
        %v662 = vadd.f32 %v591, %v626
        %v663 = vadd.f32 %v592, %v626
        %v664 = vadd.f32 %v593, %v626
        %v665 = vadd.f32 %v594, %v626
        %v666 = vadd.f32 %v595, %v626
        %v667 = vadd.f32 %v596, %v626
        %v668 = vadd.f32 %v597, %v626
        %v669 = vadd.f32 %v598, %v626
        %v670 = vadd.f32 %v599, %v626
        %v671 = vadd.f32 %v600, %v626
        %v672 = vadd.f32 %v601, %v626
        %v673 = vadd.f32 %v602, %v626
        %v674 = vadd.f32 %v603, %v626
        %v675 = vadd.f32 %v604, %v626
        %v676 = vadd.f32 %v605, %v626
        %v677 = vadd.f32 %v606, %v626
        %v678 = vadd.f32 %v607, %v626
        %v679 = vadd.f32 %v608, %v626
        %v680 = vadd.f32 %v609, %v626
        %v681 = vadd.f32 %v610, %v626
        %v682 = vadd.f32 %v611, %v626
        %v683 = vadd.f32 %v612, %v626
        %v684 = vadd.f32 %v613, %v626
        %v685 = vadd.f32 %v614, %v626
        %v686 = vadd.f32 %v615, %v626
        %v687 = vadd.f32 %v616, %v626
        %v688 = vadd.f32 %v617, %v626
        %v689 = vadd.f32 %v618, %v626
        %v690 = vadd.f32 %v619, %v626
        %v691 = vadd.f32 %v620, %v626
        %v692 = vmax.f32 %v628, 0.0
        %v693 = vmax.f32 %v629, 0.0
        %v694 = vmax.f32 %v630, 0.0
        %v695 = vmax.f32 %v631, 0.0
        %v696 = vmax.f32 %v632, 0.0
        %v697 = vmax.f32 %v633, 0.0
        %v698 = vmax.f32 %v634, 0.0
        %v699 = vmax.f32 %v635, 0.0
        %v700 = vmax.f32 %v636, 0.0
        %v701 = vmax.f32 %v637, 0.0
        %v702 = vmax.f32 %v638, 0.0
        %v703 = vmax.f32 %v639, 0.0
        %v704 = vmax.f32 %v640, 0.0
        %v705 = vmax.f32 %v641, 0.0
        %v706 = vmax.f32 %v642, 0.0
        %v707 = vmax.f32 %v643, 0.0
        %v708 = vmax.f32 %v644, 0.0
        %v709 = vmax.f32 %v645, 0.0
        %v710 = vmax.f32 %v646, 0.0
        %v711 = vmax.f32 %v647, 0.0
        %v712 = vmax.f32 %v648, 0.0
        %v713 = vmax.f32 %v649, 0.0
        %v714 = vmax.f32 %v650, 0.0
        %v715 = vmax.f32 %v651, 0.0
        %v716 = vmax.f32 %v652, 0.0
        %v717 = vmax.f32 %v653, 0.0
        %v718 = vmax.f32 %v654, 0.0
        %v719 = vmax.f32 %v655, 0.0
        %v720 = vmax.f32 %v656, 0.0
        %v721 = vmax.f32 %v657, 0.0
        %v722 = vmax.f32 %v658, 0.0
        %v723 = vmax.f32 %v659, 0.0
        %v724 = vmax.f32 %v660, 0.0
        %v725 = vmax.f32 %v661, 0.0
        %v726 = vmax.f32 %v662, 0.0
        %v727 = vmax.f32 %v663, 0.0
        %v728 = vmax.f32 %v664, 0.0
        %v729 = vmax.f32 %v665, 0.0
        %v730 = vmax.f32 %v666, 0.0
        %v731 = vmax.f32 %v667, 0.0
        %v732 = vmax.f32 %v668, 0.0
        %v733 = vmax.f32 %v669, 0.0
        %v734 = vmax.f32 %v670, 0.0
        %v735 = vmax.f32 %v671, 0.0
        %v736 = vmax.f32 %v672, 0.0
        %v737 = vmax.f32 %v673, 0.0
        %v738 = vmax.f32 %v674, 0.0
        %v739 = vmax.f32 %v675, 0.0
        %v740 = vmax.f32 %v676, 0.0
        %v741 = vmax.f32 %v677, 0.0
        %v742 = vmax.f32 %v678, 0.0
        %v743 = vmax.f32 %v679, 0.0
        %v744 = vmax.f32 %v680, 0.0
        %v745 = vmax.f32 %v681, 0.0
        %v746 = vmax.f32 %v682, 0.0
        %v747 = vmax.f32 %v683, 0.0
        %v748 = vmax.f32 %v684, 0.0
        %v749 = vmax.f32 %v685, 0.0
        %v750 = vmax.f32 %v686, 0.0
        %v751 = vmax.f32 %v687, 0.0
        %v752 = vmax.f32 %v688, 0.0
        %v753 = vmax.f32 %v689, 0.0
        %v754 = vmax.f32 %v690, 0.0
        %v755 = vmax.f32 %v691, 0.0
        %vm756 = vcmask 261120
        %v757 = vsel %vm756, %v692, 0.0
        %v758 = vsel %vm756, %v708, 0.0
        %v759 = vadd.f32 %v757, %v758
        %v760 = vsel %vm756, %v724, 0.0
        %v761 = vadd.f32 %v759, %v760
        %v762 = vsel %vm756, %v740, 0.0
        %v763 = vadd.f32 %v761, %v762
        %v764 = vsel %vm756, %v693, 0.0
        %v765 = vsel %vm756, %v709, 0.0
        %v766 = vadd.f32 %v764, %v765
        %v767 = vsel %vm756, %v725, 0.0
        %v768 = vadd.f32 %v766, %v767
        %v769 = vsel %vm756, %v741, 0.0
        %v770 = vadd.f32 %v768, %v769
        %v771 = vsel %vm756, %v694, 0.0
        %v772 = vsel %vm756, %v710, 0.0
        %v773 = vadd.f32 %v771, %v772
        %v774 = vsel %vm756, %v726, 0.0
        %v775 = vadd.f32 %v773, %v774
        %v776 = vsel %vm756, %v742, 0.0
        %v777 = vadd.f32 %v775, %v776
        %v778 = vsel %vm756, %v695, 0.0
        %v779 = vsel %vm756, %v711, 0.0
        %v780 = vadd.f32 %v778, %v779
        %v781 = vsel %vm756, %v727, 0.0
        %v782 = vadd.f32 %v780, %v781
        %v783 = vsel %vm756, %v743, 0.0
        %v784 = vadd.f32 %v782, %v783
        %v785 = vsel %vm756, %v696, 0.0
        %v786 = vsel %vm756, %v712, 0.0
        %v787 = vadd.f32 %v785, %v786
        %v788 = vsel %vm756, %v728, 0.0
        %v789 = vadd.f32 %v787, %v788
        %v790 = vsel %vm756, %v744, 0.0
        %v791 = vadd.f32 %v789, %v790
        %v792 = vsel %vm756, %v697, 0.0
        %v793 = vsel %vm756, %v713, 0.0
        %v794 = vadd.f32 %v792, %v793
        %v795 = vsel %vm756, %v729, 0.0
        %v796 = vadd.f32 %v794, %v795
        %v797 = vsel %vm756, %v745, 0.0
        %v798 = vadd.f32 %v796, %v797
        %v799 = vsel %vm756, %v698, 0.0
        %v800 = vsel %vm756, %v714, 0.0
        %v801 = vadd.f32 %v799, %v800
        %v802 = vsel %vm756, %v730, 0.0
        %v803 = vadd.f32 %v801, %v802
        %v804 = vsel %vm756, %v746, 0.0
        %v805 = vadd.f32 %v803, %v804
        %v806 = vsel %vm756, %v699, 0.0
        %v807 = vsel %vm756, %v715, 0.0
        %v808 = vadd.f32 %v806, %v807
        %v809 = vsel %vm756, %v731, 0.0
        %v810 = vadd.f32 %v808, %v809
        %v811 = vsel %vm756, %v747, 0.0
        %v812 = vadd.f32 %v810, %v811
        %v813 = vsel %vm756, %v700, 0.0
        %v814 = vsel %vm756, %v716, 0.0
        %v815 = vadd.f32 %v813, %v814
        %v816 = vsel %vm756, %v732, 0.0
        %v817 = vadd.f32 %v815, %v816
        %v818 = vsel %vm756, %v748, 0.0
        %v819 = vadd.f32 %v817, %v818
        %v820 = vsel %vm756, %v701, 0.0
        %v821 = vsel %vm756, %v717, 0.0
        %v822 = vadd.f32 %v820, %v821
        %v823 = vsel %vm756, %v733, 0.0
        %v824 = vadd.f32 %v822, %v823
        %v825 = vsel %vm756, %v749, 0.0
        %v826 = vadd.f32 %v824, %v825
        %v827 = vsel %vm756, %v702, 0.0
        %v828 = vsel %vm756, %v718, 0.0
        %v829 = vadd.f32 %v827, %v828
        %v830 = vsel %vm756, %v734, 0.0
        %v831 = vadd.f32 %v829, %v830
        %v832 = vsel %vm756, %v750, 0.0
        %v833 = vadd.f32 %v831, %v832
        %v834 = vsel %vm756, %v703, 0.0
        %v835 = vsel %vm756, %v719, 0.0
        %v836 = vadd.f32 %v834, %v835
        %v837 = vsel %vm756, %v735, 0.0
        %v838 = vadd.f32 %v836, %v837
        %v839 = vsel %vm756, %v751, 0.0
        %v840 = vadd.f32 %v838, %v839
        %v841 = vsel %vm756, %v704, 0.0
        %v842 = vsel %vm756, %v720, 0.0
        %v843 = vadd.f32 %v841, %v842
        %v844 = vsel %vm756, %v736, 0.0
        %v845 = vadd.f32 %v843, %v844
        %v846 = vsel %vm756, %v752, 0.0
        %v847 = vadd.f32 %v845, %v846
        %v848 = vsel %vm756, %v705, 0.0
        %v849 = vsel %vm756, %v721, 0.0
        %v850 = vadd.f32 %v848, %v849
        %v851 = vsel %vm756, %v737, 0.0
        %v852 = vadd.f32 %v850, %v851
        %v853 = vsel %vm756, %v753, 0.0
        %v854 = vadd.f32 %v852, %v853
        %v855 = vsel %vm756, %v706, 0.0
        %v856 = vsel %vm756, %v722, 0.0
        %v857 = vadd.f32 %v855, %v856
        %v858 = vsel %vm756, %v738, 0.0
        %v859 = vadd.f32 %v857, %v858
        %v860 = vsel %vm756, %v754, 0.0
        %v861 = vadd.f32 %v859, %v860
        %v862 = vsel %vm756, %v707, 0.0
        %v863 = vsel %vm756, %v723, 0.0
        %v864 = vadd.f32 %v862, %v863
        %v865 = vsel %vm756, %v739, 0.0
        %v866 = vadd.f32 %v864, %v865
        %v867 = vsel %vm756, %v755, 0.0
        %v868 = vadd.f32 %v866, %v867
        %v869 = vpack.c.bf16 %v770, %v763
        %v870 = vpack.c.bf16 %v784, %v777
        %v871 = vpack.c.bf16 %v798, %v791
        %v872 = vpack.c.bf16 %v812, %v805
        %v873 = vpack.c.bf16 %v826, %v819
        %v874 = vpack.c.bf16 %v840, %v833
        %v875 = vpack.c.bf16 %v854, %v847
        %v876 = vpack.c.bf16 %v868, %v861
        %v877 = vld [vmem:[%s3] sm:$0xf]
        %v878 = vld [vmem:[%s3 + $0x4] sm:$0xf]
        %v879 = vld [vmem:[%s3 + $0x8] sm:$0xf]
        %v880 = vld [vmem:[%s3 + $0xc] sm:$0xf]
        %v885 = vunpack.c.l.b16 %v877
        %v886 = vunpack.c.l.b16 %v878
        %v887 = vunpack.c.l.b16 %v879
        %v888 = vunpack.c.l.b16 %v880
        %v889 = vpack.c.b16 %v886, %v885
        %v890 = vpack.c.b16 %v888, %v887
        %v894 = vsel %vm756, %v869, 0
        %v897 = vsel %vm756, %v870, 0
        %v900 = vsel %vm756, %v871, 0
        %v903 = vsel %vm756, %v872, 0
        %v906 = vsel %vm756, %v873, 0
        %v909 = vsel %vm756, %v874, 0
        %v912 = vsel %vm756, %v875, 0
        %v915 = vsel %vm756, %v876, 0
        %917 = vmatprep.subr.bf16.mxu0 0
        %918 = vmatpush1.bf16.msra.mxu0 %v889
        %919 = vmatprep.subr.bf16.mxu0 0
        %920 = vmatpush1.bf16.msra.mxu0 %v890
        %921 = vmatprep.subr.bf16.mxu0 0
        %922 = vmatpush1.bf16.msra.mxu0 0
        %923 = vmatprep.subr.bf16.mxu0 0
        %924 = vmatpush1.bf16.msra.mxu0 0
        %925 = vmatprep.subr.bf16.mxu0 0
        %926 = vmatpush1.bf16.msra.mxu0 0
        %927 = vmatprep.subr.bf16.mxu0 0
        %928 = vmatpush1.bf16.msra.mxu0 0
        %929 = vmatprep.subr.bf16.mxu0 0
        %930 = vmatpush1.bf16.msra.mxu0 0
        %931 = vmatprep.subr.bf16.mxu0 0
        %932 = vmatpush1.bf16.msra.mxu0 0
        %933 = vmatprep.subr.bf16.mxu0 0
        %934 = vmatpush1.bf16.msra.mxu0 0
        %935 = vmatprep.subr.bf16.mxu0 0
        %936 = vmatpush1.bf16.msra.mxu0 0
        %937 = vmatprep.subr.bf16.mxu0 0
        %938 = vmatpush1.bf16.msra.mxu0 0
        %939 = vmatprep.subr.bf16.mxu0 0
        %940 = vmatpush1.bf16.msra.mxu0 0
        %941 = vmatprep.subr.bf16.mxu0 0
        %942 = vmatpush1.bf16.msra.mxu0 0
        %943 = vmatprep.subr.bf16.mxu0 0
        %944 = vmatpush1.bf16.msra.mxu0 0
        %945 = vmatprep.subr.bf16.mxu0 0
        %946 = vmatpush1.bf16.msra.mxu0 0
        %947 = vmatprep.subr.bf16.mxu0 0
        %948 = vmatpush1.bf16.msra.mxu0 0
        %949 = vmatprep.mubr.bf16.mxu0 0
        %950 = vmatmul.mubr.bf16.gmra.mrb[0].mxu0 %v894
        %v951 = vpop.f32.mrb[0].mxu0
        %v952 = vadd.f32 0.0, %v951
        %v953 = vpop.f32.mrb[0].mxu0
        %v954 = vpop.f32.mrb[0].mxu0
        %v955 = vadd.f32 0.0, %v954
        %v956 = vpop.f32.mrb[0].mxu0
        %957 = vmatprep.mubr.bf16.mxu0 0
        %958 = vmatmul.mubr.bf16.gmra.mrb[0].mxu0 %v897
        %v959 = vpop.f32.mrb[0].mxu0
        %v960 = vadd.f32 0.0, %v959
        %v961 = vpop.f32.mrb[0].mxu0
        %v962 = vpop.f32.mrb[0].mxu0
        %v963 = vadd.f32 0.0, %v962
        %v964 = vpop.f32.mrb[0].mxu0
        %965 = vmatprep.mubr.bf16.mxu0 0
        %966 = vmatmul.mubr.bf16.gmra.mrb[0].mxu0 %v900
        %v967 = vpop.f32.mrb[0].mxu0
        %v968 = vadd.f32 0.0, %v967
        %v969 = vpop.f32.mrb[0].mxu0
        %v970 = vpop.f32.mrb[0].mxu0
        %v971 = vadd.f32 0.0, %v970
        %v972 = vpop.f32.mrb[0].mxu0
        %973 = vmatprep.mubr.bf16.mxu0 0
        %974 = vmatmul.mubr.bf16.gmra.mrb[0].mxu0 %v903
        %v975 = vpop.f32.mrb[0].mxu0
        %v976 = vadd.f32 0.0, %v975
        %v977 = vpop.f32.mrb[0].mxu0
        %v978 = vpop.f32.mrb[0].mxu0
        %v979 = vadd.f32 0.0, %v978
        %v980 = vpop.f32.mrb[0].mxu0
        %981 = vmatprep.mubr.bf16.mxu0 0
        %982 = vmatmul.mubr.bf16.gmra.mrb[0].mxu0 %v906
        %v983 = vpop.f32.mrb[0].mxu0
        %v984 = vadd.f32 0.0, %v983
        %v985 = vpop.f32.mrb[0].mxu0
        %v986 = vpop.f32.mrb[0].mxu0
        %v987 = vadd.f32 0.0, %v986
        %v988 = vpop.f32.mrb[0].mxu0
        %989 = vmatprep.mubr.bf16.mxu0 0
        %990 = vmatmul.mubr.bf16.gmra.mrb[0].mxu0 %v909
        %v991 = vpop.f32.mrb[0].mxu0
        %v992 = vadd.f32 0.0, %v991
        %v993 = vpop.f32.mrb[0].mxu0
        %v994 = vpop.f32.mrb[0].mxu0
        %v995 = vadd.f32 0.0, %v994
        %v996 = vpop.f32.mrb[0].mxu0
        %997 = vmatprep.mubr.bf16.mxu0 0
        %998 = vmatmul.mubr.bf16.gmra.mrb[0].mxu0 %v912
        %v999 = vpop.f32.mrb[0].mxu0
        %v1000 = vadd.f32 0.0, %v999
        %v1001 = vpop.f32.mrb[0].mxu0
        %v1002 = vpop.f32.mrb[0].mxu0
        %v1003 = vadd.f32 0.0, %v1002
        %v1004 = vpop.f32.mrb[0].mxu0
        %1005 = vmatprep.mubr.bf16.mxu0 0
        %1006 = vmatmul.mubr.bf16.gmra.mrb[0].mxu0 %v915
        %v1007 = vpop.f32.mrb[0].mxu0
        %v1008 = vadd.f32 0.0, %v1007
        %v1009 = vpop.f32.mrb[0].mxu0
        %v1010 = vpop.f32.mrb[0].mxu0
        %v1011 = vadd.f32 0.0, %v1010
        %v1012 = vpop.f32.mrb[0].mxu0
        %1013 = vdwg.mxu0
        %1014 = vst [vmem:[%s482] sm:$0xff] %v952
        %1015 = vst [vmem:[%s482 + $0x8] sm:$0xff] %v955
        %1016 = vst [vmem:[%s482 + $0x10] sm:$0xff] %v960
        %1017 = vst [vmem:[%s482 + $0x18] sm:$0xff] %v963
        %1018 = vst [vmem:[%s482 + $0x20] sm:$0xff] %v968
        %1019 = vst [vmem:[%s482 + $0x28] sm:$0xff] %v971
        %1020 = vst [vmem:[%s482 + $0x30] sm:$0xff] %v976
        %1021 = vst [vmem:[%s482 + $0x38] sm:$0xff] %v979
        %1022 = vst [vmem:[%s482 + $0x40] sm:$0xff] %v984
        %1023 = vst [vmem:[%s482 + $0x48] sm:$0xff] %v987
        %1024 = vst [vmem:[%s482 + $0x50] sm:$0xff] %v992
        %1025 = vst [vmem:[%s482 + $0x58] sm:$0xff] %v995
        %1026 = vst [vmem:[%s482 + $0x60] sm:$0xff] %v1000
        %1027 = vst [vmem:[%s482 + $0x68] sm:$0xff] %v1003
        %1028 = vst [vmem:[%s482 + $0x70] sm:$0xff] %v1008
        %1029 = vst [vmem:[%s482 + $0x78] sm:$0xff] %v1011
        %s1030 = sand.u32 %s115, 1
        %s1031 = scalar_lea.sflag [#allocation4], %s1030
        %s1032 = sand.u32 %s115, 1
        %s1033 = smul.addr %s1032, 128
        %s1034 = scalar_lea.vmem [#allocation3], %s1033
        // Predicated region
        $region75: #{dense_block_forward.13} parent=69 // pred_check
          %p1035 = pneg %p125
        $region76: #{dense_block_forward.13} parent=69 // pred_check_branch
          %1037 = sbr.rel (%p1035) target = $region78
        $region77: #{dense_block_forward.13} parent=69 // pred_region
          %s1038 = smul.u32 16, %s18
          %s1040 = ssub.s32 2048, 2048
          %1041 = vsyncadd %s1031, %s1040
          %s1042 = smul.addr %s1038, 128
          %s1043 = scalar_lea.hbm %s4, %s1042
          %s1044 = sshll.u32 %s1034, 4
          %s1045 = int_to_ptr.vmem [resolvable:$true] %s1044
          %1050 = dma.vmem_to_hbm [thread:$0]  %s1045, 2048, %s1043, %s1031, 128, 128, 8
        $region78: #{dense_block_forward.13} parent=69 // pred_fallthru
          _
      $region70: #{dense_block_forward.13} parent=5 // pred_fallthru
        _
      %p1051 = scmp.le.s32.totalorder 2, %s13
      // Predicated region
      $region79: #{dense_block_forward.13} parent=5 // pred_check
        %p1052 = pneg %p1051
      $region80: #{dense_block_forward.13} parent=5 // pred_check_branch
        %1054 = sbr.rel (%p1052) target = $region82
      $region81: #{dense_block_forward.13} parent=5 // pred_region
        %s1055 = ssub.s32 %s13, 2
        // Predicated region
        $region83: #{dense_block_forward.13} parent=81 // pred_check
          %p1056 = pneg %p131
        $region84: #{dense_block_forward.13} parent=81 // pred_check_branch
          %1058 = sbr.rel (%p1056) target = $region86
        $region85: #{dense_block_forward.13} parent=81 // pred_region
          %s1059 = sand.u32 %s116, 1
          %s1060 = scalar_lea.sflag [#allocation4], %s1059
          %s1061 = sand.u32 %s116, 1
          %s1062 = smul.addr %s1061, 128
          %s1063 = scalar_lea.vmem [#allocation3], %s1062
          %1064 = dma.done %s1060, 2048
        $region86: #{dense_block_forward.13} parent=81 // pred_fallthru
          _
      $region82: #{dense_block_forward.13} parent=5 // pred_fallthru
        _
    $region6: #{dense_block_forward.13} parent=1 // loop_footer
      %s17 = sadd.s32 1, %s13
    $region7: #{dense_block_forward.13} parent=1 // loop_footer_branch
      %12 = sbr.rel target = $region3
    $region8: #{dense_block_forward.13} parent=1 // loop_exit
      _
    %1065 = vsyncpa [#allocation4], 1
    %s1066 = scalar_lea.sflag [#allocation4], 1
    %1067 = vsyncpa %s1066, 1

</llo_original>
